<compile_context>
chip_gen: v6e
topology: v6e:2x2x1
jax: 0.10.0
libtpu: 0.0.40
codegen_flags: <defaults>
</compile_context>

<pallas_src>
import jax
import jax.numpy as jnp
from jax.experimental import pallas as pl
from jax.experimental.pallas import tpu as pltpu

HIDDEN1 = 400
HIDDEN2 = 300
HIDDEN3 = 300
INPUT_SIZE = 29

IN_PAD = 32      # x augmented with a 1.0 bias column, padded to 32 lanes
H1P = 512        # HIDDEN1 padded to 4*128 (col 400 is the ones-carrier lane)
H2P = 384        # HIDDEN2 padded to 3*128 (col 300 is the ones-carrier lane)
H3P = 384        # HIDDEN3 padded to 3*128 (col 300 is the ones-carrier lane)
HEAD_PAD = 8     # 6 heads padded to 8 output lanes


def _round_up(n, m):
    return (n + m - 1) // m * m


def _actor_kernel(x_ref, w1_ref, w2_ref, w3_ref, wh_ref, ec_ref, out_ref):
    x = x_ref[...]                                              # (TB, 32) bf16

    # l1 = relu(x @ W1 + b1): b1 lives in W1 row 29 (x col 29 == 1.0).
    # W1 col 400 makes h1[:, 400] == 1.0, carrying the constant for b2.
    h1 = jnp.dot(x, w1_ref[...], preferred_element_type=jnp.float32)
    h1 = jnp.maximum(h1, 0.0).astype(jnp.bfloat16)              # (TB, 512)

    # l2 = relu(l1 @ W2 + b2): b2 in W2 row 400; W2 col 300 re-creates the
    # ones-carrier lane in h2.
    h2 = jnp.dot(h1, w2_ref[...], preferred_element_type=jnp.float32)
    h2 = jnp.maximum(h2, 0.0).astype(jnp.bfloat16)              # (TB, 384)

    # l3 = relu(l2 @ W3 + b3): b3 in W3 row 300; W3 col 300 carries ones again.
    h3 = jnp.dot(h2, w3_ref[...], preferred_element_type=jnp.float32)
    h3 = jnp.maximum(h3, 0.0).astype(jnp.bfloat16)              # (TB, 384)

    # 6 scalar heads fused into one (384, 8) bf16 matmul; bh folded in row 300.
    # Columns: 0 mu_st  1 mu_acc  2 mu_br  3 sigma_st  4 sigma_acc  5 sigma_br
    heads = jnp.dot(h3, wh_ref[...], preferred_element_type=jnp.float32)

    scale = ec_ref[0:1, 0:HEAD_PAD]                             # (1, 8)
    tanh_sel = ec_ref[1:2, 0:HEAD_PAD] > 0.5                    # col 0 -> tanh
    act = jnp.where(tanh_sel, jnp.tanh(heads), jax.nn.sigmoid(heads))
    out_ref[...] = act * scale                                  # (TB, 8) f32


def _choose_tile(B, block_b):
    """Batch tile: multiple of 16 (bf16 sublanes); >=2 tiles when B is large
    so both v7x TensorCores get work; capped by block_b (default 2048 keeps
    intermediates well inside v7x's 64 MiB VMEM)."""
    tb = _round_up(min(block_b, _round_up(B, 16)), 16)
    if B > 256 and -(-B // tb) < 2:
        tb = _round_up((B + 1) // 2, 16)
    Bp = _round_up(B, tb)
    return tb, Bp


def _vmem_limit_bytes(tb):
    """Explicit scoped-VMEM budget: resident bf16 weights + double-buffered
    x/out tiles + f32/bf16 intermediates (~7.7 KB / batch row at padded
    widths), 30% headroom; clamped to [16 MiB, 48 MiB] (v7x physical = 64)."""
    weights = (IN_PAD * H1P + H1P * H2P + H2P * H3P + H3P * HEAD_PAD) * 2
    io = 2 * tb * (IN_PAD * 2 + HEAD_PAD * 4)
    inter = tb * (H1P * 6 + H2P * 6 + H3P * 6 + HEAD_PAD * 8)
    est = int(1.3 * (weights + io + inter)) + (2 << 20)
    return max(16 << 20, min(est, 48 << 20))


def actor_forward(x, kparams, *, block_b=2048):
    """Returns (mu, sigma) parameterizing the Normal produced by Actor.forward."""
    B = x.shape[0]

    # Augment x with a constant-1 bias column and zero-pad features to 32.
    ones = jnp.ones((B, 1), jnp.float32)
    zpad = jnp.zeros((B, IN_PAD - INPUT_SIZE - 1), jnp.float32)
    x_aug = jnp.concatenate([x, ones, zpad], axis=1).astype(jnp.bfloat16)

    tb, Bp = _choose_tile(B, block_b)
    if Bp != B:
        # NOTE: padded rows have a zero in the bias column, so they propagate
        # zeros / sigmoid(0) garbage through the net; they are sliced off below.
        x_aug = jnp.pad(x_aug, ((0, Bp - B), (0, 0)))

    def weight_specs(single_buffer):
        def spec(shape):
            if single_buffer:
                # Constant index_map: one buffer is enough, frees VMEM headroom.
                return pl.BlockSpec(shape, lambda i: (0, 0),
                                    pipeline_mode=pl.Buffered(1))
            return pl.BlockSpec(shape, lambda i: (0, 0))
        return [spec((IN_PAD, H1P)), spec((H1P, H2P)), spec((H2P, H3P)),
                spec((H3P, HEAD_PAD)), spec((2, 128))]

    def run(single_buffer):
        return pl.pallas_call(
            _actor_kernel,
            out_shape=jax.ShapeDtypeStruct((Bp, HEAD_PAD), jnp.float32),
            grid_spec=pltpu.PrefetchScalarGridSpec(
                num_scalar_prefetch=0,
                grid=(Bp // tb,),
                in_specs=[pl.BlockSpec((tb, IN_PAD), lambda i: (i, 0))]
                         + weight_specs(single_buffer),
                out_specs=pl.BlockSpec((tb, HEAD_PAD), lambda i: (i, 0)),
            ),
            compiler_params=pltpu.CompilerParams(
                dimension_semantics=("parallel",),
                vmem_limit_bytes=_vmem_limit_bytes(tb)),
        )(x_aug, kparams["w1p"], kparams["w2p"], kparams["w3p"],
          kparams["whp"], kparams["econst"])

    try:
        out = run(True)
    except Exception:
        # pl.Buffered(1) not supported by this JAX build: default buffering.
        out = run(False)

    mu = out[:B, 0:3]
    sigma = out[:B, 3:6]
    return mu, sigma


def init_params(key):
    """Deterministic synthetic init (xavier-normal-like weights, small biases)."""
    def xavier(k, fan_in, fan_out):
        std = jnp.sqrt(2.0 / (fan_in + fan_out))
        return jax.random.normal(k, (fan_in, fan_out), jnp.float32) * std

    ks = jax.random.split(key, 13)
    head_ws = [xavier(ks[6 + i], HIDDEN3, 1) for i in range(6)]
    return {
        "w1": xavier(ks[0], INPUT_SIZE, HIDDEN1),
        "b1": 0.05 * jax.random.normal(ks[1], (1, HIDDEN1), jnp.float32),
        "w2": xavier(ks[2], HIDDEN1, HIDDEN2),
        "b2": 0.05 * jax.random.normal(ks[3], (1, HIDDEN2), jnp.float32),
        "w3": xavier(ks[4], HIDDEN2, HIDDEN3),
        "b3": 0.05 * jax.random.normal(ks[5], (1, HIDDEN3), jnp.float32),
        # Heads columnwise: [mu_st, mu_acc, mu_br, sigma_st, sigma_acc, sigma_br]
        "wh": jnp.concatenate(head_ws, axis=1),                 # (300, 6)
        "bh": 0.05 * jax.random.normal(ks[12], (1, 6), jnp.float32),
    }


def pack_params(p):
    """Convert natural f32 params into the kernel's padded / bias-folded bf16
    layout.  A constant-1 'carrier' lane is threaded through every layer so
    each layer's bias can live in a weight row (exactly 1.0 in bf16)."""
    w1p = jnp.zeros((IN_PAD, H1P), jnp.float32)
    w1p = w1p.at[:INPUT_SIZE, :HIDDEN1].set(p["w1"])
    w1p = w1p.at[INPUT_SIZE, :HIDDEN1].set(p["b1"][0])    # b1 via x ones column
    w1p = w1p.at[INPUT_SIZE, HIDDEN1].set(1.0)            # h1 carrier lane (col 400)

    w2p = jnp.zeros((H1P, H2P), jnp.float32)
    w2p = w2p.at[:HIDDEN1, :HIDDEN2].set(p["w2"])
    w2p = w2p.at[HIDDEN1, :HIDDEN2].set(p["b2"][0])       # b2 via h1 carrier lane
    w2p = w2p.at[HIDDEN1, HIDDEN2].set(1.0)               # h2 carrier lane (col 300)

    w3p = jnp.zeros((H2P, H3P), jnp.float32)
    w3p = w3p.at[:HIDDEN2, :HIDDEN3].set(p["w3"])
    w3p = w3p.at[HIDDEN2, :HIDDEN3].set(p["b3"][0])       # b3 via h2 carrier lane
    w3p = w3p.at[HIDDEN2, HIDDEN3].set(1.0)               # h3 carrier lane (col 300)

    whp = jnp.zeros((H3P, HEAD_PAD), jnp.float32)
    whp = whp.at[:HIDDEN3, 0:6].set(p["wh"])
    whp = whp.at[HIDDEN3, 0:6].set(p["bh"][0])            # bh via h3 carrier lane

    # Epilogue constants: row 0 = per-column output scale, row 1 = tanh selector.
    econst = jnp.zeros((2, 128), jnp.float32)
    econst = econst.at[0, 0:HEAD_PAD].set(
        jnp.array([1.0, 1.0, 0.1, 0.3, 0.5, 0.05, 0.0, 0.0], jnp.float32))
    econst = econst.at[1, 0].set(1.0)

    return {
        "w1p": w1p.astype(jnp.bfloat16),
        "w2p": w2p.astype(jnp.bfloat16),
        "w3p": w3p.astype(jnp.bfloat16),
        "whp": whp.astype(jnp.bfloat16),
        "econst": econst,
    }


def actor_forward_ref(x, params):
    """Pure-JAX f32 reference for correctness check."""
    h1 = jax.nn.relu(x @ params["w1"] + params["b1"])
    h2 = jax.nn.relu(h1 @ params["w2"] + params["b2"])
    h3 = jax.nn.relu(h2 @ params["w3"] + params["b3"])
    heads = h3 @ params["wh"] + params["bh"]
    mu = jnp.concatenate(
        [jnp.tanh(heads[:, 0:1]),
         jax.nn.sigmoid(heads[:, 1:2]),
         jax.nn.sigmoid(heads[:, 2:3]) * 0.1], axis=1)
    sigma = jnp.concatenate(
        [jax.nn.sigmoid(heads[:, 3:4]) * 0.3,
         jax.nn.sigmoid(heads[:, 4:5]) * 0.5,
         jax.nn.sigmoid(heads[:, 5:6]) * 0.05], axis=1)
    return mu, sigma


if __name__ == "__main__":
    key = jax.random.PRNGKey(0)
    kp, kx, kx2 = jax.random.split(key, 3)
    params = init_params(kp)
    kparams = pack_params(params)

    # Per-head tolerances scaled to each head's output range, so bf16 drift in
    # the 0.05-scaled sigma_br branch is not hidden behind a loose flat atol.
    mu_atol = jnp.array([5e-2, 2e-2, 2e-3], jnp.float32)      # tanh, sig, sig*0.1
    sigma_atol = jnp.array([6e-3, 1e-2, 1e-3], jnp.float32)   # sig*{0.3,0.5,0.05}

    def check(x, block_b):
        mu, sigma = actor_forward(x, kparams, block_b=block_b)
        jax.block_until_ready((mu, sigma))
        mu_ref, sigma_ref = actor_forward_ref(x, params)
        assert mu.shape == mu_ref.shape and sigma.shape == sigma_ref.shape
        assert bool(jnp.all(jnp.abs(mu - mu_ref) <= mu_atol)), "mu mismatch"
        assert bool(jnp.all(jnp.abs(sigma - sigma_ref) <= sigma_atol)), "sigma mismatch"

    # Small batch (single 16-row tile).
    check(jax.random.normal(kx, (8, INPUT_SIZE), jnp.float32), 2048)

    # Larger ragged batch exercising the batch grid + padding path (grid = (3,)).
    check(jax.random.normal(kx2, (300, INPUT_SIZE), jnp.float32), 128)

    # TODO(synk): torch.distributions.Normal has no Pallas equivalent; the
    # kernel returns (mu, sigma), which fully parameterize that distribution.
    print("KERNEL_OK")
</pallas_src>

<mosaic_0001>
module attributes {stable_mosaic.version = 11 : i64} {
  func.func @_actor_kernel(%arg0: i32, %arg1: memref<16x32xbf16, #tpu.memory_space<vmem>>, %arg2: memref<32x512xbf16, #tpu.memory_space<vmem>>, %arg3: memref<512x384xbf16, #tpu.memory_space<vmem>>, %arg4: memref<384x384xbf16, #tpu.memory_space<vmem>>, %arg5: memref<384x8xbf16, #tpu.memory_space<vmem>>, %arg6: memref<2x128xf32, #tpu.memory_space<vmem>>, %arg7: memref<16x8xf32, #tpu.memory_space<vmem>>) attributes {dimension_semantics = [#tpu.dimension_semantics<parallel>], iteration_bounds = array<i64: 1>, scalar_prefetch = 0 : i64, scratch_operands = 0 : i64, tpu.core_type = #tpu.core_type<tc>, window_params = [{transform_indices = @transform_0, window_bounds = array<i64: 16, 32>}, {pipeline_mode = #tpu.pipeline_mode<synchronous>, transform_indices = @transform_1, window_bounds = array<i64: 32, 512>}, {pipeline_mode = #tpu.pipeline_mode<synchronous>, transform_indices = @transform_2, window_bounds = array<i64: 512, 384>}, {pipeline_mode = #tpu.pipeline_mode<synchronous>, transform_indices = @transform_3, window_bounds = array<i64: 384, 384>}, {pipeline_mode = #tpu.pipeline_mode<synchronous>, transform_indices = @transform_4, window_bounds = array<i64: 384, 8>}, {pipeline_mode = #tpu.pipeline_mode<synchronous>, transform_indices = @transform_5, window_bounds = array<i64: 2, 128>}, {transform_indices = @transform_6, window_bounds = array<i64: 16, 8>}]} {
    %c0 = arith.constant 0 : index
    %c0_0 = arith.constant 0 : index
    %0 = vector.load %arg1[%c0, %c0_0] : memref<16x32xbf16, #tpu.memory_space<vmem>>, vector<16x32xbf16>
    %c0_1 = arith.constant 0 : index
    %c0_2 = arith.constant 0 : index
    %1 = vector.load %arg2[%c0_1, %c0_2] : memref<32x512xbf16, #tpu.memory_space<vmem>>, vector<32x512xbf16>
    %cst = arith.constant dense<0.000000e+00> : vector<16x512xf32>
    %2 = tpu.matmul %0, %1, %cst {dimension_numbers = #tpu.dot_dimension_numbers<[1], [0], [0], [1], [0, 0, 1, 1], [], []>} : vector<16x32xbf16>, vector<32x512xbf16>, vector<16x512xf32> -> vector<16x512xf32>
    %cst_3 = arith.constant 0.000000e+00 : f32
    %3 = vector.broadcast %cst_3 : f32 to vector<16x512xf32>
    %4 = arith.maximumf %2, %3 : vector<16x512xf32>
    %5 = arith.truncf %4 : vector<16x512xf32> to vector<16x512xbf16>
    %c0_4 = arith.constant 0 : index
    %c0_5 = arith.constant 0 : index
    %6 = vector.load %arg3[%c0_4, %c0_5] : memref<512x384xbf16, #tpu.memory_space<vmem>>, vector<512x384xbf16>
    %cst_6 = arith.constant dense<0.000000e+00> : vector<16x384xf32>
    %7 = tpu.matmul %5, %6, %cst_6 {dimension_numbers = #tpu.dot_dimension_numbers<[1], [0], [0], [1], [0, 0, 1, 1], [], []>} : vector<16x512xbf16>, vector<512x384xbf16>, vector<16x384xf32> -> vector<16x384xf32>
    %cst_7 = arith.constant 0.000000e+00 : f32
    %8 = vector.broadcast %cst_7 : f32 to vector<16x384xf32>
    %9 = arith.maximumf %7, %8 : vector<16x384xf32>
    %10 = arith.truncf %9 : vector<16x384xf32> to vector<16x384xbf16>
    %c0_8 = arith.constant 0 : index
    %c0_9 = arith.constant 0 : index
    %11 = vector.load %arg4[%c0_8, %c0_9] : memref<384x384xbf16, #tpu.memory_space<vmem>>, vector<384x384xbf16>
    %cst_10 = arith.constant dense<0.000000e+00> : vector<16x384xf32>
    %12 = tpu.matmul %10, %11, %cst_10 {dimension_numbers = #tpu.dot_dimension_numbers<[1], [0], [0], [1], [0, 0, 1, 1], [], []>} : vector<16x384xbf16>, vector<384x384xbf16>, vector<16x384xf32> -> vector<16x384xf32>
    %cst_11 = arith.constant 0.000000e+00 : f32
    %13 = vector.broadcast %cst_11 : f32 to vector<16x384xf32>
    %14 = arith.maximumf %12, %13 : vector<16x384xf32>
    %15 = arith.truncf %14 : vector<16x384xf32> to vector<16x384xbf16>
    %c0_12 = arith.constant 0 : index
    %c0_13 = arith.constant 0 : index
    %16 = vector.load %arg5[%c0_12, %c0_13] : memref<384x8xbf16, #tpu.memory_space<vmem>>, vector<384x8xbf16>
    %cst_14 = arith.constant dense<0.000000e+00> : vector<16x8xf32>
    %17 = tpu.matmul %15, %16, %cst_14 {dimension_numbers = #tpu.dot_dimension_numbers<[1], [0], [0], [1], [0, 0, 1, 1], [], []>} : vector<16x384xbf16>, vector<384x8xbf16>, vector<16x8xf32> -> vector<16x8xf32>
    %c0_15 = arith.constant 0 : index
    %c0_16 = arith.constant 0 : index
    %18 = vector.load %arg6[%c0_15, %c0_16] : memref<2x128xf32, #tpu.memory_space<vmem>>, vector<1x8xf32>
    %c1 = arith.constant 1 : index
    %c0_17 = arith.constant 0 : index
    %19 = vector.load %arg6[%c1, %c0_17] : memref<2x128xf32, #tpu.memory_space<vmem>>, vector<1x8xf32>
    %cst_18 = arith.constant 5.000000e-01 : f32
    %20 = vector.broadcast %cst_18 : f32 to vector<1x8xf32>
    %21 = arith.cmpf ogt, %19, %20 : vector<1x8xf32>
    %22 = math.tanh %17 : vector<16x8xf32>
    %23 = arith.negf %17 : vector<16x8xf32>
    %24 = math.exp %23 : vector<16x8xf32>
    %cst_19 = arith.constant 1.000000e+00 : f32
    %25 = vector.broadcast %cst_19 : f32 to vector<16x8xf32>
    %26 = arith.addf %25, %24 : vector<16x8xf32>
    %27 = arith.divf %25, %26 : vector<16x8xf32>
    %28 = vector.shape_cast %21 : vector<1x8xi1> to vector<1x8xi1>
    %29 = vector.broadcast %28 : vector<1x8xi1> to vector<16x8xi1>
    %30 = arith.select %29, %22, %27 : vector<16x8xi1>, vector<16x8xf32>
    %31 = vector.broadcast %18 : vector<1x8xf32> to vector<16x8xf32>
    %32 = arith.mulf %30, %31 : vector<16x8xf32>
    %c0_20 = arith.constant 0 : index
    %c0_21 = arith.constant 0 : index
    %33 = vector.load %arg7[%c0_20, %c0_21] : memref<16x8xf32, #tpu.memory_space<vmem>>, vector<16x8xf32>
    tpu.vector_store %arg7[%c0_20, %c0_21], %32 {strides = array<i32>} : memref<16x8xf32, #tpu.memory_space<vmem>>, vector<16x8xf32>,
    return
  }
  func.func @transform_0(%arg0: i32) -> (i32, i32) {
    %c0_i32 = arith.constant 0 : i32
    %c0_i32_0 = arith.constant 0 : i32
    return %arg0, %c0_i32 : i32, i32
  }
  func.func @transform_1(%arg0: i32) -> (i32, i32) {
    %c0_i32 = arith.constant 0 : i32
    %c0_i32_0 = arith.constant 0 : i32
    %c0_i32_1 = arith.constant 0 : i32
    return %c0_i32, %c0_i32_0 : i32, i32
  }
  func.func @transform_2(%arg0: i32) -> (i32, i32) {
    %c0_i32 = arith.constant 0 : i32
    %c0_i32_0 = arith.constant 0 : i32
    %c0_i32_1 = arith.constant 0 : i32
    return %c0_i32, %c0_i32_0 : i32, i32
  }
  func.func @transform_3(%arg0: i32) -> (i32, i32) {
    %c0_i32 = arith.constant 0 : i32
    %c0_i32_0 = arith.constant 0 : i32
    %c0_i32_1 = arith.constant 0 : i32
    return %c0_i32, %c0_i32_0 : i32, i32
  }
  func.func @transform_4(%arg0: i32) -> (i32, i32) {
    %c0_i32 = arith.constant 0 : i32
    %c0_i32_0 = arith.constant 0 : i32
    %c0_i32_1 = arith.constant 0 : i32
    return %c0_i32, %c0_i32_0 : i32, i32
  }
  func.func @transform_5(%arg0: i32) -> (i32, i32) {
    %c0_i32 = arith.constant 0 : i32
    %c0_i32_0 = arith.constant 0 : i32
    %c0_i32_1 = arith.constant 0 : i32
    return %c0_i32, %c0_i32_0 : i32, i32
  }
  func.func @transform_6(%arg0: i32) -> (i32, i32) {
    %c0_i32 = arith.constant 0 : i32
    %c0_i32_0 = arith.constant 0 : i32
    return %arg0, %c0_i32 : i32, i32
  }
}

module attributes {stable_mosaic.version = 11 : i64} {
  func.func @_actor_kernel(%arg0: i32, %arg1: memref<16x32xbf16, #tpu.memory_space<vmem>>, %arg2: memref<32x512xbf16, #tpu.memory_space<vmem>>, %arg3: memref<512x384xbf16, #tpu.memory_space<vmem>>, %arg4: memref<384x384xbf16, #tpu.memory_space<vmem>>, %arg5: memref<384x8xbf16, #tpu.memory_space<vmem>>, %arg6: memref<2x128xf32, #tpu.memory_space<vmem>>, %arg7: memref<16x8xf32, #tpu.memory_space<vmem>>) attributes {dimension_semantics = [#tpu.dimension_semantics<parallel>], iteration_bounds = array<i64: 1>, scalar_prefetch = 0 : i64, scratch_operands = 0 : i64, tpu.core_type = #tpu.core_type<tc>, window_params = [{transform_indices = @transform_0, window_bounds = array<i64: 16, 32>}, {pipeline_mode = #tpu.pipeline_mode<synchronous>, transform_indices = @transform_1, window_bounds = array<i64: 32, 512>}, {pipeline_mode = #tpu.pipeline_mode<synchronous>, transform_indices = @transform_2, window_bounds = array<i64: 512, 384>}, {pipeline_mode = #tpu.pipeline_mode<synchronous>, transform_indices = @transform_3, window_bounds = array<i64: 384, 384>}, {pipeline_mode = #tpu.pipeline_mode<synchronous>, transform_indices = @transform_4, window_bounds = array<i64: 384, 8>}, {pipeline_mode = #tpu.pipeline_mode<synchronous>, transform_indices = @transform_5, window_bounds = array<i64: 2, 128>}, {transform_indices = @transform_6, window_bounds = array<i64: 16, 8>}]} {
    %c0 = arith.constant 0 : index
    %c0_0 = arith.constant 0 : index
    %0 = vector.load %arg1[%c0, %c0_0] : memref<16x32xbf16, #tpu.memory_space<vmem>>, vector<16x32xbf16>
    %c0_1 = arith.constant 0 : index
    %c0_2 = arith.constant 0 : index
    %1 = vector.load %arg2[%c0_1, %c0_2] : memref<32x512xbf16, #tpu.memory_space<vmem>>, vector<32x512xbf16>
    %cst = arith.constant dense<0.000000e+00> : vector<16x512xf32>
    %2 = tpu.matmul %0, %1, %cst {dimension_numbers = #tpu.dot_dimension_numbers<[1], [0], [0], [1], [0, 0, 1, 1], [], []>} : vector<16x32xbf16>, vector<32x512xbf16>, vector<16x512xf32> -> vector<16x512xf32>
    %cst_3 = arith.constant 0.000000e+00 : f32
    %3 = vector.broadcast %cst_3 : f32 to vector<16x512xf32>
    %4 = arith.maximumf %2, %3 : vector<16x512xf32>
    %5 = arith.truncf %4 : vector<16x512xf32> to vector<16x512xbf16>
    %c0_4 = arith.constant 0 : index
    %c0_5 = arith.constant 0 : index
    %6 = vector.load %arg3[%c0_4, %c0_5] : memref<512x384xbf16, #tpu.memory_space<vmem>>, vector<512x384xbf16>
    %cst_6 = arith.constant dense<0.000000e+00> : vector<16x384xf32>
    %7 = tpu.matmul %5, %6, %cst_6 {dimension_numbers = #tpu.dot_dimension_numbers<[1], [0], [0], [1], [0, 0, 1, 1], [], []>} : vector<16x512xbf16>, vector<512x384xbf16>, vector<16x384xf32> -> vector<16x384xf32>
    %cst_7 = arith.constant 0.000000e+00 : f32
    %8 = vector.broadcast %cst_7 : f32 to vector<16x384xf32>
    %9 = arith.maximumf %7, %8 : vector<16x384xf32>
    %10 = arith.truncf %9 : vector<16x384xf32> to vector<16x384xbf16>
    %c0_8 = arith.constant 0 : index
    %c0_9 = arith.constant 0 : index
    %11 = vector.load %arg4[%c0_8, %c0_9] : memref<384x384xbf16, #tpu.memory_space<vmem>>, vector<384x384xbf16>
    %cst_10 = arith.constant dense<0.000000e+00> : vector<16x384xf32>
    %12 = tpu.matmul %10, %11, %cst_10 {dimension_numbers = #tpu.dot_dimension_numbers<[1], [0], [0], [1], [0, 0, 1, 1], [], []>} : vector<16x384xbf16>, vector<384x384xbf16>, vector<16x384xf32> -> vector<16x384xf32>
    %cst_11 = arith.constant 0.000000e+00 : f32
    %13 = vector.broadcast %cst_11 : f32 to vector<16x384xf32>
    %14 = arith.maximumf %12, %13 : vector<16x384xf32>
    %15 = arith.truncf %14 : vector<16x384xf32> to vector<16x384xbf16>
    %c0_12 = arith.constant 0 : index
    %c0_13 = arith.constant 0 : index
    %16 = vector.load %arg5[%c0_12, %c0_13] : memref<384x8xbf16, #tpu.memory_space<vmem>>, vector<384x8xbf16>
    %cst_14 = arith.constant dense<0.000000e+00> : vector<16x8xf32>
    %17 = tpu.matmul %15, %16, %cst_14 {dimension_numbers = #tpu.dot_dimension_numbers<[1], [0], [0], [1], [0, 0, 1, 1], [], []>} : vector<16x384xbf16>, vector<384x8xbf16>, vector<16x8xf32> -> vector<16x8xf32>
    %c0_15 = arith.constant 0 : index
    %c0_16 = arith.constant 0 : index
    %18 = vector.load %arg6[%c0_15, %c0_16] : memref<2x128xf32, #tpu.memory_space<vmem>>, vector<1x8xf32>
    %c1 = arith.constant 1 : index
    %c0_17 = arith.constant 0 : index
    %19 = vector.load %arg6[%c1, %c0_17] : memref<2x128xf32, #tpu.memory_space<vmem>>, vector<1x8xf32>
    %cst_18 = arith.constant 5.000000e-01 : f32
    %20 = vector.broadcast %cst_18 : f32 to vector<1x8xf32>
    %21 = arith.cmpf ogt, %19, %20 : vector<1x8xf32>
    %22 = math.tanh %17 : vector<16x8xf32>
    %23 = arith.negf %17 : vector<16x8xf32>
    %24 = math.exp %23 : vector<16x8xf32>
    %cst_19 = arith.constant 1.000000e+00 : f32
    %25 = vector.broadcast %cst_19 : f32 to vector<16x8xf32>
    %26 = arith.addf %25, %24 : vector<16x8xf32>
    %27 = arith.divf %25, %26 : vector<16x8xf32>
    %28 = vector.shape_cast %21 : vector<1x8xi1> to vector<1x8xi1>
    %29 = vector.broadcast %28 : vector<1x8xi1> to vector<16x8xi1>
    %30 = arith.select %29, %22, %27 : vector<16x8xi1>, vector<16x8xf32>
    %31 = vector.broadcast %18 : vector<1x8xf32> to vector<16x8xf32>
    %32 = arith.mulf %30, %31 : vector<16x8xf32>
    %c0_20 = arith.constant 0 : index
    %c0_21 = arith.constant 0 : index
    %33 = vector.load %arg7[%c0_20, %c0_21] : memref<16x8xf32, #tpu.memory_space<vmem>>, vector<16x8xf32>
    tpu.vector_store %arg7[%c0_20, %c0_21], %32 {strides = array<i32>} : memref<16x8xf32, #tpu.memory_space<vmem>>, vector<16x8xf32>,
    return
  }
  func.func @transform_0(%arg0: i32) -> (i32, i32) {
    %c0_i32 = arith.constant 0 : i32
    %c0_i32_0 = arith.constant 0 : i32
    return %arg0, %c0_i32 : i32, i32
  }
  func.func @transform_1(%arg0: i32) -> (i32, i32) {
    %c0_i32 = arith.constant 0 : i32
    %c0_i32_0 = arith.constant 0 : i32
    %c0_i32_1 = arith.constant 0 : i32
    return %c0_i32, %c0_i32_0 : i32, i32
  }
  func.func @transform_2(%arg0: i32) -> (i32, i32) {
    %c0_i32 = arith.constant 0 : i32
    %c0_i32_0 = arith.constant 0 : i32
    %c0_i32_1 = arith.constant 0 : i32
    return %c0_i32, %c0_i32_0 : i32, i32
  }
  func.func @transform_3(%arg0: i32) -> (i32, i32) {
    %c0_i32 = arith.constant 0 : i32
    %c0_i32_0 = arith.constant 0 : i32
    %c0_i32_1 = arith.constant 0 : i32
    return %c0_i32, %c0_i32_0 : i32, i32
  }
  func.func @transform_4(%arg0: i32) -> (i32, i32) {
    %c0_i32 = arith.constant 0 : i32
    %c0_i32_0 = arith.constant 0 : i32
    %c0_i32_1 = arith.constant 0 : i32
    return %c0_i32, %c0_i32_0 : i32, i32
  }
  func.func @transform_5(%arg0: i32) -> (i32, i32) {
    %c0_i32 = arith.constant 0 : i32
    %c0_i32_0 = arith.constant 0 : i32
    %c0_i32_1 = arith.constant 0 : i32
    return %c0_i32, %c0_i32_0 : i32, i32
  }
  func.func @transform_6(%arg0: i32) -> (i32, i32) {
    %c0_i32 = arith.constant 0 : i32
    %c0_i32_0 = arith.constant 0 : i32
    return %arg0, %c0_i32 : i32, i32
  }
}

</mosaic_0001>

<llo_original>
// kernel: tpu_custom_call.1
$region0: #{tpu_custom_call.1}
  #allocation0 [shape = 'u32[]', space=smem, size = 0x4, offset = 0x4, fixed_abs, tag = 'smem constant byte address 0x4 - core index']
  #allocation1 [shape = 'u32[144,128]{1,0:T(1,128)}', space=vmem, size = 0x12000, scoped, tag = 'internal scratch']
  %s0 = inlined_call_operand.vmem [shape: bf16[16,32], index: 0, kind: input, shape index: {}]
  %s1 = inlined_call_operand.vmem [shape: bf16[32,512], index: 1, kind: input, shape index: {}]
  %s2 = inlined_call_operand.hbm [shape: bf16[512,384], index: 2, kind: input, shape index: {}]
  %s3 = inlined_call_operand.hbm [shape: bf16[384,384], index: 3, kind: input, shape index: {}]
  %s4 = inlined_call_operand.vmem [shape: bf16[384,8], index: 4, kind: input, shape index: {}]
  %s5 = inlined_call_operand.vmem [shape: f32[2,128], index: 5, kind: input, shape index: {}]
  %s6 = inlined_call_operand.vmem [shape: f32[16,8], index: 6, kind: output, shape index: {}]
  %s7 = sld [smem:[#allocation0]]
  $region42: #{tpu_custom_call.1} parent=0
    _
  %s9 = ssub.s32 1, %s7
  %s10 = scalar_select 0, %s9, %s7
  $region1: #{tpu_custom_call.1} parent=0
    #allocation2 [shape = 'u8[393216]{0}', space=vmem, size = 0x60000, scoped, tag = 'input window, operand 2, single buffered']
    #allocation3 [shape = 's32[1]{0}', space=sflag, size = 0x4, scoped, tag = 'scoped memory for tpu_custom_call.1']
    #allocation4 [shape = 'u8[294912]{0}', space=vmem, size = 0x48000, scoped, tag = 'input window, operand 3, single buffered']
    #allocation5 [shape = 's32[1]{0}', space=sflag, size = 0x4, scoped, tag = 'scoped memory for tpu_custom_call.1']
    %11 = vsyncpa [#allocation3], 0
    %12 = vsyncpa [#allocation5], 0
    // Predicated region
    $region2: #{tpu_custom_call.1} parent=1 // pred_check
      _
    $region3: #{tpu_custom_call.1} parent=1 // pred_check_branch
      %14 = sbr.rel (0) target = $region5
    $region4: #{tpu_custom_call.1} parent=1 // pred_region
      _
    $region5: #{tpu_custom_call.1} parent=1 // pred_fallthru
      _
    // Predicated region
    $region6: #{tpu_custom_call.1} parent=1 // pred_check
      _
    $region7: #{tpu_custom_call.1} parent=1 // pred_check_branch
      %16 = sbr.rel (0) target = $region9
    $region8: #{tpu_custom_call.1} parent=1 // pred_region
      _
    $region9: #{tpu_custom_call.1} parent=1 // pred_fallthru
      _
    // Predicated region
    $region10: #{tpu_custom_call.1} parent=1 // pred_check
      _
    $region11: #{tpu_custom_call.1} parent=1 // pred_check_branch
      %18 = sbr.rel (0) target = $region13
    $region12: #{tpu_custom_call.1} parent=1 // pred_region
      %s20 = ssub.s32 12288, 12288
      %21 = vsyncadd [#allocation3], %s20
      %s22 = sshll.u32 [#allocation2], 4
      %s23 = int_to_ptr.vmem [resolvable:$true] %s22
      %28 = dma.hbm_to_vmem [thread:$0]  %s2, 12288, %s23, [#allocation3], 192, 192, 12
    $region13: #{tpu_custom_call.1} parent=1 // pred_fallthru
      _
    // Predicated region
    $region14: #{tpu_custom_call.1} parent=1 // pred_check
      _
    $region15: #{tpu_custom_call.1} parent=1 // pred_check_branch
      %30 = sbr.rel (0) target = $region17
    $region16: #{tpu_custom_call.1} parent=1 // pred_region
      %s32 = ssub.s32 9216, 9216
      %33 = vsyncadd [#allocation5], %s32
      %s34 = sshll.u32 [#allocation4], 4
      %s35 = int_to_ptr.vmem [resolvable:$true] %s34
      %40 = dma.hbm_to_vmem [thread:$0]  %s3, 9216, %s35, [#allocation5], 192, 192, 12
    $region17: #{tpu_custom_call.1} parent=1 // pred_fallthru
      _
    // Predicated region
    $region18: #{tpu_custom_call.1} parent=1 // pred_check
      _
    $region19: #{tpu_custom_call.1} parent=1 // pred_check_branch
      %42 = sbr.rel (0) target = $region21
    $region20: #{tpu_custom_call.1} parent=1 // pred_region
      _
    $region21: #{tpu_custom_call.1} parent=1 // pred_fallthru
      _
    // Predicated region
    $region22: #{tpu_custom_call.1} parent=1 // pred_check
      _
    $region23: #{tpu_custom_call.1} parent=1 // pred_check_branch
      %44 = sbr.rel (0) target = $region25
    $region24: #{tpu_custom_call.1} parent=1 // pred_region
      _
    $region25: #{tpu_custom_call.1} parent=1 // pred_fallthru
      _
    // Predicated region
    $region26: #{tpu_custom_call.1} parent=1 // pred_check
      _
    $region27: #{tpu_custom_call.1} parent=1 // pred_check_branch
      %46 = sbr.rel (0) target = $region29
    $region28: #{tpu_custom_call.1} parent=1 // pred_region
      %47 = dma.done [#allocation3], 12288
    $region29: #{tpu_custom_call.1} parent=1 // pred_fallthru
      _
    // Predicated region
    $region30: #{tpu_custom_call.1} parent=1 // pred_check
      _
    $region31: #{tpu_custom_call.1} parent=1 // pred_check_branch
      %49 = sbr.rel (0) target = $region33
    $region32: #{tpu_custom_call.1} parent=1 // pred_region
      %50 = dma.done [#allocation5], 9216
    $region33: #{tpu_custom_call.1} parent=1 // pred_fallthru
      _
    %v52 = vld [vmem:[%s0] sm:$0xf]
    %v53 = vld [vmem:[%s0 + $0x4] sm:$0xf]
    %v54 = vld [vmem:[%s1] sm:$0xff]
    %v55 = vld [vmem:[%s1 + $0x8] sm:$0xff]
    %v56 = vld [vmem:[%s1 + $0x10] sm:$0xff]
    %v57 = vld [vmem:[%s1 + $0x18] sm:$0xff]
    %v58 = vld [vmem:[%s1 + $0x20] sm:$0xff]
    %v59 = vld [vmem:[%s1 + $0x28] sm:$0xff]
    %v60 = vld [vmem:[%s1 + $0x30] sm:$0xff]
    %v61 = vld [vmem:[%s1 + $0x38] sm:$0xff]
    %v64 = vunpack.c.l.b16 %v52
    %v65 = vunpack.c.l.b16 %v53
    %v66 = vpack.c.b16 %v65, %v64
    %v75 = vunpack.c.l.b16 %v54
    %v76 = vunpack.c.h.b16 %v54
    %v77 = vunpack.c.l.b16 %v55
    %v78 = vunpack.c.h.b16 %v55
    %v79 = vunpack.c.l.b16 %v56
    %v80 = vunpack.c.h.b16 %v56
    %v81 = vunpack.c.l.b16 %v57
    %v82 = vunpack.c.h.b16 %v57
    %v83 = vunpack.c.l.b16 %v58
    %v84 = vunpack.c.h.b16 %v58
    %v85 = vunpack.c.l.b16 %v59
    %v86 = vunpack.c.h.b16 %v59
    %v87 = vunpack.c.l.b16 %v60
    %v88 = vunpack.c.h.b16 %v60
    %v89 = vunpack.c.l.b16 %v61
    %v90 = vunpack.c.h.b16 %v61
    %v91 = vpack.c.b16 %v79, %v75
    %v92 = vpack.c.b16 %v80, %v76
    %v93 = vpack.c.b16 %v81, %v77
    %v94 = vpack.c.b16 %v82, %v78
    %v95 = vpack.c.b16 %v87, %v83
    %v96 = vpack.c.b16 %v88, %v84
    %v97 = vpack.c.b16 %v89, %v85
    %v98 = vpack.c.b16 %v90, %v86
    %vm107 = vcmask 261120
    %v109 = vsel %vm107, %v66, 0
    %111 = vmatprep.subr.bf16.mxu0 0
    %112 = vmatpush1.bf16.msra.mxu0 0
    %113 = vmatprep.subr.bf16.mxu0 0
    %114 = vmatpush1.bf16.msra.mxu0 0
    %115 = vmatprep.subr.bf16.mxu0 0
    %116 = vmatpush1.bf16.msra.mxu0 0
    %117 = vmatprep.subr.bf16.mxu0 0
    %118 = vmatpush1.bf16.msra.mxu0 0
    %119 = vmatprep.subr.bf16.mxu0 0
    %120 = vmatpush1.bf16.msra.mxu0 0
    %121 = vmatprep.subr.bf16.mxu0 0
    %122 = vmatpush1.bf16.msra.mxu0 0
    %123 = vmatprep.subr.bf16.mxu0 %v96
    %124 = vmatpush1.bf16.msra.mxu0 %v95
    %125 = vmatprep.subr.bf16.mxu0 %v92
    %126 = vmatpush1.bf16.msra.mxu0 %v91
    %127 = vmatprep.subr.bf16.mxu0 0
    %128 = vmatpush2.bf16.msra.mxu0 0
    %129 = vmatprep.subr.bf16.mxu0 0
    %130 = vmatpush2.bf16.msra.mxu0 0
    %131 = vmatprep.subr.bf16.mxu0 0
    %132 = vmatpush2.bf16.msra.mxu0 0
    %133 = vmatprep.subr.bf16.mxu0 0
    %134 = vmatpush2.bf16.msra.mxu0 0
    %135 = vmatprep.subr.bf16.mxu0 0
    %136 = vmatpush2.bf16.msra.mxu0 0
    %137 = vmatprep.subr.bf16.mxu0 0
    %138 = vmatpush2.bf16.msra.mxu0 0
    %139 = vmatprep.subr.bf16.mxu0 0
    %140 = vmatpush2.bf16.msra.mxu0 0
    %141 = vmatprep.subr.bf16.mxu0 0
    %142 = vmatpush2.bf16.msra.mxu0 0
    %143 = vmatprep.mubr.bf16.mxu0 0
    %144 = vmatmul.mubr.bf16.gmra.mxu0 %v109
    %v145 = vpop.f32.mrf.mxu0
    %v146 = vadd.f32 0.0, %v145
    %v147 = vpop.f32.mrf.mxu0
    %v148 = vadd.f32 0.0, %v147
    %v149 = vpop.f32.mrf.mxu0
    %v150 = vadd.f32 0.0, %v149
    %v151 = vpop.f32.mrf.mxu0
    %v152 = vadd.f32 0.0, %v151
    %153 = vdwg.mxu0
    %154 = vmatprep.subr.bf16.mxu0 0
    %155 = vmatpush1.bf16.msra.mxu0 0
    %156 = vmatprep.subr.bf16.mxu0 0
    %157 = vmatpush1.bf16.msra.mxu0 0
    %158 = vmatprep.subr.bf16.mxu0 0
    %159 = vmatpush1.bf16.msra.mxu0 0
    %160 = vmatprep.subr.bf16.mxu0 0
    %161 = vmatpush1.bf16.msra.mxu0 0
    %162 = vmatprep.subr.bf16.mxu0 0
    %163 = vmatpush1.bf16.msra.mxu0 0
    %164 = vmatprep.subr.bf16.mxu0 0
    %165 = vmatpush1.bf16.msra.mxu0 0
    %166 = vmatprep.subr.bf16.mxu0 %v98
    %167 = vmatpush1.bf16.msra.mxu0 %v97
    %168 = vmatprep.subr.bf16.mxu0 %v94
    %169 = vmatpush1.bf16.msra.mxu0 %v93
    %170 = vmatprep.subr.bf16.mxu0 0
    %171 = vmatpush2.bf16.msra.mxu0 0
    %172 = vmatprep.subr.bf16.mxu0 0
    %173 = vmatpush2.bf16.msra.mxu0 0
    %174 = vmatprep.subr.bf16.mxu0 0
    %175 = vmatpush2.bf16.msra.mxu0 0
    %176 = vmatprep.subr.bf16.mxu0 0
    %177 = vmatpush2.bf16.msra.mxu0 0
    %178 = vmatprep.subr.bf16.mxu0 0
    %179 = vmatpush2.bf16.msra.mxu0 0
    %180 = vmatprep.subr.bf16.mxu0 0
    %181 = vmatpush2.bf16.msra.mxu0 0
    %182 = vmatprep.subr.bf16.mxu0 0
    %183 = vmatpush2.bf16.msra.mxu0 0
    %184 = vmatprep.subr.bf16.mxu0 0
    %185 = vmatpush2.bf16.msra.mxu0 0
    %186 = vmatprep.mubr.bf16.mxu0 0
    %187 = vmatmul.mubr.bf16.gmra.mxu0 %v109
    %v188 = vpop.f32.mrf.mxu0
    %v189 = vadd.f32 0.0, %v188
    %v190 = vpop.f32.mrf.mxu0
    %v191 = vadd.f32 0.0, %v190
    %v192 = vpop.f32.mrf.mxu0
    %v193 = vadd.f32 0.0, %v192
    %v194 = vpop.f32.mrf.mxu0
    %v195 = vadd.f32 0.0, %v194
    %196 = vdwg.mxu0
    %v197 = vmax.f32 %v146, 0.0
    %v198 = vmax.f32 %v148, 0.0
    %v199 = vmax.f32 %v189, 0.0
    %v200 = vmax.f32 %v191, 0.0
    %v201 = vmax.f32 %v150, 0.0
    %v202 = vmax.f32 %v152, 0.0
    %v203 = vmax.f32 %v193, 0.0
    %v204 = vmax.f32 %v195, 0.0
    %v205 = vpack.c.bf16 %v201, %v197
    %v206 = vpack.c.bf16 %v202, %v198
    %v207 = vpack.c.bf16 %v203, %v199
    %v208 = vpack.c.bf16 %v204, %v200
    %v209 = vld [vmem:[#allocation2] sm:$0xff]
    %v210 = vld [vmem:[#allocation2 + $0x8] sm:$0xf]
    %v211 = vld [vmem:[#allocation2 + $0xc] sm:$0xff]
    %v212 = vld [vmem:[#allocation2 + $0x14] sm:$0xf]
    %v213 = vld [vmem:[#allocation2 + $0x18] sm:$0xff]
    %v214 = vld [vmem:[#allocation2 + $0x20] sm:$0xf]
    %v215 = vld [vmem:[#allocation2 + $0x24] sm:$0xff]
    %v216 = vld [vmem:[#allocation2 + $0x2c] sm:$0xf]
    %v217 = vld [vmem:[#allocation2 + $0x30] sm:$0xff]
    %v218 = vld [vmem:[#allocation2 + $0x38] sm:$0xf]
    %v219 = vld [vmem:[#allocation2 + $0x3c] sm:$0xff]
    %v220 = vld [vmem:[#allocation2 + $0x44] sm:$0xf]
    %v221 = vld [vmem:[#allocation2 + $0x48] sm:$0xff]
    %v222 = vld [vmem:[#allocation2 + $0x50] sm:$0xf]
    %v223 = vld [vmem:[#allocation2 + $0x54] sm:$0xff]
    %v224 = vld [vmem:[#allocation2 + $0x5c] sm:$0xf]
    %v225 = vld [vmem:[#allocation2 + $0x60] sm:$0xff]
    %v226 = vld [vmem:[#allocation2 + $0x68] sm:$0xf]
    %v227 = vld [vmem:[#allocation2 + $0x6c] sm:$0xff]
    %v228 = vld [vmem:[#allocation2 + $0x74] sm:$0xf]
    %v229 = vld [vmem:[#allocation2 + $0x78] sm:$0xff]
    %v230 = vld [vmem:[#allocation2 + $0x80] sm:$0xf]
    %v231 = vld [vmem:[#allocation2 + $0x84] sm:$0xff]
    %v232 = vld [vmem:[#allocation2 + $0x8c] sm:$0xf]
    %v233 = vld [vmem:[#allocation2 + $0x90] sm:$0xff]
    %v234 = vld [vmem:[#allocation2 + $0x98] sm:$0xf]
    %v235 = vld [vmem:[#allocation2 + $0x9c] sm:$0xff]
    %v236 = vld [vmem:[#allocation2 + $0xa4] sm:$0xf]
    %v237 = vld [vmem:[#allocation2 + $0xa8] sm:$0xff]
    %v238 = vld [vmem:[#allocation2 + $0xb0] sm:$0xf]
    %v239 = vld [vmem:[#allocation2 + $0xb4] sm:$0xff]
    %v240 = vld [vmem:[#allocation2 + $0xbc] sm:$0xf]
    %v241 = vld [vmem:[#allocation2 + $0xc0] sm:$0xff]
    %v242 = vld [vmem:[#allocation2 + $0xc8] sm:$0xf]
    %v243 = vld [vmem:[#allocation2 + $0xcc] sm:$0xff]
    %v244 = vld [vmem:[#allocation2 + $0xd4] sm:$0xf]
    %v245 = vld [vmem:[#allocation2 + $0xd8] sm:$0xff]
    %v246 = vld [vmem:[#allocation2 + $0xe0] sm:$0xf]
    %v247 = vld [vmem:[#allocation2 + $0xe4] sm:$0xff]
    %v248 = vld [vmem:[#allocation2 + $0xec] sm:$0xf]
    %v249 = vld [vmem:[#allocation2 + $0xf0] sm:$0xff]
    %v250 = vld [vmem:[#allocation2 + $0xf8] sm:$0xf]
    %v251 = vld [vmem:[#allocation2 + $0xfc] sm:$0xff]
    %v252 = vld [vmem:[#allocation2 + $0x104] sm:$0xf]
    %v253 = vld [vmem:[#allocation2 + $0x108] sm:$0xff]
    %v254 = vld [vmem:[#allocation2 + $0x110] sm:$0xf]
    %v255 = vld [vmem:[#allocation2 + $0x114] sm:$0xff]
    %v256 = vld [vmem:[#allocation2 + $0x11c] sm:$0xf]
    %v257 = vld [vmem:[#allocation2 + $0x120] sm:$0xff]
    %v258 = vld [vmem:[#allocation2 + $0x128] sm:$0xf]
    %v259 = vld [vmem:[#allocation2 + $0x12c] sm:$0xff]
    %v260 = vld [vmem:[#allocation2 + $0x134] sm:$0xf]
    %v261 = vld [vmem:[#allocation2 + $0x138] sm:$0xff]
    %v262 = vld [vmem:[#allocation2 + $0x140] sm:$0xf]
    %v263 = vld [vmem:[#allocation2 + $0x144] sm:$0xff]
    %v264 = vld [vmem:[#allocation2 + $0x14c] sm:$0xf]
    %v265 = vld [vmem:[#allocation2 + $0x150] sm:$0xff]
    %v266 = vld [vmem:[#allocation2 + $0x158] sm:$0xf]
    %v267 = vld [vmem:[#allocation2 + $0x15c] sm:$0xff]
    %v268 = vld [vmem:[#allocation2 + $0x164] sm:$0xf]
    %v269 = vld [vmem:[#allocation2 + $0x168] sm:$0xff]
    %v270 = vld [vmem:[#allocation2 + $0x170] sm:$0xf]
    %v271 = vld [vmem:[#allocation2 + $0x174] sm:$0xff]
    %v272 = vld [vmem:[#allocation2 + $0x17c] sm:$0xf]
    %v273 = vld [vmem:[#allocation2 + $0x180] sm:$0xff]
    %v274 = vld [vmem:[#allocation2 + $0x188] sm:$0xf]
    %v275 = vld [vmem:[#allocation2 + $0x18c] sm:$0xff]
    %v276 = vld [vmem:[#allocation2 + $0x194] sm:$0xf]
    %v277 = vld [vmem:[#allocation2 + $0x198] sm:$0xff]
    %v278 = vld [vmem:[#allocation2 + $0x1a0] sm:$0xf]
    %v279 = vld [vmem:[#allocation2 + $0x1a4] sm:$0xff]
    %v280 = vld [vmem:[#allocation2 + $0x1ac] sm:$0xf]
    %v281 = vld [vmem:[#allocation2 + $0x1b0] sm:$0xff]
    %v282 = vld [vmem:[#allocation2 + $0x1b8] sm:$0xf]
    %v283 = vld [vmem:[#allocation2 + $0x1bc] sm:$0xff]
    %v284 = vld [vmem:[#allocation2 + $0x1c4] sm:$0xf]
    %v285 = vld [vmem:[#allocation2 + $0x1c8] sm:$0xff]
    %v286 = vld [vmem:[#allocation2 + $0x1d0] sm:$0xf]
    %v287 = vld [vmem:[#allocation2 + $0x1d4] sm:$0xff]
    %v288 = vld [vmem:[#allocation2 + $0x1dc] sm:$0xf]
    %v289 = vld [vmem:[#allocation2 + $0x1e0] sm:$0xff]
    %v290 = vld [vmem:[#allocation2 + $0x1e8] sm:$0xf]
    %v291 = vld [vmem:[#allocation2 + $0x1ec] sm:$0xff]
    %v292 = vld [vmem:[#allocation2 + $0x1f4] sm:$0xf]
    %v293 = vld [vmem:[#allocation2 + $0x1f8] sm:$0xff]
    %v294 = vld [vmem:[#allocation2 + $0x200] sm:$0xf]
    %v295 = vld [vmem:[#allocation2 + $0x204] sm:$0xff]
    %v296 = vld [vmem:[#allocation2 + $0x20c] sm:$0xf]
    %v297 = vld [vmem:[#allocation2 + $0x210] sm:$0xff]
    %v298 = vld [vmem:[#allocation2 + $0x218] sm:$0xf]
    %v299 = vld [vmem:[#allocation2 + $0x21c] sm:$0xff]
    %v300 = vld [vmem:[#allocation2 + $0x224] sm:$0xf]
    %v301 = vld [vmem:[#allocation2 + $0x228] sm:$0xff]
    %v302 = vld [vmem:[#allocation2 + $0x230] sm:$0xf]
    %v303 = vld [vmem:[#allocation2 + $0x234] sm:$0xff]
    %v304 = vld [vmem:[#allocation2 + $0x23c] sm:$0xf]
    %v305 = vld [vmem:[#allocation2 + $0x240] sm:$0xff]
    %v306 = vld [vmem:[#allocation2 + $0x248] sm:$0xf]
    %v307 = vld [vmem:[#allocation2 + $0x24c] sm:$0xff]
    %v308 = vld [vmem:[#allocation2 + $0x254] sm:$0xf]
    %v309 = vld [vmem:[#allocation2 + $0x258] sm:$0xff]
    %v310 = vld [vmem:[#allocation2 + $0x260] sm:$0xf]
    %v311 = vld [vmem:[#allocation2 + $0x264] sm:$0xff]
    %v312 = vld [vmem:[#allocation2 + $0x26c] sm:$0xf]
    %v313 = vld [vmem:[#allocation2 + $0x270] sm:$0xff]
    %v314 = vld [vmem:[#allocation2 + $0x278] sm:$0xf]
    %v315 = vld [vmem:[#allocation2 + $0x27c] sm:$0xff]
    %v316 = vld [vmem:[#allocation2 + $0x284] sm:$0xf]
    %v317 = vld [vmem:[#allocation2 + $0x288] sm:$0xff]
    %v318 = vld [vmem:[#allocation2 + $0x290] sm:$0xf]
    %v319 = vld [vmem:[#allocation2 + $0x294] sm:$0xff]
    %v320 = vld [vmem:[#allocation2 + $0x29c] sm:$0xf]
    %v321 = vld [vmem:[#allocation2 + $0x2a0] sm:$0xff]
    %v322 = vld [vmem:[#allocation2 + $0x2a8] sm:$0xf]
    %v323 = vld [vmem:[#allocation2 + $0x2ac] sm:$0xff]
    %v324 = vld [vmem:[#allocation2 + $0x2b4] sm:$0xf]
    %v325 = vld [vmem:[#allocation2 + $0x2b8] sm:$0xff]
    %v326 = vld [vmem:[#allocation2 + $0x2c0] sm:$0xf]
    %v327 = vld [vmem:[#allocation2 + $0x2c4] sm:$0xff]
    %v328 = vld [vmem:[#allocation2 + $0x2cc] sm:$0xf]
    %v329 = vld [vmem:[#allocation2 + $0x2d0] sm:$0xff]
    %v330 = vld [vmem:[#allocation2 + $0x2d8] sm:$0xf]
    %v331 = vld [vmem:[#allocation2 + $0x2dc] sm:$0xff]
    %v332 = vld [vmem:[#allocation2 + $0x2e4] sm:$0xf]
    %v333 = vld [vmem:[#allocation2 + $0x2e8] sm:$0xff]
    %v334 = vld [vmem:[#allocation2 + $0x2f0] sm:$0xf]
    %v335 = vld [vmem:[#allocation2 + $0x2f4] sm:$0xff]
    %v336 = vld [vmem:[#allocation2 + $0x2fc] sm:$0xf]
    %v465 = vunpack.c.l.b16 %v209
    %v466 = vunpack.c.h.b16 %v209
    %v467 = vunpack.c.l.b16 %v210
    %v468 = vunpack.c.l.b16 %v211
    %v469 = vunpack.c.h.b16 %v211
    %v470 = vunpack.c.l.b16 %v212
    %v471 = vunpack.c.l.b16 %v213
    %v472 = vunpack.c.h.b16 %v213
    %v473 = vunpack.c.l.b16 %v214
    %v474 = vunpack.c.l.b16 %v215
    %v475 = vunpack.c.h.b16 %v215
    %v476 = vunpack.c.l.b16 %v216
    %v477 = vunpack.c.l.b16 %v217
    %v478 = vunpack.c.h.b16 %v217
    %v479 = vunpack.c.l.b16 %v218
    %v480 = vunpack.c.l.b16 %v219
    %v481 = vunpack.c.h.b16 %v219
    %v482 = vunpack.c.l.b16 %v220
    %v483 = vunpack.c.l.b16 %v221
    %v484 = vunpack.c.h.b16 %v221
    %v485 = vunpack.c.l.b16 %v222
    %v486 = vunpack.c.l.b16 %v223
    %v487 = vunpack.c.h.b16 %v223
    %v488 = vunpack.c.l.b16 %v224
    %v489 = vunpack.c.l.b16 %v225
    %v490 = vunpack.c.h.b16 %v225
    %v491 = vunpack.c.l.b16 %v226
    %v492 = vunpack.c.l.b16 %v227
    %v493 = vunpack.c.h.b16 %v227
    %v494 = vunpack.c.l.b16 %v228
    %v495 = vunpack.c.l.b16 %v229
    %v496 = vunpack.c.h.b16 %v229
    %v497 = vunpack.c.l.b16 %v230
    %v498 = vunpack.c.l.b16 %v231
    %v499 = vunpack.c.h.b16 %v231
    %v500 = vunpack.c.l.b16 %v232
    %v501 = vunpack.c.l.b16 %v233
    %v502 = vunpack.c.h.b16 %v233
    %v503 = vunpack.c.l.b16 %v234
    %v504 = vunpack.c.l.b16 %v235
    %v505 = vunpack.c.h.b16 %v235
    %v506 = vunpack.c.l.b16 %v236
    %v507 = vunpack.c.l.b16 %v237
    %v508 = vunpack.c.h.b16 %v237
    %v509 = vunpack.c.l.b16 %v238
    %v510 = vunpack.c.l.b16 %v239
    %v511 = vunpack.c.h.b16 %v239
    %v512 = vunpack.c.l.b16 %v240
    %v513 = vunpack.c.l.b16 %v241
    %v514 = vunpack.c.h.b16 %v241
    %v515 = vunpack.c.l.b16 %v242
    %v516 = vunpack.c.l.b16 %v243
    %v517 = vunpack.c.h.b16 %v243
    %v518 = vunpack.c.l.b16 %v244
    %v519 = vunpack.c.l.b16 %v245
    %v520 = vunpack.c.h.b16 %v245
    %v521 = vunpack.c.l.b16 %v246
    %v522 = vunpack.c.l.b16 %v247
    %v523 = vunpack.c.h.b16 %v247
    %v524 = vunpack.c.l.b16 %v248
    %v525 = vunpack.c.l.b16 %v249
    %v526 = vunpack.c.h.b16 %v249
    %v527 = vunpack.c.l.b16 %v250
    %v528 = vunpack.c.l.b16 %v251
    %v529 = vunpack.c.h.b16 %v251
    %v530 = vunpack.c.l.b16 %v252
    %v531 = vunpack.c.l.b16 %v253
    %v532 = vunpack.c.h.b16 %v253
    %v533 = vunpack.c.l.b16 %v254
    %v534 = vunpack.c.l.b16 %v255
    %v535 = vunpack.c.h.b16 %v255
    %v536 = vunpack.c.l.b16 %v256
    %v537 = vunpack.c.l.b16 %v257
    %v538 = vunpack.c.h.b16 %v257
    %v539 = vunpack.c.l.b16 %v258
    %v540 = vunpack.c.l.b16 %v259
    %v541 = vunpack.c.h.b16 %v259
    %v542 = vunpack.c.l.b16 %v260
    %v543 = vunpack.c.l.b16 %v261
    %v544 = vunpack.c.h.b16 %v261
    %v545 = vunpack.c.l.b16 %v262
    %v546 = vunpack.c.l.b16 %v263
    %v547 = vunpack.c.h.b16 %v263
    %v548 = vunpack.c.l.b16 %v264
    %v549 = vunpack.c.l.b16 %v265
    %v550 = vunpack.c.h.b16 %v265
    %v551 = vunpack.c.l.b16 %v266
    %v552 = vunpack.c.l.b16 %v267
    %v553 = vunpack.c.h.b16 %v267
    %v554 = vunpack.c.l.b16 %v268
    %v555 = vunpack.c.l.b16 %v269
    %v556 = vunpack.c.h.b16 %v269
    %v557 = vunpack.c.l.b16 %v270
    %v558 = vunpack.c.l.b16 %v271
    %v559 = vunpack.c.h.b16 %v271
    %v560 = vunpack.c.l.b16 %v272
    %v561 = vunpack.c.l.b16 %v273
    %v562 = vunpack.c.h.b16 %v273
    %v563 = vunpack.c.l.b16 %v274
    %v564 = vunpack.c.l.b16 %v275
    %v565 = vunpack.c.h.b16 %v275
    %v566 = vunpack.c.l.b16 %v276
    %v567 = vunpack.c.l.b16 %v277
    %v568 = vunpack.c.h.b16 %v277
    %v569 = vunpack.c.l.b16 %v278
    %v570 = vunpack.c.l.b16 %v279
    %v571 = vunpack.c.h.b16 %v279
    %v572 = vunpack.c.l.b16 %v280
    %v573 = vunpack.c.l.b16 %v281
    %v574 = vunpack.c.h.b16 %v281
    %v575 = vunpack.c.l.b16 %v282
    %v576 = vunpack.c.l.b16 %v283
    %v577 = vunpack.c.h.b16 %v283
    %v578 = vunpack.c.l.b16 %v284
    %v579 = vunpack.c.l.b16 %v285
    %v580 = vunpack.c.h.b16 %v285
    %v581 = vunpack.c.l.b16 %v286
    %v582 = vunpack.c.l.b16 %v287
    %v583 = vunpack.c.h.b16 %v287
    %v584 = vunpack.c.l.b16 %v288
    %v585 = vunpack.c.l.b16 %v289
    %v586 = vunpack.c.h.b16 %v289
    %v587 = vunpack.c.l.b16 %v290
    %v588 = vunpack.c.l.b16 %v291
    %v589 = vunpack.c.h.b16 %v291
    %v590 = vunpack.c.l.b16 %v292
    %v591 = vunpack.c.l.b16 %v293
    %v592 = vunpack.c.h.b16 %v293
    %v593 = vunpack.c.l.b16 %v294
    %v594 = vunpack.c.l.b16 %v295
    %v595 = vunpack.c.h.b16 %v295
    %v596 = vunpack.c.l.b16 %v296
    %v597 = vunpack.c.l.b16 %v297
    %v598 = vunpack.c.h.b16 %v297
    %v599 = vunpack.c.l.b16 %v298
    %v600 = vunpack.c.l.b16 %v299
    %v601 = vunpack.c.h.b16 %v299
    %v602 = vunpack.c.l.b16 %v300
    %v603 = vunpack.c.l.b16 %v301
    %v604 = vunpack.c.h.b16 %v301
    %v605 = vunpack.c.l.b16 %v302
    %v606 = vunpack.c.l.b16 %v303
    %v607 = vunpack.c.h.b16 %v303
    %v608 = vunpack.c.l.b16 %v304
    %v609 = vunpack.c.l.b16 %v305
    %v610 = vunpack.c.h.b16 %v305
    %v611 = vunpack.c.l.b16 %v306
    %v612 = vunpack.c.l.b16 %v307
    %v613 = vunpack.c.h.b16 %v307
    %v614 = vunpack.c.l.b16 %v308
    %v615 = vunpack.c.l.b16 %v309
    %v616 = vunpack.c.h.b16 %v309
    %v617 = vunpack.c.l.b16 %v310
    %v618 = vunpack.c.l.b16 %v311
    %v619 = vunpack.c.h.b16 %v311
    %v620 = vunpack.c.l.b16 %v312
    %v621 = vunpack.c.l.b16 %v313
    %v622 = vunpack.c.h.b16 %v313
    %v623 = vunpack.c.l.b16 %v314
    %v624 = vunpack.c.l.b16 %v315
    %v625 = vunpack.c.h.b16 %v315
    %v626 = vunpack.c.l.b16 %v316
    %v627 = vunpack.c.l.b16 %v317
    %v628 = vunpack.c.h.b16 %v317
    %v629 = vunpack.c.l.b16 %v318
    %v630 = vunpack.c.l.b16 %v319
    %v631 = vunpack.c.h.b16 %v319
    %v632 = vunpack.c.l.b16 %v320
    %v633 = vunpack.c.l.b16 %v321
    %v634 = vunpack.c.h.b16 %v321
    %v635 = vunpack.c.l.b16 %v322
    %v636 = vunpack.c.l.b16 %v323
    %v637 = vunpack.c.h.b16 %v323
    %v638 = vunpack.c.l.b16 %v324
    %v639 = vunpack.c.l.b16 %v325
    %v640 = vunpack.c.h.b16 %v325
    %v641 = vunpack.c.l.b16 %v326
    %v642 = vunpack.c.l.b16 %v327
    %v643 = vunpack.c.h.b16 %v327
    %v644 = vunpack.c.l.b16 %v328
    %v645 = vunpack.c.l.b16 %v329
    %v646 = vunpack.c.h.b16 %v329
    %v647 = vunpack.c.l.b16 %v330
    %v648 = vunpack.c.l.b16 %v331
    %v649 = vunpack.c.h.b16 %v331
    %v650 = vunpack.c.l.b16 %v332
    %v651 = vunpack.c.l.b16 %v333
    %v652 = vunpack.c.h.b16 %v333
    %v653 = vunpack.c.l.b16 %v334
    %v654 = vunpack.c.l.b16 %v335
    %v655 = vunpack.c.h.b16 %v335
    %v656 = vunpack.c.l.b16 %v336
    %v657 = vpack.c.b16 %v468, %v465
    %v658 = vpack.c.b16 %v469, %v466
    %v659 = vpack.c.b16 %v470, %v467
    %v660 = vpack.c.b16 %v474, %v471
    %v661 = vpack.c.b16 %v475, %v472
    %v662 = vpack.c.b16 %v476, %v473
    %v663 = vpack.c.b16 %v480, %v477
    %v664 = vpack.c.b16 %v481, %v478
    %v665 = vpack.c.b16 %v482, %v479
    %v666 = vpack.c.b16 %v486, %v483
    %v667 = vpack.c.b16 %v487, %v484
    %v668 = vpack.c.b16 %v488, %v485
    %v669 = vpack.c.b16 %v492, %v489
    %v670 = vpack.c.b16 %v493, %v490
    %v671 = vpack.c.b16 %v494, %v491
    %v672 = vpack.c.b16 %v498, %v495
    %v673 = vpack.c.b16 %v499, %v496
    %v674 = vpack.c.b16 %v500, %v497
    %v675 = vpack.c.b16 %v504, %v501
    %v676 = vpack.c.b16 %v505, %v502
    %v677 = vpack.c.b16 %v506, %v503
    %v678 = vpack.c.b16 %v510, %v507
    %v679 = vpack.c.b16 %v511, %v508
    %v680 = vpack.c.b16 %v512, %v509
    %v681 = vpack.c.b16 %v516, %v513
    %v682 = vpack.c.b16 %v517, %v514
    %v683 = vpack.c.b16 %v518, %v515
    %v684 = vpack.c.b16 %v522, %v519
    %v685 = vpack.c.b16 %v523, %v520
    %v686 = vpack.c.b16 %v524, %v521
    %v687 = vpack.c.b16 %v528, %v525
    %v688 = vpack.c.b16 %v529, %v526
    %v689 = vpack.c.b16 %v530, %v527
    %v690 = vpack.c.b16 %v534, %v531
    %v691 = vpack.c.b16 %v535, %v532
    %v692 = vpack.c.b16 %v536, %v533
    %v693 = vpack.c.b16 %v540, %v537
    %v694 = vpack.c.b16 %v541, %v538
    %v695 = vpack.c.b16 %v542, %v539
    %v696 = vpack.c.b16 %v546, %v543
    %v697 = vpack.c.b16 %v547, %v544
    %v698 = vpack.c.b16 %v548, %v545
    %v699 = vpack.c.b16 %v552, %v549
    %v700 = vpack.c.b16 %v553, %v550
    %v701 = vpack.c.b16 %v554, %v551
    %v702 = vpack.c.b16 %v558, %v555
    %v703 = vpack.c.b16 %v559, %v556
    %v704 = vpack.c.b16 %v560, %v557
    %v705 = vpack.c.b16 %v564, %v561
    %v706 = vpack.c.b16 %v565, %v562
    %v707 = vpack.c.b16 %v566, %v563
    %v708 = vpack.c.b16 %v570, %v567
    %v709 = vpack.c.b16 %v571, %v568
    %v710 = vpack.c.b16 %v572, %v569
    %v711 = vpack.c.b16 %v576, %v573
    %v712 = vpack.c.b16 %v577, %v574
    %v713 = vpack.c.b16 %v578, %v575
    %v714 = vpack.c.b16 %v582, %v579
    %v715 = vpack.c.b16 %v583, %v580
    %v716 = vpack.c.b16 %v584, %v581
    %v717 = vpack.c.b16 %v588, %v585
    %v718 = vpack.c.b16 %v589, %v586
    %v719 = vpack.c.b16 %v590, %v587
    %v720 = vpack.c.b16 %v594, %v591
    %v721 = vpack.c.b16 %v595, %v592
    %v722 = vpack.c.b16 %v596, %v593
    %v723 = vpack.c.b16 %v600, %v597
    %v724 = vpack.c.b16 %v601, %v598
    %v725 = vpack.c.b16 %v602, %v599
    %v726 = vpack.c.b16 %v606, %v603
    %v727 = vpack.c.b16 %v607, %v604
    %v728 = vpack.c.b16 %v608, %v605
    %v729 = vpack.c.b16 %v612, %v609
    %v730 = vpack.c.b16 %v613, %v610
    %v731 = vpack.c.b16 %v614, %v611
    %v732 = vpack.c.b16 %v618, %v615
    %v733 = vpack.c.b16 %v619, %v616
    %v734 = vpack.c.b16 %v620, %v617
    %v735 = vpack.c.b16 %v624, %v621
    %v736 = vpack.c.b16 %v625, %v622
    %v737 = vpack.c.b16 %v626, %v623
    %v738 = vpack.c.b16 %v630, %v627
    %v739 = vpack.c.b16 %v631, %v628
    %v740 = vpack.c.b16 %v632, %v629
    %v741 = vpack.c.b16 %v636, %v633
    %v742 = vpack.c.b16 %v637, %v634
    %v743 = vpack.c.b16 %v638, %v635
    %v744 = vpack.c.b16 %v642, %v639
    %v745 = vpack.c.b16 %v643, %v640
    %v746 = vpack.c.b16 %v644, %v641
    %v747 = vpack.c.b16 %v648, %v645
    %v748 = vpack.c.b16 %v649, %v646
    %v749 = vpack.c.b16 %v650, %v647
    %v750 = vpack.c.b16 %v654, %v651
    %v751 = vpack.c.b16 %v655, %v652
    %v752 = vpack.c.b16 %v656, %v653
    %849 = vmatprep.subr.bf16.mxu0 %v679
    %850 = vmatpush1.bf16.msra.mxu0 %v678
    %851 = vmatprep.subr.bf16.mxu0 %v676
    %852 = vmatpush1.bf16.msra.mxu0 %v675
    %853 = vmatprep.subr.bf16.mxu0 %v673
    %854 = vmatpush1.bf16.msra.mxu0 %v672
    %855 = vmatprep.subr.bf16.mxu0 %v670
    %856 = vmatpush1.bf16.msra.mxu0 %v669
    %857 = vmatprep.subr.bf16.mxu0 %v667
    %858 = vmatpush1.bf16.msra.mxu0 %v666
    %859 = vmatprep.subr.bf16.mxu0 %v664
    %860 = vmatpush1.bf16.msra.mxu0 %v663
    %861 = vmatprep.subr.bf16.mxu0 %v661
    %862 = vmatpush1.bf16.msra.mxu0 %v660
    %863 = vmatprep.subr.bf16.mxu0 %v658
    %864 = vmatpush1.bf16.msra.mxu0 %v657
    %865 = vmatprep.subr.bf16.mxu0 %v703
    %866 = vmatpush2.bf16.msra.mxu0 %v702
    %867 = vmatprep.subr.bf16.mxu0 %v700
    %868 = vmatpush2.bf16.msra.mxu0 %v699
    %869 = vmatprep.subr.bf16.mxu0 %v697
    %870 = vmatpush2.bf16.msra.mxu0 %v696
    %871 = vmatprep.subr.bf16.mxu0 %v694
    %872 = vmatpush2.bf16.msra.mxu0 %v693
    %873 = vmatprep.subr.bf16.mxu0 %v691
    %874 = vmatpush2.bf16.msra.mxu0 %v690
    %875 = vmatprep.subr.bf16.mxu0 %v688
    %876 = vmatpush2.bf16.msra.mxu0 %v687
    %877 = vmatprep.subr.bf16.mxu0 %v685
    %878 = vmatpush2.bf16.msra.mxu0 %v684
    %879 = vmatprep.subr.bf16.mxu0 %v682
    %880 = vmatpush2.bf16.msra.mxu0 %v681
    %881 = vmatprep.mubr.bf16.mxu0 %v206
    %882 = vmatmul.mubr.bf16.gmra.mxu0 %v205
    %v883 = vpop.f32.mrf.mxu0
    %v884 = vadd.f32 0.0, %v883
    %v885 = vpop.f32.mrf.mxu0
    %v886 = vadd.f32 0.0, %v885
    %v887 = vpop.f32.mrf.mxu0
    %v888 = vadd.f32 0.0, %v887
    %v889 = vpop.f32.mrf.mxu0
    %v890 = vadd.f32 0.0, %v889
    %891 = vdwg.mxu0
    %892 = vmatprep.subr.bf16.mxu0 %v727
    %893 = vmatpush1.bf16.msra.mxu0 %v726
    %894 = vmatprep.subr.bf16.mxu0 %v724
    %895 = vmatpush1.bf16.msra.mxu0 %v723
    %896 = vmatprep.subr.bf16.mxu0 %v721
    %897 = vmatpush1.bf16.msra.mxu0 %v720
    %898 = vmatprep.subr.bf16.mxu0 %v718
    %899 = vmatpush1.bf16.msra.mxu0 %v717
    %900 = vmatprep.subr.bf16.mxu0 %v715
    %901 = vmatpush1.bf16.msra.mxu0 %v714
    %902 = vmatprep.subr.bf16.mxu0 %v712
    %903 = vmatpush1.bf16.msra.mxu0 %v711
    %904 = vmatprep.subr.bf16.mxu0 %v709
    %905 = vmatpush1.bf16.msra.mxu0 %v708
    %906 = vmatprep.subr.bf16.mxu0 %v706
    %907 = vmatpush1.bf16.msra.mxu0 %v705
    %908 = vmatprep.subr.bf16.mxu0 %v751
    %909 = vmatpush2.bf16.msra.mxu0 %v750
    %910 = vmatprep.subr.bf16.mxu0 %v748
    %911 = vmatpush2.bf16.msra.mxu0 %v747
    %912 = vmatprep.subr.bf16.mxu0 %v745
    %913 = vmatpush2.bf16.msra.mxu0 %v744
    %914 = vmatprep.subr.bf16.mxu0 %v742
    %915 = vmatpush2.bf16.msra.mxu0 %v741
    %916 = vmatprep.subr.bf16.mxu0 %v739
    %917 = vmatpush2.bf16.msra.mxu0 %v738
    %918 = vmatprep.subr.bf16.mxu0 %v736
    %919 = vmatpush2.bf16.msra.mxu0 %v735
    %920 = vmatprep.subr.bf16.mxu0 %v733
    %921 = vmatpush2.bf16.msra.mxu0 %v732
    %922 = vmatprep.subr.bf16.mxu0 %v730
    %923 = vmatpush2.bf16.msra.mxu0 %v729
    %924 = vmatprep.mubr.bf16.mxu0 %v208
    %925 = vmatmul.mubr.bf16.gmra.mxu0 %v207
    %v926 = vpop.f32.mrf.mxu0
    %v927 = vadd.f32 %v884, %v926
    %v928 = vpop.f32.mrf.mxu0
    %v929 = vadd.f32 %v886, %v928
    %v930 = vpop.f32.mrf.mxu0
    %v931 = vadd.f32 %v888, %v930
    %v932 = vpop.f32.mrf.mxu0
    %v933 = vadd.f32 %v890, %v932
    %934 = vdwg.mxu0
    %935 = vmatprep.subr.bf16.mxu0 0
    %936 = vmatpush1.bf16.msra.mxu0 %v680
    %937 = vmatprep.subr.bf16.mxu0 0
    %938 = vmatpush1.bf16.msra.mxu0 %v677
    %939 = vmatprep.subr.bf16.mxu0 0
    %940 = vmatpush1.bf16.msra.mxu0 %v674
    %941 = vmatprep.subr.bf16.mxu0 0
    %942 = vmatpush1.bf16.msra.mxu0 %v671
    %943 = vmatprep.subr.bf16.mxu0 0
    %944 = vmatpush1.bf16.msra.mxu0 %v668
    %945 = vmatprep.subr.bf16.mxu0 0
    %946 = vmatpush1.bf16.msra.mxu0 %v665
    %947 = vmatprep.subr.bf16.mxu0 0
    %948 = vmatpush1.bf16.msra.mxu0 %v662
    %949 = vmatprep.subr.bf16.mxu0 0
    %950 = vmatpush1.bf16.msra.mxu0 %v659
    %951 = vmatprep.subr.bf16.mxu0 0
    %952 = vmatpush2.bf16.msra.mxu0 %v704
    %953 = vmatprep.subr.bf16.mxu0 0
    %954 = vmatpush2.bf16.msra.mxu0 %v701
    %955 = vmatprep.subr.bf16.mxu0 0
    %956 = vmatpush2.bf16.msra.mxu0 %v698
    %957 = vmatprep.subr.bf16.mxu0 0
    %958 = vmatpush2.bf16.msra.mxu0 %v695
    %959 = vmatprep.subr.bf16.mxu0 0
    %960 = vmatpush2.bf16.msra.mxu0 %v692
    %961 = vmatprep.subr.bf16.mxu0 0
    %962 = vmatpush2.bf16.msra.mxu0 %v689
    %963 = vmatprep.subr.bf16.mxu0 0
    %964 = vmatpush2.bf16.msra.mxu0 %v686
    %965 = vmatprep.subr.bf16.mxu0 0
    %966 = vmatpush2.bf16.msra.mxu0 %v683
    %967 = vmatprep.mubr.bf16.mxu0 %v206
    %968 = vmatmul.mubr.bf16.gmra.mxu0 %v205
    %v969 = vpop.f32.mrf.mxu0
    %v970 = vadd.f32 0.0, %v969
    %v971 = vpop.f32.mrf.mxu0
    %v972 = vpop.f32.mrf.mxu0
    %v973 = vadd.f32 0.0, %v972
    %v974 = vpop.f32.mrf.mxu0
    %975 = vdwg.mxu0
    %976 = vmatprep.subr.bf16.mxu0 0
    %977 = vmatpush1.bf16.msra.mxu0 %v728
    %978 = vmatprep.subr.bf16.mxu0 0
    %979 = vmatpush1.bf16.msra.mxu0 %v725
    %980 = vmatprep.subr.bf16.mxu0 0
    %981 = vmatpush1.bf16.msra.mxu0 %v722
    %982 = vmatprep.subr.bf16.mxu0 0
    %983 = vmatpush1.bf16.msra.mxu0 %v719
    %984 = vmatprep.subr.bf16.mxu0 0
    %985 = vmatpush1.bf16.msra.mxu0 %v716
    %986 = vmatprep.subr.bf16.mxu0 0
    %987 = vmatpush1.bf16.msra.mxu0 %v713
    %988 = vmatprep.subr.bf16.mxu0 0
    %989 = vmatpush1.bf16.msra.mxu0 %v710
    %990 = vmatprep.subr.bf16.mxu0 0
    %991 = vmatpush1.bf16.msra.mxu0 %v707
    %992 = vmatprep.subr.bf16.mxu0 0
    %993 = vmatpush2.bf16.msra.mxu0 %v752
    %994 = vmatprep.subr.bf16.mxu0 0
    %995 = vmatpush2.bf16.msra.mxu0 %v749
    %996 = vmatprep.subr.bf16.mxu0 0
    %997 = vmatpush2.bf16.msra.mxu0 %v746
    %998 = vmatprep.subr.bf16.mxu0 0
    %999 = vmatpush2.bf16.msra.mxu0 %v743
    %1000 = vmatprep.subr.bf16.mxu0 0
    %1001 = vmatpush2.bf16.msra.mxu0 %v740
    %1002 = vmatprep.subr.bf16.mxu0 0
    %1003 = vmatpush2.bf16.msra.mxu0 %v737
    %1004 = vmatprep.subr.bf16.mxu0 0
    %1005 = vmatpush2.bf16.msra.mxu0 %v734
    %1006 = vmatprep.subr.bf16.mxu0 0
    %1007 = vmatpush2.bf16.msra.mxu0 %v731
    %1008 = vmatprep.mubr.bf16.mxu0 %v208
    %1009 = vmatmul.mubr.bf16.gmra.mxu0 %v207
    %v1010 = vpop.f32.mrf.mxu0
    %v1011 = vadd.f32 %v970, %v1010
    %v1012 = vpop.f32.mrf.mxu0
    %v1013 = vpop.f32.mrf.mxu0
    %v1014 = vadd.f32 %v973, %v1013
    %v1015 = vpop.f32.mrf.mxu0
    %1016 = vdwg.mxu0
    %v1017 = vmax.f32 %v927, 0.0
    %v1018 = vmax.f32 %v929, 0.0
    %v1019 = vmax.f32 %v1011, 0.0
    %v1020 = vmax.f32 %v931, 0.0
    %v1021 = vmax.f32 %v933, 0.0
    %v1022 = vmax.f32 %v1014, 0.0
    %v1023 = vpack.c.bf16 %v1020, %v1017
    %v1024 = vpack.c.bf16 %v1021, %v1018
    %v1025 = vpack.c.bf16 %v1022, %v1019
    %v1026 = vld [vmem:[#allocation4] sm:$0xff]
    %v1027 = vld [vmem:[#allocation4 + $0x8] sm:$0xf]
    %v1028 = vld [vmem:[#allocation4 + $0xc] sm:$0xff]
    %v1029 = vld [vmem:[#allocation4 + $0x14] sm:$0xf]
    %v1030 = vld [vmem:[#allocation4 + $0x18] sm:$0xff]
    %v1031 = vld [vmem:[#allocation4 + $0x20] sm:$0xf]
    %v1032 = vld [vmem:[#allocation4 + $0x24] sm:$0xff]
    %v1033 = vld [vmem:[#allocation4 + $0x2c] sm:$0xf]
    %v1034 = vld [vmem:[#allocation4 + $0x30] sm:$0xff]
    %v1035 = vld [vmem:[#allocation4 + $0x38] sm:$0xf]
    %v1036 = vld [vmem:[#allocation4 + $0x3c] sm:$0xff]
    %v1037 = vld [vmem:[#allocation4 + $0x44] sm:$0xf]
    %v1038 = vld [vmem:[#allocation4 + $0x48] sm:$0xff]
    %v1039 = vld [vmem:[#allocation4 + $0x50] sm:$0xf]
    %v1040 = vld [vmem:[#allocation4 + $0x54] sm:$0xff]
    %v1041 = vld [vmem:[#allocation4 + $0x5c] sm:$0xf]
    %v1042 = vld [vmem:[#allocation4 + $0x60] sm:$0xff]
    %v1043 = vld [vmem:[#allocation4 + $0x68] sm:$0xf]
    %v1044 = vld [vmem:[#allocation4 + $0x6c] sm:$0xff]
    %v1045 = vld [vmem:[#allocation4 + $0x74] sm:$0xf]
    %v1046 = vld [vmem:[#allocation4 + $0x78] sm:$0xff]
    %v1047 = vld [vmem:[#allocation4 + $0x80] sm:$0xf]
    %v1048 = vld [vmem:[#allocation4 + $0x84] sm:$0xff]
    %v1049 = vld [vmem:[#allocation4 + $0x8c] sm:$0xf]
    %v1050 = vld [vmem:[#allocation4 + $0x90] sm:$0xff]
    %v1051 = vld [vmem:[#allocation4 + $0x98] sm:$0xf]
    %v1052 = vld [vmem:[#allocation4 + $0x9c] sm:$0xff]
    %v1053 = vld [vmem:[#allocation4 + $0xa4] sm:$0xf]
    %v1054 = vld [vmem:[#allocation4 + $0xa8] sm:$0xff]
    %v1055 = vld [vmem:[#allocation4 + $0xb0] sm:$0xf]
    %v1056 = vld [vmem:[#allocation4 + $0xb4] sm:$0xff]
    %v1057 = vld [vmem:[#allocation4 + $0xbc] sm:$0xf]
    %v1058 = vld [vmem:[#allocation4 + $0xc0] sm:$0xff]
    %v1059 = vld [vmem:[#allocation4 + $0xc8] sm:$0xf]
    %v1060 = vld [vmem:[#allocation4 + $0xcc] sm:$0xff]
    %v1061 = vld [vmem:[#allocation4 + $0xd4] sm:$0xf]
    %v1062 = vld [vmem:[#allocation4 + $0xd8] sm:$0xff]
    %v1063 = vld [vmem:[#allocation4 + $0xe0] sm:$0xf]
    %v1064 = vld [vmem:[#allocation4 + $0xe4] sm:$0xff]
    %v1065 = vld [vmem:[#allocation4 + $0xec] sm:$0xf]
    %v1066 = vld [vmem:[#allocation4 + $0xf0] sm:$0xff]
    %v1067 = vld [vmem:[#allocation4 + $0xf8] sm:$0xf]
    %v1068 = vld [vmem:[#allocation4 + $0xfc] sm:$0xff]
    %v1069 = vld [vmem:[#allocation4 + $0x104] sm:$0xf]
    %v1070 = vld [vmem:[#allocation4 + $0x108] sm:$0xff]
    %v1071 = vld [vmem:[#allocation4 + $0x110] sm:$0xf]
    %v1072 = vld [vmem:[#allocation4 + $0x114] sm:$0xff]
    %v1073 = vld [vmem:[#allocation4 + $0x11c] sm:$0xf]
    %v1074 = vld [vmem:[#allocation4 + $0x120] sm:$0xff]
    %v1075 = vld [vmem:[#allocation4 + $0x128] sm:$0xf]
    %v1076 = vld [vmem:[#allocation4 + $0x12c] sm:$0xff]
    %v1077 = vld [vmem:[#allocation4 + $0x134] sm:$0xf]
    %v1078 = vld [vmem:[#allocation4 + $0x138] sm:$0xff]
    %v1079 = vld [vmem:[#allocation4 + $0x140] sm:$0xf]
    %v1080 = vld [vmem:[#allocation4 + $0x144] sm:$0xff]
    %v1081 = vld [vmem:[#allocation4 + $0x14c] sm:$0xf]
    %v1082 = vld [vmem:[#allocation4 + $0x150] sm:$0xff]
    %v1083 = vld [vmem:[#allocation4 + $0x158] sm:$0xf]
    %v1084 = vld [vmem:[#allocation4 + $0x15c] sm:$0xff]
    %v1085 = vld [vmem:[#allocation4 + $0x164] sm:$0xf]
    %v1086 = vld [vmem:[#allocation4 + $0x168] sm:$0xff]
    %v1087 = vld [vmem:[#allocation4 + $0x170] sm:$0xf]
    %v1088 = vld [vmem:[#allocation4 + $0x174] sm:$0xff]
    %v1089 = vld [vmem:[#allocation4 + $0x17c] sm:$0xf]
    %v1090 = vld [vmem:[#allocation4 + $0x180] sm:$0xff]
    %v1091 = vld [vmem:[#allocation4 + $0x188] sm:$0xf]
    %v1092 = vld [vmem:[#allocation4 + $0x18c] sm:$0xff]
    %v1093 = vld [vmem:[#allocation4 + $0x194] sm:$0xf]
    %v1094 = vld [vmem:[#allocation4 + $0x198] sm:$0xff]
    %v1095 = vld [vmem:[#allocation4 + $0x1a0] sm:$0xf]
    %v1096 = vld [vmem:[#allocation4 + $0x1a4] sm:$0xff]
    %v1097 = vld [vmem:[#allocation4 + $0x1ac] sm:$0xf]
    %v1098 = vld [vmem:[#allocation4 + $0x1b0] sm:$0xff]
    %v1099 = vld [vmem:[#allocation4 + $0x1b8] sm:$0xf]
    %v1100 = vld [vmem:[#allocation4 + $0x1bc] sm:$0xff]
    %v1101 = vld [vmem:[#allocation4 + $0x1c4] sm:$0xf]
    %v1102 = vld [vmem:[#allocation4 + $0x1c8] sm:$0xff]
    %v1103 = vld [vmem:[#allocation4 + $0x1d0] sm:$0xf]
    %v1104 = vld [vmem:[#allocation4 + $0x1d4] sm:$0xff]
    %v1105 = vld [vmem:[#allocation4 + $0x1dc] sm:$0xf]
    %v1106 = vld [vmem:[#allocation4 + $0x1e0] sm:$0xff]
    %v1107 = vld [vmem:[#allocation4 + $0x1e8] sm:$0xf]
    %v1108 = vld [vmem:[#allocation4 + $0x1ec] sm:$0xff]
    %v1109 = vld [vmem:[#allocation4 + $0x1f4] sm:$0xf]
    %v1110 = vld [vmem:[#allocation4 + $0x1f8] sm:$0xff]
    %v1111 = vld [vmem:[#allocation4 + $0x200] sm:$0xf]
    %v1112 = vld [vmem:[#allocation4 + $0x204] sm:$0xff]
    %v1113 = vld [vmem:[#allocation4 + $0x20c] sm:$0xf]
    %v1114 = vld [vmem:[#allocation4 + $0x210] sm:$0xff]
    %v1115 = vld [vmem:[#allocation4 + $0x218] sm:$0xf]
    %v1116 = vld [vmem:[#allocation4 + $0x21c] sm:$0xff]
    %v1117 = vld [vmem:[#allocation4 + $0x224] sm:$0xf]
    %v1118 = vld [vmem:[#allocation4 + $0x228] sm:$0xff]
    %v1119 = vld [vmem:[#allocation4 + $0x230] sm:$0xf]
    %v1120 = vld [vmem:[#allocation4 + $0x234] sm:$0xff]
    %v1121 = vld [vmem:[#allocation4 + $0x23c] sm:$0xf]
    %v1218 = vunpack.c.l.b16 %v1026
    %v1219 = vunpack.c.h.b16 %v1026
    %v1220 = vunpack.c.l.b16 %v1027
    %v1221 = vunpack.c.l.b16 %v1028
    %v1222 = vunpack.c.h.b16 %v1028
    %v1223 = vunpack.c.l.b16 %v1029
    %v1224 = vunpack.c.l.b16 %v1030
    %v1225 = vunpack.c.h.b16 %v1030
    %v1226 = vunpack.c.l.b16 %v1031
    %v1227 = vunpack.c.l.b16 %v1032
    %v1228 = vunpack.c.h.b16 %v1032
    %v1229 = vunpack.c.l.b16 %v1033
    %v1230 = vunpack.c.l.b16 %v1034
    %v1231 = vunpack.c.h.b16 %v1034
    %v1232 = vunpack.c.l.b16 %v1035
    %v1233 = vunpack.c.l.b16 %v1036
    %v1234 = vunpack.c.h.b16 %v1036
    %v1235 = vunpack.c.l.b16 %v1037
    %v1236 = vunpack.c.l.b16 %v1038
    %v1237 = vunpack.c.h.b16 %v1038
    %v1238 = vunpack.c.l.b16 %v1039
    %v1239 = vunpack.c.l.b16 %v1040
    %v1240 = vunpack.c.h.b16 %v1040
    %v1241 = vunpack.c.l.b16 %v1041
    %v1242 = vunpack.c.l.b16 %v1042
    %v1243 = vunpack.c.h.b16 %v1042
    %v1244 = vunpack.c.l.b16 %v1043
    %v1245 = vunpack.c.l.b16 %v1044
    %v1246 = vunpack.c.h.b16 %v1044
    %v1247 = vunpack.c.l.b16 %v1045
    %v1248 = vunpack.c.l.b16 %v1046
    %v1249 = vunpack.c.h.b16 %v1046
    %v1250 = vunpack.c.l.b16 %v1047
    %v1251 = vunpack.c.l.b16 %v1048
    %v1252 = vunpack.c.h.b16 %v1048
    %v1253 = vunpack.c.l.b16 %v1049
    %v1254 = vunpack.c.l.b16 %v1050
    %v1255 = vunpack.c.h.b16 %v1050
    %v1256 = vunpack.c.l.b16 %v1051
    %v1257 = vunpack.c.l.b16 %v1052
    %v1258 = vunpack.c.h.b16 %v1052
    %v1259 = vunpack.c.l.b16 %v1053
    %v1260 = vunpack.c.l.b16 %v1054
    %v1261 = vunpack.c.h.b16 %v1054
    %v1262 = vunpack.c.l.b16 %v1055
    %v1263 = vunpack.c.l.b16 %v1056
    %v1264 = vunpack.c.h.b16 %v1056
    %v1265 = vunpack.c.l.b16 %v1057
    %v1266 = vunpack.c.l.b16 %v1058
    %v1267 = vunpack.c.h.b16 %v1058
    %v1268 = vunpack.c.l.b16 %v1059
    %v1269 = vunpack.c.l.b16 %v1060
    %v1270 = vunpack.c.h.b16 %v1060
    %v1271 = vunpack.c.l.b16 %v1061
    %v1272 = vunpack.c.l.b16 %v1062
    %v1273 = vunpack.c.h.b16 %v1062
    %v1274 = vunpack.c.l.b16 %v1063
    %v1275 = vunpack.c.l.b16 %v1064
    %v1276 = vunpack.c.h.b16 %v1064
    %v1277 = vunpack.c.l.b16 %v1065
    %v1278 = vunpack.c.l.b16 %v1066
    %v1279 = vunpack.c.h.b16 %v1066
    %v1280 = vunpack.c.l.b16 %v1067
    %v1281 = vunpack.c.l.b16 %v1068
    %v1282 = vunpack.c.h.b16 %v1068
    %v1283 = vunpack.c.l.b16 %v1069
    %v1284 = vunpack.c.l.b16 %v1070
    %v1285 = vunpack.c.h.b16 %v1070
    %v1286 = vunpack.c.l.b16 %v1071
    %v1287 = vunpack.c.l.b16 %v1072
    %v1288 = vunpack.c.h.b16 %v1072
    %v1289 = vunpack.c.l.b16 %v1073
    %v1290 = vunpack.c.l.b16 %v1074
    %v1291 = vunpack.c.h.b16 %v1074
    %v1292 = vunpack.c.l.b16 %v1075
    %v1293 = vunpack.c.l.b16 %v1076
    %v1294 = vunpack.c.h.b16 %v1076
    %v1295 = vunpack.c.l.b16 %v1077
    %v1296 = vunpack.c.l.b16 %v1078
    %v1297 = vunpack.c.h.b16 %v1078
    %v1298 = vunpack.c.l.b16 %v1079
    %v1299 = vunpack.c.l.b16 %v1080
    %v1300 = vunpack.c.h.b16 %v1080
    %v1301 = vunpack.c.l.b16 %v1081
    %v1302 = vunpack.c.l.b16 %v1082
    %v1303 = vunpack.c.h.b16 %v1082
    %v1304 = vunpack.c.l.b16 %v1083
    %v1305 = vunpack.c.l.b16 %v1084
    %v1306 = vunpack.c.h.b16 %v1084
    %v1307 = vunpack.c.l.b16 %v1085
    %v1308 = vunpack.c.l.b16 %v1086
    %v1309 = vunpack.c.h.b16 %v1086
    %v1310 = vunpack.c.l.b16 %v1087
    %v1311 = vunpack.c.l.b16 %v1088
    %v1312 = vunpack.c.h.b16 %v1088
    %v1313 = vunpack.c.l.b16 %v1089
    %v1314 = vunpack.c.l.b16 %v1090
    %v1315 = vunpack.c.h.b16 %v1090
    %v1316 = vunpack.c.l.b16 %v1091
    %v1317 = vunpack.c.l.b16 %v1092
    %v1318 = vunpack.c.h.b16 %v1092
    %v1319 = vunpack.c.l.b16 %v1093
    %v1320 = vunpack.c.l.b16 %v1094
    %v1321 = vunpack.c.h.b16 %v1094
    %v1322 = vunpack.c.l.b16 %v1095
    %v1323 = vunpack.c.l.b16 %v1096
    %v1324 = vunpack.c.h.b16 %v1096
    %v1325 = vunpack.c.l.b16 %v1097
    %v1326 = vunpack.c.l.b16 %v1098
    %v1327 = vunpack.c.h.b16 %v1098
    %v1328 = vunpack.c.l.b16 %v1099
    %v1329 = vunpack.c.l.b16 %v1100
    %v1330 = vunpack.c.h.b16 %v1100
    %v1331 = vunpack.c.l.b16 %v1101
    %v1332 = vunpack.c.l.b16 %v1102
    %v1333 = vunpack.c.h.b16 %v1102
    %v1334 = vunpack.c.l.b16 %v1103
    %v1335 = vunpack.c.l.b16 %v1104
    %v1336 = vunpack.c.h.b16 %v1104
    %v1337 = vunpack.c.l.b16 %v1105
    %v1338 = vunpack.c.l.b16 %v1106
    %v1339 = vunpack.c.h.b16 %v1106
    %v1340 = vunpack.c.l.b16 %v1107
    %v1341 = vunpack.c.l.b16 %v1108
    %v1342 = vunpack.c.h.b16 %v1108
    %v1343 = vunpack.c.l.b16 %v1109
    %v1344 = vunpack.c.l.b16 %v1110
    %v1345 = vunpack.c.h.b16 %v1110
    %v1346 = vunpack.c.l.b16 %v1111
    %v1347 = vunpack.c.l.b16 %v1112
    %v1348 = vunpack.c.h.b16 %v1112
    %v1349 = vunpack.c.l.b16 %v1113
    %v1350 = vunpack.c.l.b16 %v1114
    %v1351 = vunpack.c.h.b16 %v1114
    %v1352 = vunpack.c.l.b16 %v1115
    %v1353 = vunpack.c.l.b16 %v1116
    %v1354 = vunpack.c.h.b16 %v1116
    %v1355 = vunpack.c.l.b16 %v1117
    %v1356 = vunpack.c.l.b16 %v1118
    %v1357 = vunpack.c.h.b16 %v1118
    %v1358 = vunpack.c.l.b16 %v1119
    %v1359 = vunpack.c.l.b16 %v1120
    %v1360 = vunpack.c.h.b16 %v1120
    %v1361 = vunpack.c.l.b16 %v1121
    %v1362 = vpack.c.b16 %v1221, %v1218
    %v1363 = vpack.c.b16 %v1222, %v1219
    %v1364 = vpack.c.b16 %v1223, %v1220
    %v1365 = vpack.c.b16 %v1227, %v1224
    %v1366 = vpack.c.b16 %v1228, %v1225
    %v1367 = vpack.c.b16 %v1229, %v1226
    %v1368 = vpack.c.b16 %v1233, %v1230
    %v1369 = vpack.c.b16 %v1234, %v1231
    %v1370 = vpack.c.b16 %v1235, %v1232
    %v1371 = vpack.c.b16 %v1239, %v1236
    %v1372 = vpack.c.b16 %v1240, %v1237
    %v1373 = vpack.c.b16 %v1241, %v1238
    %v1374 = vpack.c.b16 %v1245, %v1242
    %v1375 = vpack.c.b16 %v1246, %v1243
    %v1376 = vpack.c.b16 %v1247, %v1244
    %v1377 = vpack.c.b16 %v1251, %v1248
    %v1378 = vpack.c.b16 %v1252, %v1249
    %v1379 = vpack.c.b16 %v1253, %v1250
    %v1380 = vpack.c.b16 %v1257, %v1254
    %v1381 = vpack.c.b16 %v1258, %v1255
    %v1382 = vpack.c.b16 %v1259, %v1256
    %v1383 = vpack.c.b16 %v1263, %v1260
    %v1384 = vpack.c.b16 %v1264, %v1261
    %v1385 = vpack.c.b16 %v1265, %v1262
    %v1386 = vpack.c.b16 %v1269, %v1266
    %v1387 = vpack.c.b16 %v1270, %v1267
    %v1388 = vpack.c.b16 %v1271, %v1268
    %v1389 = vpack.c.b16 %v1275, %v1272
    %v1390 = vpack.c.b16 %v1276, %v1273
    %v1391 = vpack.c.b16 %v1277, %v1274
    %v1392 = vpack.c.b16 %v1281, %v1278
    %v1393 = vpack.c.b16 %v1282, %v1279
    %v1394 = vpack.c.b16 %v1283, %v1280
    %v1395 = vpack.c.b16 %v1287, %v1284
    %v1396 = vpack.c.b16 %v1288, %v1285
    %v1397 = vpack.c.b16 %v1289, %v1286
    %v1398 = vpack.c.b16 %v1293, %v1290
    %v1399 = vpack.c.b16 %v1294, %v1291
    %v1400 = vpack.c.b16 %v1295, %v1292
    %v1401 = vpack.c.b16 %v1299, %v1296
    %v1402 = vpack.c.b16 %v1300, %v1297
    %v1403 = vpack.c.b16 %v1301, %v1298
    %v1404 = vpack.c.b16 %v1305, %v1302
    %v1405 = vpack.c.b16 %v1306, %v1303
    %v1406 = vpack.c.b16 %v1307, %v1304
    %v1407 = vpack.c.b16 %v1311, %v1308
    %v1408 = vpack.c.b16 %v1312, %v1309
    %v1409 = vpack.c.b16 %v1313, %v1310
    %v1410 = vpack.c.b16 %v1317, %v1314
    %v1411 = vpack.c.b16 %v1318, %v1315
    %v1412 = vpack.c.b16 %v1319, %v1316
    %v1413 = vpack.c.b16 %v1323, %v1320
    %v1414 = vpack.c.b16 %v1324, %v1321
    %v1415 = vpack.c.b16 %v1325, %v1322
    %v1416 = vpack.c.b16 %v1329, %v1326
    %v1417 = vpack.c.b16 %v1330, %v1327
    %v1418 = vpack.c.b16 %v1331, %v1328
    %v1419 = vpack.c.b16 %v1335, %v1332
    %v1420 = vpack.c.b16 %v1336, %v1333
    %v1421 = vpack.c.b16 %v1337, %v1334
    %v1422 = vpack.c.b16 %v1341, %v1338
    %v1423 = vpack.c.b16 %v1342, %v1339
    %v1424 = vpack.c.b16 %v1343, %v1340
    %v1425 = vpack.c.b16 %v1347, %v1344
    %v1426 = vpack.c.b16 %v1348, %v1345
    %v1427 = vpack.c.b16 %v1349, %v1346
    %v1428 = vpack.c.b16 %v1353, %v1350
    %v1429 = vpack.c.b16 %v1354, %v1351
    %v1430 = vpack.c.b16 %v1355, %v1352
    %v1431 = vpack.c.b16 %v1359, %v1356
    %v1432 = vpack.c.b16 %v1360, %v1357
    %v1433 = vpack.c.b16 %v1361, %v1358
    %1506 = vmatprep.subr.bf16.mxu0 %v1384
    %1507 = vmatpush1.bf16.msra.mxu0 %v1383
    %1508 = vmatprep.subr.bf16.mxu0 %v1381
    %1509 = vmatpush1.bf16.msra.mxu0 %v1380
    %1510 = vmatprep.subr.bf16.mxu0 %v1378
    %1511 = vmatpush1.bf16.msra.mxu0 %v1377
    %1512 = vmatprep.subr.bf16.mxu0 %v1375
    %1513 = vmatpush1.bf16.msra.mxu0 %v1374
    %1514 = vmatprep.subr.bf16.mxu0 %v1372
    %1515 = vmatpush1.bf16.msra.mxu0 %v1371
    %1516 = vmatprep.subr.bf16.mxu0 %v1369
    %1517 = vmatpush1.bf16.msra.mxu0 %v1368
    %1518 = vmatprep.subr.bf16.mxu0 %v1366
    %1519 = vmatpush1.bf16.msra.mxu0 %v1365
    %1520 = vmatprep.subr.bf16.mxu0 %v1363
    %1521 = vmatpush1.bf16.msra.mxu0 %v1362
    %1522 = vmatprep.subr.bf16.mxu0 %v1408
    %1523 = vmatpush2.bf16.msra.mxu0 %v1407
    %1524 = vmatprep.subr.bf16.mxu0 %v1405
    %1525 = vmatpush2.bf16.msra.mxu0 %v1404
    %1526 = vmatprep.subr.bf16.mxu0 %v1402
    %1527 = vmatpush2.bf16.msra.mxu0 %v1401
    %1528 = vmatprep.subr.bf16.mxu0 %v1399
    %1529 = vmatpush2.bf16.msra.mxu0 %v1398
    %1530 = vmatprep.subr.bf16.mxu0 %v1396
    %1531 = vmatpush2.bf16.msra.mxu0 %v1395
    %1532 = vmatprep.subr.bf16.mxu0 %v1393
    %1533 = vmatpush2.bf16.msra.mxu0 %v1392
    %1534 = vmatprep.subr.bf16.mxu0 %v1390
    %1535 = vmatpush2.bf16.msra.mxu0 %v1389
    %1536 = vmatprep.subr.bf16.mxu0 %v1387
    %1537 = vmatpush2.bf16.msra.mxu0 %v1386
    %1538 = vmatprep.mubr.bf16.mxu0 %v1024
    %1539 = vmatmul.mubr.bf16.gmra.mxu0 %v1023
    %v1540 = vpop.f32.mrf.mxu0
    %v1541 = vadd.f32 0.0, %v1540
    %v1542 = vpop.f32.mrf.mxu0
    %v1543 = vadd.f32 0.0, %v1542
    %v1544 = vpop.f32.mrf.mxu0
    %v1545 = vadd.f32 0.0, %v1544
    %v1546 = vpop.f32.mrf.mxu0
    %v1547 = vadd.f32 0.0, %v1546
    %1548 = vdwg.mxu0
    %1549 = vmatprep.subr.bf16.mxu0 %v1432
    %1550 = vmatpush1.bf16.msra.mxu0 %v1431
    %1551 = vmatprep.subr.bf16.mxu0 %v1429
    %1552 = vmatpush1.bf16.msra.mxu0 %v1428
    %1553 = vmatprep.subr.bf16.mxu0 %v1426
    %1554 = vmatpush1.bf16.msra.mxu0 %v1425
    %1555 = vmatprep.subr.bf16.mxu0 %v1423
    %1556 = vmatpush1.bf16.msra.mxu0 %v1422
    %1557 = vmatprep.subr.bf16.mxu0 %v1420
    %1558 = vmatpush1.bf16.msra.mxu0 %v1419
    %1559 = vmatprep.subr.bf16.mxu0 %v1417
    %1560 = vmatpush1.bf16.msra.mxu0 %v1416
    %1561 = vmatprep.subr.bf16.mxu0 %v1414
    %1562 = vmatpush1.bf16.msra.mxu0 %v1413
    %1563 = vmatprep.subr.bf16.mxu0 %v1411
    %1564 = vmatpush1.bf16.msra.mxu0 %v1410
    %1565 = vmatprep.subr.bf16.mxu0 0
    %1566 = vmatpush2.bf16.msra.mxu0 0
    %1567 = vmatprep.subr.bf16.mxu0 0
    %1568 = vmatpush2.bf16.msra.mxu0 0
    %1569 = vmatprep.subr.bf16.mxu0 0
    %1570 = vmatpush2.bf16.msra.mxu0 0
    %1571 = vmatprep.subr.bf16.mxu0 0
    %1572 = vmatpush2.bf16.msra.mxu0 0
    %1573 = vmatprep.subr.bf16.mxu0 0
    %1574 = vmatpush2.bf16.msra.mxu0 0
    %1575 = vmatprep.subr.bf16.mxu0 0
    %1576 = vmatpush2.bf16.msra.mxu0 0
    %1577 = vmatprep.subr.bf16.mxu0 0
    %1578 = vmatpush2.bf16.msra.mxu0 0
    %1579 = vmatprep.subr.bf16.mxu0 0
    %1580 = vmatpush2.bf16.msra.mxu0 0
    %1581 = vmatprep.mubr.bf16.mxu0 0
    %1582 = vmatmul.mubr.bf16.gmra.mxu0 %v1025
    %v1583 = vpop.f32.mrf.mxu0
    %v1584 = vadd.f32 %v1541, %v1583
    %v1585 = vpop.f32.mrf.mxu0
    %v1586 = vadd.f32 %v1543, %v1585
    %v1587 = vpop.f32.mrf.mxu0
    %v1588 = vadd.f32 %v1545, %v1587
    %v1589 = vpop.f32.mrf.mxu0
    %v1590 = vadd.f32 %v1547, %v1589
    %1591 = vdwg.mxu0
    %1592 = vmatprep.subr.bf16.mxu0 0
    %1593 = vmatpush1.bf16.msra.mxu0 %v1385
    %1594 = vmatprep.subr.bf16.mxu0 0
    %1595 = vmatpush1.bf16.msra.mxu0 %v1382
    %1596 = vmatprep.subr.bf16.mxu0 0
    %1597 = vmatpush1.bf16.msra.mxu0 %v1379
    %1598 = vmatprep.subr.bf16.mxu0 0
    %1599 = vmatpush1.bf16.msra.mxu0 %v1376
    %1600 = vmatprep.subr.bf16.mxu0 0
    %1601 = vmatpush1.bf16.msra.mxu0 %v1373
    %1602 = vmatprep.subr.bf16.mxu0 0
    %1603 = vmatpush1.bf16.msra.mxu0 %v1370
    %1604 = vmatprep.subr.bf16.mxu0 0
    %1605 = vmatpush1.bf16.msra.mxu0 %v1367
    %1606 = vmatprep.subr.bf16.mxu0 0
    %1607 = vmatpush1.bf16.msra.mxu0 %v1364
    %1608 = vmatprep.subr.bf16.mxu0 0
    %1609 = vmatpush2.bf16.msra.mxu0 %v1409
    %1610 = vmatprep.subr.bf16.mxu0 0
    %1611 = vmatpush2.bf16.msra.mxu0 %v1406
    %1612 = vmatprep.subr.bf16.mxu0 0
    %1613 = vmatpush2.bf16.msra.mxu0 %v1403
    %1614 = vmatprep.subr.bf16.mxu0 0
    %1615 = vmatpush2.bf16.msra.mxu0 %v1400
    %1616 = vmatprep.subr.bf16.mxu0 0
    %1617 = vmatpush2.bf16.msra.mxu0 %v1397
    %1618 = vmatprep.subr.bf16.mxu0 0
    %1619 = vmatpush2.bf16.msra.mxu0 %v1394
    %1620 = vmatprep.subr.bf16.mxu0 0
    %1621 = vmatpush2.bf16.msra.mxu0 %v1391
    %1622 = vmatprep.subr.bf16.mxu0 0
    %1623 = vmatpush2.bf16.msra.mxu0 %v1388
    %1624 = vmatprep.mubr.bf16.mxu0 %v1024
    %1625 = vmatmul.mubr.bf16.gmra.mxu0 %v1023
    %v1626 = vpop.f32.mrf.mxu0
    %v1627 = vadd.f32 0.0, %v1626
    %v1628 = vpop.f32.mrf.mxu0
    %v1629 = vpop.f32.mrf.mxu0
    %v1630 = vadd.f32 0.0, %v1629
    %v1631 = vpop.f32.mrf.mxu0
    %1632 = vdwg.mxu0
    %1633 = vmatprep.subr.bf16.mxu0 0
    %1634 = vmatpush1.bf16.msra.mxu0 %v1433
    %1635 = vmatprep.subr.bf16.mxu0 0
    %1636 = vmatpush1.bf16.msra.mxu0 %v1430
    %1637 = vmatprep.subr.bf16.mxu0 0
    %1638 = vmatpush1.bf16.msra.mxu0 %v1427
    %1639 = vmatprep.subr.bf16.mxu0 0
    %1640 = vmatpush1.bf16.msra.mxu0 %v1424
    %1641 = vmatprep.subr.bf16.mxu0 0
    %1642 = vmatpush1.bf16.msra.mxu0 %v1421
    %1643 = vmatprep.subr.bf16.mxu0 0
    %1644 = vmatpush1.bf16.msra.mxu0 %v1418
    %1645 = vmatprep.subr.bf16.mxu0 0
    %1646 = vmatpush1.bf16.msra.mxu0 %v1415
    %1647 = vmatprep.subr.bf16.mxu0 0
    %1648 = vmatpush1.bf16.msra.mxu0 %v1412
    %1649 = vmatprep.subr.bf16.mxu0 0
    %1650 = vmatpush2.bf16.msra.mxu0 0
    %1651 = vmatprep.subr.bf16.mxu0 0
    %1652 = vmatpush2.bf16.msra.mxu0 0
    %1653 = vmatprep.subr.bf16.mxu0 0
    %1654 = vmatpush2.bf16.msra.mxu0 0
    %1655 = vmatprep.subr.bf16.mxu0 0
    %1656 = vmatpush2.bf16.msra.mxu0 0
    %1657 = vmatprep.subr.bf16.mxu0 0
    %1658 = vmatpush2.bf16.msra.mxu0 0
    %1659 = vmatprep.subr.bf16.mxu0 0
    %1660 = vmatpush2.bf16.msra.mxu0 0
    %1661 = vmatprep.subr.bf16.mxu0 0
    %1662 = vmatpush2.bf16.msra.mxu0 0
    %1663 = vmatprep.subr.bf16.mxu0 0
    %1664 = vmatpush2.bf16.msra.mxu0 0
    %1665 = vmatprep.mubr.bf16.mxu0 0
    %1666 = vmatmul.mubr.bf16.gmra.mxu0 %v1025
    %v1667 = vpop.f32.mrf.mxu0
    %v1668 = vadd.f32 %v1627, %v1667
    %v1669 = vpop.f32.mrf.mxu0
    %v1670 = vpop.f32.mrf.mxu0
    %v1671 = vadd.f32 %v1630, %v1670
    %v1672 = vpop.f32.mrf.mxu0
    %1673 = vdwg.mxu0
    %v1674 = vmax.f32 %v1584, 0.0
    %v1675 = vmax.f32 %v1586, 0.0
    %v1676 = vmax.f32 %v1668, 0.0
    %v1677 = vmax.f32 %v1588, 0.0
    %v1678 = vmax.f32 %v1590, 0.0
    %v1679 = vmax.f32 %v1671, 0.0
    %v1680 = vpack.c.bf16 %v1677, %v1674
    %v1681 = vpack.c.bf16 %v1678, %v1675
    %v1682 = vpack.c.bf16 %v1679, %v1676
    %v1683 = vld [vmem:[%s4] sm:$0xf]
    %v1684 = vld [vmem:[%s4 + $0x4] sm:$0xf]
    %v1685 = vld [vmem:[%s4 + $0x8] sm:$0xf]
    %v1686 = vld [vmem:[%s4 + $0xc] sm:$0xf]
    %v1687 = vld [vmem:[%s4 + $0x10] sm:$0xf]
    %v1688 = vld [vmem:[%s4 + $0x14] sm:$0xf]
    %v1689 = vld [vmem:[%s4 + $0x18] sm:$0xf]
    %v1690 = vld [vmem:[%s4 + $0x1c] sm:$0xf]
    %v1691 = vld [vmem:[%s4 + $0x20] sm:$0xf]
    %v1692 = vld [vmem:[%s4 + $0x24] sm:$0xf]
    %v1693 = vld [vmem:[%s4 + $0x28] sm:$0xf]
    %v1694 = vld [vmem:[%s4 + $0x2c] sm:$0xf]
    %v1695 = vld [vmem:[%s4 + $0x30] sm:$0xf]
    %v1696 = vld [vmem:[%s4 + $0x34] sm:$0xf]
    %v1697 = vld [vmem:[%s4 + $0x38] sm:$0xf]
    %v1698 = vld [vmem:[%s4 + $0x3c] sm:$0xf]
    %v1699 = vld [vmem:[%s4 + $0x40] sm:$0xf]
    %v1700 = vld [vmem:[%s4 + $0x44] sm:$0xf]
    %v1701 = vld [vmem:[%s4 + $0x48] sm:$0xf]
    %v1702 = vld [vmem:[%s4 + $0x4c] sm:$0xf]
    %v1703 = vld [vmem:[%s4 + $0x50] sm:$0xf]
    %v1704 = vld [vmem:[%s4 + $0x54] sm:$0xf]
    %v1705 = vld [vmem:[%s4 + $0x58] sm:$0xf]
    %v1706 = vld [vmem:[%s4 + $0x5c] sm:$0xf]
    %v1707 = vld [vmem:[%s4 + $0x60] sm:$0xf]
    %v1708 = vld [vmem:[%s4 + $0x64] sm:$0xf]
    %v1709 = vld [vmem:[%s4 + $0x68] sm:$0xf]
    %v1710 = vld [vmem:[%s4 + $0x6c] sm:$0xf]
    %v1711 = vld [vmem:[%s4 + $0x70] sm:$0xf]
    %v1712 = vld [vmem:[%s4 + $0x74] sm:$0xf]
    %v1713 = vld [vmem:[%s4 + $0x78] sm:$0xf]
    %v1714 = vld [vmem:[%s4 + $0x7c] sm:$0xf]
    %v1715 = vld [vmem:[%s4 + $0x80] sm:$0xf]
    %v1716 = vld [vmem:[%s4 + $0x84] sm:$0xf]
    %v1717 = vld [vmem:[%s4 + $0x88] sm:$0xf]
    %v1718 = vld [vmem:[%s4 + $0x8c] sm:$0xf]
    %v1719 = vld [vmem:[%s4 + $0x90] sm:$0xf]
    %v1720 = vld [vmem:[%s4 + $0x94] sm:$0xf]
    %v1721 = vld [vmem:[%s4 + $0x98] sm:$0xf]
    %v1722 = vld [vmem:[%s4 + $0x9c] sm:$0xf]
    %v1723 = vld [vmem:[%s4 + $0xa0] sm:$0xf]
    %v1724 = vld [vmem:[%s4 + $0xa4] sm:$0xf]
    %v1725 = vld [vmem:[%s4 + $0xa8] sm:$0xf]
    %v1726 = vld [vmem:[%s4 + $0xac] sm:$0xf]
    %v1727 = vld [vmem:[%s4 + $0xb0] sm:$0xf]
    %v1728 = vld [vmem:[%s4 + $0xb4] sm:$0xf]
    %v1729 = vld [vmem:[%s4 + $0xb8] sm:$0xf]
    %v1730 = vld [vmem:[%s4 + $0xbc] sm:$0xf]
    %v1779 = vunpack.c.l.b16 %v1683
    %v1780 = vunpack.c.l.b16 %v1684
    %v1781 = vunpack.c.l.b16 %v1685
    %v1782 = vunpack.c.l.b16 %v1686
    %v1783 = vunpack.c.l.b16 %v1687
    %v1784 = vunpack.c.l.b16 %v1688
    %v1785 = vunpack.c.l.b16 %v1689
    %v1786 = vunpack.c.l.b16 %v1690
    %v1787 = vunpack.c.l.b16 %v1691
    %v1788 = vunpack.c.l.b16 %v1692
    %v1789 = vunpack.c.l.b16 %v1693
    %v1790 = vunpack.c.l.b16 %v1694
    %v1791 = vunpack.c.l.b16 %v1695
    %v1792 = vunpack.c.l.b16 %v1696
    %v1793 = vunpack.c.l.b16 %v1697
    %v1794 = vunpack.c.l.b16 %v1698
    %v1795 = vunpack.c.l.b16 %v1699
    %v1796 = vunpack.c.l.b16 %v1700
    %v1797 = vunpack.c.l.b16 %v1701
    %v1798 = vunpack.c.l.b16 %v1702
    %v1799 = vunpack.c.l.b16 %v1703
    %v1800 = vunpack.c.l.b16 %v1704
    %v1801 = vunpack.c.l.b16 %v1705
    %v1802 = vunpack.c.l.b16 %v1706
    %v1803 = vunpack.c.l.b16 %v1707
    %v1804 = vunpack.c.l.b16 %v1708
    %v1805 = vunpack.c.l.b16 %v1709
    %v1806 = vunpack.c.l.b16 %v1710
    %v1807 = vunpack.c.l.b16 %v1711
    %v1808 = vunpack.c.l.b16 %v1712
    %v1809 = vunpack.c.l.b16 %v1713
    %v1810 = vunpack.c.l.b16 %v1714
    %v1811 = vunpack.c.l.b16 %v1715
    %v1812 = vunpack.c.l.b16 %v1716
    %v1813 = vunpack.c.l.b16 %v1717
    %v1814 = vunpack.c.l.b16 %v1718
    %v1815 = vunpack.c.l.b16 %v1719
    %v1816 = vunpack.c.l.b16 %v1720
    %v1817 = vunpack.c.l.b16 %v1721
    %v1818 = vunpack.c.l.b16 %v1722
    %v1819 = vunpack.c.l.b16 %v1723
    %v1820 = vunpack.c.l.b16 %v1724
    %v1821 = vunpack.c.l.b16 %v1725
    %v1822 = vunpack.c.l.b16 %v1726
    %v1823 = vunpack.c.l.b16 %v1727
    %v1824 = vunpack.c.l.b16 %v1728
    %v1825 = vunpack.c.l.b16 %v1729
    %v1826 = vunpack.c.l.b16 %v1730
    %v1827 = vpack.c.b16 %v1780, %v1779
    %v1828 = vpack.c.b16 %v1782, %v1781
    %v1829 = vpack.c.b16 %v1784, %v1783
    %v1830 = vpack.c.b16 %v1786, %v1785
    %v1831 = vpack.c.b16 %v1788, %v1787
    %v1832 = vpack.c.b16 %v1790, %v1789
    %v1833 = vpack.c.b16 %v1792, %v1791
    %v1834 = vpack.c.b16 %v1794, %v1793
    %v1835 = vpack.c.b16 %v1796, %v1795
    %v1836 = vpack.c.b16 %v1798, %v1797
    %v1837 = vpack.c.b16 %v1800, %v1799
    %v1838 = vpack.c.b16 %v1802, %v1801
    %v1839 = vpack.c.b16 %v1804, %v1803
    %v1840 = vpack.c.b16 %v1806, %v1805
    %v1841 = vpack.c.b16 %v1808, %v1807
    %v1842 = vpack.c.b16 %v1810, %v1809
    %v1843 = vpack.c.b16 %v1812, %v1811
    %v1844 = vpack.c.b16 %v1814, %v1813
    %v1845 = vpack.c.b16 %v1816, %v1815
    %v1846 = vpack.c.b16 %v1818, %v1817
    %v1847 = vpack.c.b16 %v1820, %v1819
    %v1848 = vpack.c.b16 %v1822, %v1821
    %v1849 = vpack.c.b16 %v1824, %v1823
    %v1850 = vpack.c.b16 %v1826, %v1825
    %1875 = vmatprep.subr.bf16.mxu0 0
    %1876 = vmatpush1.bf16.msra.mxu0 %v1834
    %1877 = vmatprep.subr.bf16.mxu0 0
    %1878 = vmatpush1.bf16.msra.mxu0 %v1833
    %1879 = vmatprep.subr.bf16.mxu0 0
    %1880 = vmatpush1.bf16.msra.mxu0 %v1832
    %1881 = vmatprep.subr.bf16.mxu0 0
    %1882 = vmatpush1.bf16.msra.mxu0 %v1831
    %1883 = vmatprep.subr.bf16.mxu0 0
    %1884 = vmatpush1.bf16.msra.mxu0 %v1830
    %1885 = vmatprep.subr.bf16.mxu0 0
    %1886 = vmatpush1.bf16.msra.mxu0 %v1829
    %1887 = vmatprep.subr.bf16.mxu0 0
    %1888 = vmatpush1.bf16.msra.mxu0 %v1828
    %1889 = vmatprep.subr.bf16.mxu0 0
    %1890 = vmatpush1.bf16.msra.mxu0 %v1827
    %1891 = vmatprep.subr.bf16.mxu0 0
    %1892 = vmatpush2.bf16.msra.mxu0 %v1842
    %1893 = vmatprep.subr.bf16.mxu0 0
    %1894 = vmatpush2.bf16.msra.mxu0 %v1841
    %1895 = vmatprep.subr.bf16.mxu0 0
    %1896 = vmatpush2.bf16.msra.mxu0 %v1840
    %1897 = vmatprep.subr.bf16.mxu0 0
    %1898 = vmatpush2.bf16.msra.mxu0 %v1839
    %1899 = vmatprep.subr.bf16.mxu0 0
    %1900 = vmatpush2.bf16.msra.mxu0 %v1838
    %1901 = vmatprep.subr.bf16.mxu0 0
    %1902 = vmatpush2.bf16.msra.mxu0 %v1837
    %1903 = vmatprep.subr.bf16.mxu0 0
    %1904 = vmatpush2.bf16.msra.mxu0 %v1836
    %1905 = vmatprep.subr.bf16.mxu0 0
    %1906 = vmatpush2.bf16.msra.mxu0 %v1835
    %1907 = vmatprep.mubr.bf16.mxu0 %v1681
    %1908 = vmatmul.mubr.bf16.gmra.mxu0 %v1680
    %v1909 = vpop.f32.mrf.mxu0
    %v1910 = vadd.f32 0.0, %v1909
    %v1911 = vpop.f32.mrf.mxu0
    %v1912 = vpop.f32.mrf.mxu0
    %v1913 = vadd.f32 0.0, %v1912
    %v1914 = vpop.f32.mrf.mxu0
    %1915 = vdwg.mxu0
    %1916 = vmatprep.subr.bf16.mxu0 0
    %1917 = vmatpush1.bf16.msra.mxu0 %v1850
    %1918 = vmatprep.subr.bf16.mxu0 0
    %1919 = vmatpush1.bf16.msra.mxu0 %v1849
    %1920 = vmatprep.subr.bf16.mxu0 0
    %1921 = vmatpush1.bf16.msra.mxu0 %v1848
    %1922 = vmatprep.subr.bf16.mxu0 0
    %1923 = vmatpush1.bf16.msra.mxu0 %v1847
    %1924 = vmatprep.subr.bf16.mxu0 0
    %1925 = vmatpush1.bf16.msra.mxu0 %v1846
    %1926 = vmatprep.subr.bf16.mxu0 0
    %1927 = vmatpush1.bf16.msra.mxu0 %v1845
    %1928 = vmatprep.subr.bf16.mxu0 0
    %1929 = vmatpush1.bf16.msra.mxu0 %v1844
    %1930 = vmatprep.subr.bf16.mxu0 0
    %1931 = vmatpush1.bf16.msra.mxu0 %v1843
    %1932 = vmatprep.subr.bf16.mxu0 0
    %1933 = vmatpush2.bf16.msra.mxu0 0
    %1934 = vmatprep.subr.bf16.mxu0 0
    %1935 = vmatpush2.bf16.msra.mxu0 0
    %1936 = vmatprep.subr.bf16.mxu0 0
    %1937 = vmatpush2.bf16.msra.mxu0 0
    %1938 = vmatprep.subr.bf16.mxu0 0
    %1939 = vmatpush2.bf16.msra.mxu0 0
    %1940 = vmatprep.subr.bf16.mxu0 0
    %1941 = vmatpush2.bf16.msra.mxu0 0
    %1942 = vmatprep.subr.bf16.mxu0 0
    %1943 = vmatpush2.bf16.msra.mxu0 0
    %1944 = vmatprep.subr.bf16.mxu0 0
    %1945 = vmatpush2.bf16.msra.mxu0 0
    %1946 = vmatprep.subr.bf16.mxu0 0
    %1947 = vmatpush2.bf16.msra.mxu0 0
    %1948 = vmatprep.mubr.bf16.mxu0 0
    %1949 = vmatmul.mubr.bf16.gmra.mxu0 %v1682
    %v1950 = vpop.f32.mrf.mxu0
    %v1951 = vadd.f32 %v1910, %v1950
    %v1952 = vpop.f32.mrf.mxu0
    %v1953 = vpop.f32.mrf.mxu0
    %v1954 = vadd.f32 %v1913, %v1953
    %v1955 = vpop.f32.mrf.mxu0
    %1956 = vdwg.mxu0
    %v1957 = vld [vmem:[%s5] sm:$0x1]
    %v1958 = vld [vmem:[%s5 + $0x1] sm:$0x1]
    %vm1959 = vcmp.gt.f32.partialorder %v1958, 0.5
    %v1960 = vtanh.pop %v1951
    %v1961 = vtanh.pop %v1954
    %v1962 = vxor.u32 %v1951, 2147483648
    %v1963 = vxor.u32 %v1954, 2147483648
    %v1964 = vmul.f32 %v1962, 1.442695
    %v1965 = vpow.pop %v1964
    %v1966 = vmul.f32 %v1963, 1.442695
    %v1967 = vpow.pop %v1966
    %v1968 = vadd.f32 %v1965, 1.0
    %v1969 = vadd.f32 %v1967, 1.0
    %v1970 = vrcp.pop %v1968
    %v1971 = vmul.f32 1.0, %v1970
    %v1972 = vrcp.pop %v1969
    %v1973 = vmul.f32 1.0, %v1972
    %v1974 = vsel %vm1959, 1, 0
    %v1975 = vlaneseq
    %v1976 = vshrl.u32 %v1975, 7
    %v1977 = vsub.s32 0, %v1976
    %v1978 = vrot.slane %v1974, %v1977
    %vm1979 = vcmp.eq.s32.totalorder %v1978, 1
    %v1980 = vsel %vm1979, %v1960, %v1971
    %v1981 = vsel %vm1979, %v1961, %v1973
    %v1982 = vlaneseq
    %v1983 = vshrl.u32 %v1982, 7
    %v1984 = vsub.s32 0, %v1983
    %v1985 = vrot.slane %v1957, %v1984
    %v1986 = vmul.f32 %v1980, %v1985
    %v1987 = vmul.f32 %v1981, %v1985
    %vm1988 = vcmask 64512
    %1989 = vst.msk [vmem:[%s6] sm:$0xff] %vm1988, %v1986
    %1990 = vst.msk [vmem:[%s6 + $0x8] sm:$0xff] %vm1988, %v1987
    // Predicated region
    $region34: #{tpu_custom_call.1} parent=1 // pred_check
      _
    $region35: #{tpu_custom_call.1} parent=1 // pred_check_branch
      %1992 = sbr.rel (0) target = $region37
    $region36: #{tpu_custom_call.1} parent=1 // pred_region
      _
    $region37: #{tpu_custom_call.1} parent=1 // pred_fallthru
      _
    // Predicated region
    $region38: #{tpu_custom_call.1} parent=1 // pred_check
      _
    $region39: #{tpu_custom_call.1} parent=1 // pred_check_branch
      %1994 = sbr.rel (0) target = $region41
    $region40: #{tpu_custom_call.1} parent=1 // pred_region
      _
    $region41: #{tpu_custom_call.1} parent=1 // pred_fallthru
      _
    %1995 = vsyncpa [#allocation3], 1
    %1996 = vsyncpa [#allocation5], 1

// kernel: tpu_custom_call.1
$region0: #{tpu_custom_call.1}
  #allocation0 [shape = 'u32[]', space=smem, size = 0x4, offset = 0x4, fixed_abs, tag = 'smem constant byte address 0x4 - core index']
  #allocation1 [shape = 'u32[144,128]{1,0:T(1,128)}', space=vmem, size = 0x12000, scoped, tag = 'internal scratch']
  %s0 = inlined_call_operand.vmem [shape: bf16[16,32], index: 0, kind: input, shape index: {}]
  %s1 = inlined_call_operand.vmem [shape: bf16[32,512], index: 1, kind: input, shape index: {}]
  %s2 = inlined_call_operand.hbm [shape: bf16[512,384], index: 2, kind: input, shape index: {}]
  %s3 = inlined_call_operand.hbm [shape: bf16[384,384], index: 3, kind: input, shape index: {}]
  %s4 = inlined_call_operand.vmem [shape: bf16[384,8], index: 4, kind: input, shape index: {}]
  %s5 = inlined_call_operand.vmem [shape: f32[2,128], index: 5, kind: input, shape index: {}]
  %s6 = inlined_call_operand.vmem [shape: f32[16,8], index: 6, kind: output, shape index: {}]
  %s7 = sld [smem:[#allocation0]]
  $region42: #{tpu_custom_call.1} parent=0
    _
  %s9 = ssub.s32 1, %s7
  %s10 = scalar_select 0, %s9, %s7
  $region1: #{tpu_custom_call.1} parent=0
    #allocation2 [shape = 'u8[393216]{0}', space=vmem, size = 0x60000, scoped, tag = 'input window, operand 2, single buffered']
    #allocation3 [shape = 's32[1]{0}', space=sflag, size = 0x4, scoped, tag = 'scoped memory for tpu_custom_call.1']
    #allocation4 [shape = 'u8[294912]{0}', space=vmem, size = 0x48000, scoped, tag = 'input window, operand 3, single buffered']
    #allocation5 [shape = 's32[1]{0}', space=sflag, size = 0x4, scoped, tag = 'scoped memory for tpu_custom_call.1']
    %11 = vsyncpa [#allocation3], 0
    %12 = vsyncpa [#allocation5], 0
    // Predicated region
    $region2: #{tpu_custom_call.1} parent=1 // pred_check
      _
    $region3: #{tpu_custom_call.1} parent=1 // pred_check_branch
      %14 = sbr.rel (0) target = $region5
    $region4: #{tpu_custom_call.1} parent=1 // pred_region
      _
    $region5: #{tpu_custom_call.1} parent=1 // pred_fallthru
      _
    // Predicated region
    $region6: #{tpu_custom_call.1} parent=1 // pred_check
      _
    $region7: #{tpu_custom_call.1} parent=1 // pred_check_branch
      %16 = sbr.rel (0) target = $region9
    $region8: #{tpu_custom_call.1} parent=1 // pred_region
      _
    $region9: #{tpu_custom_call.1} parent=1 // pred_fallthru
      _
    // Predicated region
    $region10: #{tpu_custom_call.1} parent=1 // pred_check
      _
    $region11: #{tpu_custom_call.1} parent=1 // pred_check_branch
      %18 = sbr.rel (0) target = $region13
    $region12: #{tpu_custom_call.1} parent=1 // pred_region
      %s20 = ssub.s32 12288, 12288
      %21 = vsyncadd [#allocation3], %s20
      %s22 = sshll.u32 [#allocation2], 4
      %s23 = int_to_ptr.vmem [resolvable:$true] %s22
      %28 = dma.hbm_to_vmem [thread:$0]  %s2, 12288, %s23, [#allocation3], 192, 192, 12
    $region13: #{tpu_custom_call.1} parent=1 // pred_fallthru
      _
    // Predicated region
    $region14: #{tpu_custom_call.1} parent=1 // pred_check
      _
    $region15: #{tpu_custom_call.1} parent=1 // pred_check_branch
      %30 = sbr.rel (0) target = $region17
    $region16: #{tpu_custom_call.1} parent=1 // pred_region
      %s32 = ssub.s32 9216, 9216
      %33 = vsyncadd [#allocation5], %s32
      %s34 = sshll.u32 [#allocation4], 4
      %s35 = int_to_ptr.vmem [resolvable:$true] %s34
      %40 = dma.hbm_to_vmem [thread:$0]  %s3, 9216, %s35, [#allocation5], 192, 192, 12
    $region17: #{tpu_custom_call.1} parent=1 // pred_fallthru
      _
    // Predicated region
    $region18: #{tpu_custom_call.1} parent=1 // pred_check
      _
    $region19: #{tpu_custom_call.1} parent=1 // pred_check_branch
      %42 = sbr.rel (0) target = $region21
    $region20: #{tpu_custom_call.1} parent=1 // pred_region
      _
    $region21: #{tpu_custom_call.1} parent=1 // pred_fallthru
      _
    // Predicated region
    $region22: #{tpu_custom_call.1} parent=1 // pred_check
      _
    $region23: #{tpu_custom_call.1} parent=1 // pred_check_branch
      %44 = sbr.rel (0) target = $region25
    $region24: #{tpu_custom_call.1} parent=1 // pred_region
      _
    $region25: #{tpu_custom_call.1} parent=1 // pred_fallthru
      _
    // Predicated region
    $region26: #{tpu_custom_call.1} parent=1 // pred_check
      _
    $region27: #{tpu_custom_call.1} parent=1 // pred_check_branch
      %46 = sbr.rel (0) target = $region29
    $region28: #{tpu_custom_call.1} parent=1 // pred_region
      %47 = dma.done [#allocation3], 12288
    $region29: #{tpu_custom_call.1} parent=1 // pred_fallthru
      _
    // Predicated region
    $region30: #{tpu_custom_call.1} parent=1 // pred_check
      _
    $region31: #{tpu_custom_call.1} parent=1 // pred_check_branch
      %49 = sbr.rel (0) target = $region33
    $region32: #{tpu_custom_call.1} parent=1 // pred_region
      %50 = dma.done [#allocation5], 9216
    $region33: #{tpu_custom_call.1} parent=1 // pred_fallthru
      _
    %v52 = vld [vmem:[%s0] sm:$0xf]
    %v53 = vld [vmem:[%s0 + $0x4] sm:$0xf]
    %v54 = vld [vmem:[%s1] sm:$0xff]
    %v55 = vld [vmem:[%s1 + $0x8] sm:$0xff]
    %v56 = vld [vmem:[%s1 + $0x10] sm:$0xff]
    %v57 = vld [vmem:[%s1 + $0x18] sm:$0xff]
    %v58 = vld [vmem:[%s1 + $0x20] sm:$0xff]
    %v59 = vld [vmem:[%s1 + $0x28] sm:$0xff]
    %v60 = vld [vmem:[%s1 + $0x30] sm:$0xff]
    %v61 = vld [vmem:[%s1 + $0x38] sm:$0xff]
    %v64 = vunpack.c.l.b16 %v52
    %v65 = vunpack.c.l.b16 %v53
    %v66 = vpack.c.b16 %v65, %v64
    %v75 = vunpack.c.l.b16 %v54
    %v76 = vunpack.c.h.b16 %v54
    %v77 = vunpack.c.l.b16 %v55
    %v78 = vunpack.c.h.b16 %v55
    %v79 = vunpack.c.l.b16 %v56
    %v80 = vunpack.c.h.b16 %v56
    %v81 = vunpack.c.l.b16 %v57
    %v82 = vunpack.c.h.b16 %v57
    %v83 = vunpack.c.l.b16 %v58
    %v84 = vunpack.c.h.b16 %v58
    %v85 = vunpack.c.l.b16 %v59
    %v86 = vunpack.c.h.b16 %v59
    %v87 = vunpack.c.l.b16 %v60
    %v88 = vunpack.c.h.b16 %v60
    %v89 = vunpack.c.l.b16 %v61
    %v90 = vunpack.c.h.b16 %v61
    %v91 = vpack.c.b16 %v79, %v75
    %v92 = vpack.c.b16 %v80, %v76
    %v93 = vpack.c.b16 %v81, %v77
    %v94 = vpack.c.b16 %v82, %v78
    %v95 = vpack.c.b16 %v87, %v83
    %v96 = vpack.c.b16 %v88, %v84
    %v97 = vpack.c.b16 %v89, %v85
    %v98 = vpack.c.b16 %v90, %v86
    %vm107 = vcmask 261120
    %v109 = vsel %vm107, %v66, 0
    %111 = vmatprep.subr.bf16.mxu0 0
    %112 = vmatpush1.bf16.msra.mxu0 0
    %113 = vmatprep.subr.bf16.mxu0 0
    %114 = vmatpush1.bf16.msra.mxu0 0
    %115 = vmatprep.subr.bf16.mxu0 0
    %116 = vmatpush1.bf16.msra.mxu0 0
    %117 = vmatprep.subr.bf16.mxu0 0
    %118 = vmatpush1.bf16.msra.mxu0 0
    %119 = vmatprep.subr.bf16.mxu0 0
    %120 = vmatpush1.bf16.msra.mxu0 0
    %121 = vmatprep.subr.bf16.mxu0 0
    %122 = vmatpush1.bf16.msra.mxu0 0
    %123 = vmatprep.subr.bf16.mxu0 %v96
    %124 = vmatpush1.bf16.msra.mxu0 %v95
    %125 = vmatprep.subr.bf16.mxu0 %v92
    %126 = vmatpush1.bf16.msra.mxu0 %v91
    %127 = vmatprep.subr.bf16.mxu0 0
    %128 = vmatpush2.bf16.msra.mxu0 0
    %129 = vmatprep.subr.bf16.mxu0 0
    %130 = vmatpush2.bf16.msra.mxu0 0
    %131 = vmatprep.subr.bf16.mxu0 0
    %132 = vmatpush2.bf16.msra.mxu0 0
    %133 = vmatprep.subr.bf16.mxu0 0
    %134 = vmatpush2.bf16.msra.mxu0 0
    %135 = vmatprep.subr.bf16.mxu0 0
    %136 = vmatpush2.bf16.msra.mxu0 0
    %137 = vmatprep.subr.bf16.mxu0 0
    %138 = vmatpush2.bf16.msra.mxu0 0
    %139 = vmatprep.subr.bf16.mxu0 0
    %140 = vmatpush2.bf16.msra.mxu0 0
    %141 = vmatprep.subr.bf16.mxu0 0
    %142 = vmatpush2.bf16.msra.mxu0 0
    %143 = vmatprep.mubr.bf16.mxu0 0
    %144 = vmatmul.mubr.bf16.gmra.mxu0 %v109
    %v145 = vpop.f32.mrf.mxu0
    %v146 = vadd.f32 0.0, %v145
    %v147 = vpop.f32.mrf.mxu0
    %v148 = vadd.f32 0.0, %v147
    %v149 = vpop.f32.mrf.mxu0
    %v150 = vadd.f32 0.0, %v149
    %v151 = vpop.f32.mrf.mxu0
    %v152 = vadd.f32 0.0, %v151
    %153 = vdwg.mxu0
    %154 = vmatprep.subr.bf16.mxu0 0
    %155 = vmatpush1.bf16.msra.mxu0 0
    %156 = vmatprep.subr.bf16.mxu0 0
    %157 = vmatpush1.bf16.msra.mxu0 0
    %158 = vmatprep.subr.bf16.mxu0 0
    %159 = vmatpush1.bf16.msra.mxu0 0
    %160 = vmatprep.subr.bf16.mxu0 0
    %161 = vmatpush1.bf16.msra.mxu0 0
    %162 = vmatprep.subr.bf16.mxu0 0
    %163 = vmatpush1.bf16.msra.mxu0 0
    %164 = vmatprep.subr.bf16.mxu0 0
    %165 = vmatpush1.bf16.msra.mxu0 0
    %166 = vmatprep.subr.bf16.mxu0 %v98
    %167 = vmatpush1.bf16.msra.mxu0 %v97
    %168 = vmatprep.subr.bf16.mxu0 %v94
    %169 = vmatpush1.bf16.msra.mxu0 %v93
    %170 = vmatprep.subr.bf16.mxu0 0
    %171 = vmatpush2.bf16.msra.mxu0 0
    %172 = vmatprep.subr.bf16.mxu0 0
    %173 = vmatpush2.bf16.msra.mxu0 0
    %174 = vmatprep.subr.bf16.mxu0 0
    %175 = vmatpush2.bf16.msra.mxu0 0
    %176 = vmatprep.subr.bf16.mxu0 0
    %177 = vmatpush2.bf16.msra.mxu0 0
    %178 = vmatprep.subr.bf16.mxu0 0
    %179 = vmatpush2.bf16.msra.mxu0 0
    %180 = vmatprep.subr.bf16.mxu0 0
    %181 = vmatpush2.bf16.msra.mxu0 0
    %182 = vmatprep.subr.bf16.mxu0 0
    %183 = vmatpush2.bf16.msra.mxu0 0
    %184 = vmatprep.subr.bf16.mxu0 0
    %185 = vmatpush2.bf16.msra.mxu0 0
    %186 = vmatprep.mubr.bf16.mxu0 0
    %187 = vmatmul.mubr.bf16.gmra.mxu0 %v109
    %v188 = vpop.f32.mrf.mxu0
    %v189 = vadd.f32 0.0, %v188
    %v190 = vpop.f32.mrf.mxu0
    %v191 = vadd.f32 0.0, %v190
    %v192 = vpop.f32.mrf.mxu0
    %v193 = vadd.f32 0.0, %v192
    %v194 = vpop.f32.mrf.mxu0
    %v195 = vadd.f32 0.0, %v194
    %196 = vdwg.mxu0
    %v197 = vmax.f32 %v146, 0.0
    %v198 = vmax.f32 %v148, 0.0
    %v199 = vmax.f32 %v189, 0.0
    %v200 = vmax.f32 %v191, 0.0
    %v201 = vmax.f32 %v150, 0.0
    %v202 = vmax.f32 %v152, 0.0
    %v203 = vmax.f32 %v193, 0.0
    %v204 = vmax.f32 %v195, 0.0
    %v205 = vpack.c.bf16 %v201, %v197
    %v206 = vpack.c.bf16 %v202, %v198
    %v207 = vpack.c.bf16 %v203, %v199
    %v208 = vpack.c.bf16 %v204, %v200
    %v209 = vld [vmem:[#allocation2] sm:$0xff]
    %v210 = vld [vmem:[#allocation2 + $0x8] sm:$0xf]
    %v211 = vld [vmem:[#allocation2 + $0xc] sm:$0xff]
    %v212 = vld [vmem:[#allocation2 + $0x14] sm:$0xf]
    %v213 = vld [vmem:[#allocation2 + $0x18] sm:$0xff]
    %v214 = vld [vmem:[#allocation2 + $0x20] sm:$0xf]
    %v215 = vld [vmem:[#allocation2 + $0x24] sm:$0xff]
    %v216 = vld [vmem:[#allocation2 + $0x2c] sm:$0xf]
    %v217 = vld [vmem:[#allocation2 + $0x30] sm:$0xff]
    %v218 = vld [vmem:[#allocation2 + $0x38] sm:$0xf]
    %v219 = vld [vmem:[#allocation2 + $0x3c] sm:$0xff]
    %v220 = vld [vmem:[#allocation2 + $0x44] sm:$0xf]
    %v221 = vld [vmem:[#allocation2 + $0x48] sm:$0xff]
    %v222 = vld [vmem:[#allocation2 + $0x50] sm:$0xf]
    %v223 = vld [vmem:[#allocation2 + $0x54] sm:$0xff]
    %v224 = vld [vmem:[#allocation2 + $0x5c] sm:$0xf]
    %v225 = vld [vmem:[#allocation2 + $0x60] sm:$0xff]
    %v226 = vld [vmem:[#allocation2 + $0x68] sm:$0xf]
    %v227 = vld [vmem:[#allocation2 + $0x6c] sm:$0xff]
    %v228 = vld [vmem:[#allocation2 + $0x74] sm:$0xf]
    %v229 = vld [vmem:[#allocation2 + $0x78] sm:$0xff]
    %v230 = vld [vmem:[#allocation2 + $0x80] sm:$0xf]
    %v231 = vld [vmem:[#allocation2 + $0x84] sm:$0xff]
    %v232 = vld [vmem:[#allocation2 + $0x8c] sm:$0xf]
    %v233 = vld [vmem:[#allocation2 + $0x90] sm:$0xff]
    %v234 = vld [vmem:[#allocation2 + $0x98] sm:$0xf]
    %v235 = vld [vmem:[#allocation2 + $0x9c] sm:$0xff]
    %v236 = vld [vmem:[#allocation2 + $0xa4] sm:$0xf]
    %v237 = vld [vmem:[#allocation2 + $0xa8] sm:$0xff]
    %v238 = vld [vmem:[#allocation2 + $0xb0] sm:$0xf]
    %v239 = vld [vmem:[#allocation2 + $0xb4] sm:$0xff]
    %v240 = vld [vmem:[#allocation2 + $0xbc] sm:$0xf]
    %v241 = vld [vmem:[#allocation2 + $0xc0] sm:$0xff]
    %v242 = vld [vmem:[#allocation2 + $0xc8] sm:$0xf]
    %v243 = vld [vmem:[#allocation2 + $0xcc] sm:$0xff]
    %v244 = vld [vmem:[#allocation2 + $0xd4] sm:$0xf]
    %v245 = vld [vmem:[#allocation2 + $0xd8] sm:$0xff]
    %v246 = vld [vmem:[#allocation2 + $0xe0] sm:$0xf]
    %v247 = vld [vmem:[#allocation2 + $0xe4] sm:$0xff]
    %v248 = vld [vmem:[#allocation2 + $0xec] sm:$0xf]
    %v249 = vld [vmem:[#allocation2 + $0xf0] sm:$0xff]
    %v250 = vld [vmem:[#allocation2 + $0xf8] sm:$0xf]
    %v251 = vld [vmem:[#allocation2 + $0xfc] sm:$0xff]
    %v252 = vld [vmem:[#allocation2 + $0x104] sm:$0xf]
    %v253 = vld [vmem:[#allocation2 + $0x108] sm:$0xff]
    %v254 = vld [vmem:[#allocation2 + $0x110] sm:$0xf]
    %v255 = vld [vmem:[#allocation2 + $0x114] sm:$0xff]
    %v256 = vld [vmem:[#allocation2 + $0x11c] sm:$0xf]
    %v257 = vld [vmem:[#allocation2 + $0x120] sm:$0xff]
    %v258 = vld [vmem:[#allocation2 + $0x128] sm:$0xf]
    %v259 = vld [vmem:[#allocation2 + $0x12c] sm:$0xff]
    %v260 = vld [vmem:[#allocation2 + $0x134] sm:$0xf]
    %v261 = vld [vmem:[#allocation2 + $0x138] sm:$0xff]
    %v262 = vld [vmem:[#allocation2 + $0x140] sm:$0xf]
    %v263 = vld [vmem:[#allocation2 + $0x144] sm:$0xff]
    %v264 = vld [vmem:[#allocation2 + $0x14c] sm:$0xf]
    %v265 = vld [vmem:[#allocation2 + $0x150] sm:$0xff]
    %v266 = vld [vmem:[#allocation2 + $0x158] sm:$0xf]
    %v267 = vld [vmem:[#allocation2 + $0x15c] sm:$0xff]
    %v268 = vld [vmem:[#allocation2 + $0x164] sm:$0xf]
    %v269 = vld [vmem:[#allocation2 + $0x168] sm:$0xff]
    %v270 = vld [vmem:[#allocation2 + $0x170] sm:$0xf]
    %v271 = vld [vmem:[#allocation2 + $0x174] sm:$0xff]
    %v272 = vld [vmem:[#allocation2 + $0x17c] sm:$0xf]
    %v273 = vld [vmem:[#allocation2 + $0x180] sm:$0xff]
    %v274 = vld [vmem:[#allocation2 + $0x188] sm:$0xf]
    %v275 = vld [vmem:[#allocation2 + $0x18c] sm:$0xff]
    %v276 = vld [vmem:[#allocation2 + $0x194] sm:$0xf]
    %v277 = vld [vmem:[#allocation2 + $0x198] sm:$0xff]
    %v278 = vld [vmem:[#allocation2 + $0x1a0] sm:$0xf]
    %v279 = vld [vmem:[#allocation2 + $0x1a4] sm:$0xff]
    %v280 = vld [vmem:[#allocation2 + $0x1ac] sm:$0xf]
    %v281 = vld [vmem:[#allocation2 + $0x1b0] sm:$0xff]
    %v282 = vld [vmem:[#allocation2 + $0x1b8] sm:$0xf]
    %v283 = vld [vmem:[#allocation2 + $0x1bc] sm:$0xff]
    %v284 = vld [vmem:[#allocation2 + $0x1c4] sm:$0xf]
    %v285 = vld [vmem:[#allocation2 + $0x1c8] sm:$0xff]
    %v286 = vld [vmem:[#allocation2 + $0x1d0] sm:$0xf]
    %v287 = vld [vmem:[#allocation2 + $0x1d4] sm:$0xff]
    %v288 = vld [vmem:[#allocation2 + $0x1dc] sm:$0xf]
    %v289 = vld [vmem:[#allocation2 + $0x1e0] sm:$0xff]
    %v290 = vld [vmem:[#allocation2 + $0x1e8] sm:$0xf]
    %v291 = vld [vmem:[#allocation2 + $0x1ec] sm:$0xff]
    %v292 = vld [vmem:[#allocation2 + $0x1f4] sm:$0xf]
    %v293 = vld [vmem:[#allocation2 + $0x1f8] sm:$0xff]
    %v294 = vld [vmem:[#allocation2 + $0x200] sm:$0xf]
    %v295 = vld [vmem:[#allocation2 + $0x204] sm:$0xff]
    %v296 = vld [vmem:[#allocation2 + $0x20c] sm:$0xf]
    %v297 = vld [vmem:[#allocation2 + $0x210] sm:$0xff]
    %v298 = vld [vmem:[#allocation2 + $0x218] sm:$0xf]
    %v299 = vld [vmem:[#allocation2 + $0x21c] sm:$0xff]
    %v300 = vld [vmem:[#allocation2 + $0x224] sm:$0xf]
    %v301 = vld [vmem:[#allocation2 + $0x228] sm:$0xff]
    %v302 = vld [vmem:[#allocation2 + $0x230] sm:$0xf]
    %v303 = vld [vmem:[#allocation2 + $0x234] sm:$0xff]
    %v304 = vld [vmem:[#allocation2 + $0x23c] sm:$0xf]
    %v305 = vld [vmem:[#allocation2 + $0x240] sm:$0xff]
    %v306 = vld [vmem:[#allocation2 + $0x248] sm:$0xf]
    %v307 = vld [vmem:[#allocation2 + $0x24c] sm:$0xff]
    %v308 = vld [vmem:[#allocation2 + $0x254] sm:$0xf]
    %v309 = vld [vmem:[#allocation2 + $0x258] sm:$0xff]
    %v310 = vld [vmem:[#allocation2 + $0x260] sm:$0xf]
    %v311 = vld [vmem:[#allocation2 + $0x264] sm:$0xff]
    %v312 = vld [vmem:[#allocation2 + $0x26c] sm:$0xf]
    %v313 = vld [vmem:[#allocation2 + $0x270] sm:$0xff]
    %v314 = vld [vmem:[#allocation2 + $0x278] sm:$0xf]
    %v315 = vld [vmem:[#allocation2 + $0x27c] sm:$0xff]
    %v316 = vld [vmem:[#allocation2 + $0x284] sm:$0xf]
    %v317 = vld [vmem:[#allocation2 + $0x288] sm:$0xff]
    %v318 = vld [vmem:[#allocation2 + $0x290] sm:$0xf]
    %v319 = vld [vmem:[#allocation2 + $0x294] sm:$0xff]
    %v320 = vld [vmem:[#allocation2 + $0x29c] sm:$0xf]
    %v321 = vld [vmem:[#allocation2 + $0x2a0] sm:$0xff]
    %v322 = vld [vmem:[#allocation2 + $0x2a8] sm:$0xf]
    %v323 = vld [vmem:[#allocation2 + $0x2ac] sm:$0xff]
    %v324 = vld [vmem:[#allocation2 + $0x2b4] sm:$0xf]
    %v325 = vld [vmem:[#allocation2 + $0x2b8] sm:$0xff]
    %v326 = vld [vmem:[#allocation2 + $0x2c0] sm:$0xf]
    %v327 = vld [vmem:[#allocation2 + $0x2c4] sm:$0xff]
    %v328 = vld [vmem:[#allocation2 + $0x2cc] sm:$0xf]
    %v329 = vld [vmem:[#allocation2 + $0x2d0] sm:$0xff]
    %v330 = vld [vmem:[#allocation2 + $0x2d8] sm:$0xf]
    %v331 = vld [vmem:[#allocation2 + $0x2dc] sm:$0xff]
    %v332 = vld [vmem:[#allocation2 + $0x2e4] sm:$0xf]
    %v333 = vld [vmem:[#allocation2 + $0x2e8] sm:$0xff]
    %v334 = vld [vmem:[#allocation2 + $0x2f0] sm:$0xf]
    %v335 = vld [vmem:[#allocation2 + $0x2f4] sm:$0xff]
    %v336 = vld [vmem:[#allocation2 + $0x2fc] sm:$0xf]
    %v465 = vunpack.c.l.b16 %v209
    %v466 = vunpack.c.h.b16 %v209
    %v467 = vunpack.c.l.b16 %v210
    %v468 = vunpack.c.l.b16 %v211
    %v469 = vunpack.c.h.b16 %v211
    %v470 = vunpack.c.l.b16 %v212
    %v471 = vunpack.c.l.b16 %v213
    %v472 = vunpack.c.h.b16 %v213
    %v473 = vunpack.c.l.b16 %v214
    %v474 = vunpack.c.l.b16 %v215
    %v475 = vunpack.c.h.b16 %v215
    %v476 = vunpack.c.l.b16 %v216
    %v477 = vunpack.c.l.b16 %v217
    %v478 = vunpack.c.h.b16 %v217
    %v479 = vunpack.c.l.b16 %v218
    %v480 = vunpack.c.l.b16 %v219
    %v481 = vunpack.c.h.b16 %v219
    %v482 = vunpack.c.l.b16 %v220
    %v483 = vunpack.c.l.b16 %v221
    %v484 = vunpack.c.h.b16 %v221
    %v485 = vunpack.c.l.b16 %v222
    %v486 = vunpack.c.l.b16 %v223
    %v487 = vunpack.c.h.b16 %v223
    %v488 = vunpack.c.l.b16 %v224
    %v489 = vunpack.c.l.b16 %v225
    %v490 = vunpack.c.h.b16 %v225
    %v491 = vunpack.c.l.b16 %v226
    %v492 = vunpack.c.l.b16 %v227
    %v493 = vunpack.c.h.b16 %v227
    %v494 = vunpack.c.l.b16 %v228
    %v495 = vunpack.c.l.b16 %v229
    %v496 = vunpack.c.h.b16 %v229
    %v497 = vunpack.c.l.b16 %v230
    %v498 = vunpack.c.l.b16 %v231
    %v499 = vunpack.c.h.b16 %v231
    %v500 = vunpack.c.l.b16 %v232
    %v501 = vunpack.c.l.b16 %v233
    %v502 = vunpack.c.h.b16 %v233
    %v503 = vunpack.c.l.b16 %v234
    %v504 = vunpack.c.l.b16 %v235
    %v505 = vunpack.c.h.b16 %v235
    %v506 = vunpack.c.l.b16 %v236
    %v507 = vunpack.c.l.b16 %v237
    %v508 = vunpack.c.h.b16 %v237
    %v509 = vunpack.c.l.b16 %v238
    %v510 = vunpack.c.l.b16 %v239
    %v511 = vunpack.c.h.b16 %v239
    %v512 = vunpack.c.l.b16 %v240
    %v513 = vunpack.c.l.b16 %v241
    %v514 = vunpack.c.h.b16 %v241
    %v515 = vunpack.c.l.b16 %v242
    %v516 = vunpack.c.l.b16 %v243
    %v517 = vunpack.c.h.b16 %v243
    %v518 = vunpack.c.l.b16 %v244
    %v519 = vunpack.c.l.b16 %v245
    %v520 = vunpack.c.h.b16 %v245
    %v521 = vunpack.c.l.b16 %v246
    %v522 = vunpack.c.l.b16 %v247
    %v523 = vunpack.c.h.b16 %v247
    %v524 = vunpack.c.l.b16 %v248
    %v525 = vunpack.c.l.b16 %v249
    %v526 = vunpack.c.h.b16 %v249
    %v527 = vunpack.c.l.b16 %v250
    %v528 = vunpack.c.l.b16 %v251
    %v529 = vunpack.c.h.b16 %v251
    %v530 = vunpack.c.l.b16 %v252
    %v531 = vunpack.c.l.b16 %v253
    %v532 = vunpack.c.h.b16 %v253
    %v533 = vunpack.c.l.b16 %v254
    %v534 = vunpack.c.l.b16 %v255
    %v535 = vunpack.c.h.b16 %v255
    %v536 = vunpack.c.l.b16 %v256
    %v537 = vunpack.c.l.b16 %v257
    %v538 = vunpack.c.h.b16 %v257
    %v539 = vunpack.c.l.b16 %v258
    %v540 = vunpack.c.l.b16 %v259
    %v541 = vunpack.c.h.b16 %v259
    %v542 = vunpack.c.l.b16 %v260
    %v543 = vunpack.c.l.b16 %v261
    %v544 = vunpack.c.h.b16 %v261
    %v545 = vunpack.c.l.b16 %v262
    %v546 = vunpack.c.l.b16 %v263
    %v547 = vunpack.c.h.b16 %v263
    %v548 = vunpack.c.l.b16 %v264
    %v549 = vunpack.c.l.b16 %v265
    %v550 = vunpack.c.h.b16 %v265
    %v551 = vunpack.c.l.b16 %v266
    %v552 = vunpack.c.l.b16 %v267
    %v553 = vunpack.c.h.b16 %v267
    %v554 = vunpack.c.l.b16 %v268
    %v555 = vunpack.c.l.b16 %v269
    %v556 = vunpack.c.h.b16 %v269
    %v557 = vunpack.c.l.b16 %v270
    %v558 = vunpack.c.l.b16 %v271
    %v559 = vunpack.c.h.b16 %v271
    %v560 = vunpack.c.l.b16 %v272
    %v561 = vunpack.c.l.b16 %v273
    %v562 = vunpack.c.h.b16 %v273
    %v563 = vunpack.c.l.b16 %v274
    %v564 = vunpack.c.l.b16 %v275
    %v565 = vunpack.c.h.b16 %v275
    %v566 = vunpack.c.l.b16 %v276
    %v567 = vunpack.c.l.b16 %v277
    %v568 = vunpack.c.h.b16 %v277
    %v569 = vunpack.c.l.b16 %v278
    %v570 = vunpack.c.l.b16 %v279
    %v571 = vunpack.c.h.b16 %v279
    %v572 = vunpack.c.l.b16 %v280
    %v573 = vunpack.c.l.b16 %v281
    %v574 = vunpack.c.h.b16 %v281
    %v575 = vunpack.c.l.b16 %v282
    %v576 = vunpack.c.l.b16 %v283
    %v577 = vunpack.c.h.b16 %v283
    %v578 = vunpack.c.l.b16 %v284
    %v579 = vunpack.c.l.b16 %v285
    %v580 = vunpack.c.h.b16 %v285
    %v581 = vunpack.c.l.b16 %v286
    %v582 = vunpack.c.l.b16 %v287
    %v583 = vunpack.c.h.b16 %v287
    %v584 = vunpack.c.l.b16 %v288
    %v585 = vunpack.c.l.b16 %v289
    %v586 = vunpack.c.h.b16 %v289
    %v587 = vunpack.c.l.b16 %v290
    %v588 = vunpack.c.l.b16 %v291
    %v589 = vunpack.c.h.b16 %v291
    %v590 = vunpack.c.l.b16 %v292
    %v591 = vunpack.c.l.b16 %v293
    %v592 = vunpack.c.h.b16 %v293
    %v593 = vunpack.c.l.b16 %v294
    %v594 = vunpack.c.l.b16 %v295
    %v595 = vunpack.c.h.b16 %v295
    %v596 = vunpack.c.l.b16 %v296
    %v597 = vunpack.c.l.b16 %v297
    %v598 = vunpack.c.h.b16 %v297
    %v599 = vunpack.c.l.b16 %v298
    %v600 = vunpack.c.l.b16 %v299
    %v601 = vunpack.c.h.b16 %v299
    %v602 = vunpack.c.l.b16 %v300
    %v603 = vunpack.c.l.b16 %v301
    %v604 = vunpack.c.h.b16 %v301
    %v605 = vunpack.c.l.b16 %v302
    %v606 = vunpack.c.l.b16 %v303
    %v607 = vunpack.c.h.b16 %v303
    %v608 = vunpack.c.l.b16 %v304
    %v609 = vunpack.c.l.b16 %v305
    %v610 = vunpack.c.h.b16 %v305
    %v611 = vunpack.c.l.b16 %v306
    %v612 = vunpack.c.l.b16 %v307
    %v613 = vunpack.c.h.b16 %v307
    %v614 = vunpack.c.l.b16 %v308
    %v615 = vunpack.c.l.b16 %v309
    %v616 = vunpack.c.h.b16 %v309
    %v617 = vunpack.c.l.b16 %v310
    %v618 = vunpack.c.l.b16 %v311
    %v619 = vunpack.c.h.b16 %v311
    %v620 = vunpack.c.l.b16 %v312
    %v621 = vunpack.c.l.b16 %v313
    %v622 = vunpack.c.h.b16 %v313
    %v623 = vunpack.c.l.b16 %v314
    %v624 = vunpack.c.l.b16 %v315
    %v625 = vunpack.c.h.b16 %v315
    %v626 = vunpack.c.l.b16 %v316
    %v627 = vunpack.c.l.b16 %v317
    %v628 = vunpack.c.h.b16 %v317
    %v629 = vunpack.c.l.b16 %v318
    %v630 = vunpack.c.l.b16 %v319
    %v631 = vunpack.c.h.b16 %v319
    %v632 = vunpack.c.l.b16 %v320
    %v633 = vunpack.c.l.b16 %v321
    %v634 = vunpack.c.h.b16 %v321
    %v635 = vunpack.c.l.b16 %v322
    %v636 = vunpack.c.l.b16 %v323
    %v637 = vunpack.c.h.b16 %v323
    %v638 = vunpack.c.l.b16 %v324
    %v639 = vunpack.c.l.b16 %v325
    %v640 = vunpack.c.h.b16 %v325
    %v641 = vunpack.c.l.b16 %v326
    %v642 = vunpack.c.l.b16 %v327
    %v643 = vunpack.c.h.b16 %v327
    %v644 = vunpack.c.l.b16 %v328
    %v645 = vunpack.c.l.b16 %v329
    %v646 = vunpack.c.h.b16 %v329
    %v647 = vunpack.c.l.b16 %v330
    %v648 = vunpack.c.l.b16 %v331
    %v649 = vunpack.c.h.b16 %v331
    %v650 = vunpack.c.l.b16 %v332
    %v651 = vunpack.c.l.b16 %v333
    %v652 = vunpack.c.h.b16 %v333
    %v653 = vunpack.c.l.b16 %v334
    %v654 = vunpack.c.l.b16 %v335
    %v655 = vunpack.c.h.b16 %v335
    %v656 = vunpack.c.l.b16 %v336
    %v657 = vpack.c.b16 %v468, %v465
    %v658 = vpack.c.b16 %v469, %v466
    %v659 = vpack.c.b16 %v470, %v467
    %v660 = vpack.c.b16 %v474, %v471
    %v661 = vpack.c.b16 %v475, %v472
    %v662 = vpack.c.b16 %v476, %v473
    %v663 = vpack.c.b16 %v480, %v477
    %v664 = vpack.c.b16 %v481, %v478
    %v665 = vpack.c.b16 %v482, %v479
    %v666 = vpack.c.b16 %v486, %v483
    %v667 = vpack.c.b16 %v487, %v484
    %v668 = vpack.c.b16 %v488, %v485
    %v669 = vpack.c.b16 %v492, %v489
    %v670 = vpack.c.b16 %v493, %v490
    %v671 = vpack.c.b16 %v494, %v491
    %v672 = vpack.c.b16 %v498, %v495
    %v673 = vpack.c.b16 %v499, %v496
    %v674 = vpack.c.b16 %v500, %v497
    %v675 = vpack.c.b16 %v504, %v501
    %v676 = vpack.c.b16 %v505, %v502
    %v677 = vpack.c.b16 %v506, %v503
    %v678 = vpack.c.b16 %v510, %v507
    %v679 = vpack.c.b16 %v511, %v508
    %v680 = vpack.c.b16 %v512, %v509
    %v681 = vpack.c.b16 %v516, %v513
    %v682 = vpack.c.b16 %v517, %v514
    %v683 = vpack.c.b16 %v518, %v515
    %v684 = vpack.c.b16 %v522, %v519
    %v685 = vpack.c.b16 %v523, %v520
    %v686 = vpack.c.b16 %v524, %v521
    %v687 = vpack.c.b16 %v528, %v525
    %v688 = vpack.c.b16 %v529, %v526
    %v689 = vpack.c.b16 %v530, %v527
    %v690 = vpack.c.b16 %v534, %v531
    %v691 = vpack.c.b16 %v535, %v532
    %v692 = vpack.c.b16 %v536, %v533
    %v693 = vpack.c.b16 %v540, %v537
    %v694 = vpack.c.b16 %v541, %v538
    %v695 = vpack.c.b16 %v542, %v539
    %v696 = vpack.c.b16 %v546, %v543
    %v697 = vpack.c.b16 %v547, %v544
    %v698 = vpack.c.b16 %v548, %v545
    %v699 = vpack.c.b16 %v552, %v549
    %v700 = vpack.c.b16 %v553, %v550
    %v701 = vpack.c.b16 %v554, %v551
    %v702 = vpack.c.b16 %v558, %v555
    %v703 = vpack.c.b16 %v559, %v556
    %v704 = vpack.c.b16 %v560, %v557
    %v705 = vpack.c.b16 %v564, %v561
    %v706 = vpack.c.b16 %v565, %v562
    %v707 = vpack.c.b16 %v566, %v563
    %v708 = vpack.c.b16 %v570, %v567
    %v709 = vpack.c.b16 %v571, %v568
    %v710 = vpack.c.b16 %v572, %v569
    %v711 = vpack.c.b16 %v576, %v573
    %v712 = vpack.c.b16 %v577, %v574
    %v713 = vpack.c.b16 %v578, %v575
    %v714 = vpack.c.b16 %v582, %v579
    %v715 = vpack.c.b16 %v583, %v580
    %v716 = vpack.c.b16 %v584, %v581
    %v717 = vpack.c.b16 %v588, %v585
    %v718 = vpack.c.b16 %v589, %v586
    %v719 = vpack.c.b16 %v590, %v587
    %v720 = vpack.c.b16 %v594, %v591
    %v721 = vpack.c.b16 %v595, %v592
    %v722 = vpack.c.b16 %v596, %v593
    %v723 = vpack.c.b16 %v600, %v597
    %v724 = vpack.c.b16 %v601, %v598
    %v725 = vpack.c.b16 %v602, %v599
    %v726 = vpack.c.b16 %v606, %v603
    %v727 = vpack.c.b16 %v607, %v604
    %v728 = vpack.c.b16 %v608, %v605
    %v729 = vpack.c.b16 %v612, %v609
    %v730 = vpack.c.b16 %v613, %v610
    %v731 = vpack.c.b16 %v614, %v611
    %v732 = vpack.c.b16 %v618, %v615
    %v733 = vpack.c.b16 %v619, %v616
    %v734 = vpack.c.b16 %v620, %v617
    %v735 = vpack.c.b16 %v624, %v621
    %v736 = vpack.c.b16 %v625, %v622
    %v737 = vpack.c.b16 %v626, %v623
    %v738 = vpack.c.b16 %v630, %v627
    %v739 = vpack.c.b16 %v631, %v628
    %v740 = vpack.c.b16 %v632, %v629
    %v741 = vpack.c.b16 %v636, %v633
    %v742 = vpack.c.b16 %v637, %v634
    %v743 = vpack.c.b16 %v638, %v635
    %v744 = vpack.c.b16 %v642, %v639
    %v745 = vpack.c.b16 %v643, %v640
    %v746 = vpack.c.b16 %v644, %v641
    %v747 = vpack.c.b16 %v648, %v645
    %v748 = vpack.c.b16 %v649, %v646
    %v749 = vpack.c.b16 %v650, %v647
    %v750 = vpack.c.b16 %v654, %v651
    %v751 = vpack.c.b16 %v655, %v652
    %v752 = vpack.c.b16 %v656, %v653
    %849 = vmatprep.subr.bf16.mxu0 %v679
    %850 = vmatpush1.bf16.msra.mxu0 %v678
    %851 = vmatprep.subr.bf16.mxu0 %v676
    %852 = vmatpush1.bf16.msra.mxu0 %v675
    %853 = vmatprep.subr.bf16.mxu0 %v673
    %854 = vmatpush1.bf16.msra.mxu0 %v672
    %855 = vmatprep.subr.bf16.mxu0 %v670
    %856 = vmatpush1.bf16.msra.mxu0 %v669
    %857 = vmatprep.subr.bf16.mxu0 %v667
    %858 = vmatpush1.bf16.msra.mxu0 %v666
    %859 = vmatprep.subr.bf16.mxu0 %v664
    %860 = vmatpush1.bf16.msra.mxu0 %v663
    %861 = vmatprep.subr.bf16.mxu0 %v661
    %862 = vmatpush1.bf16.msra.mxu0 %v660
    %863 = vmatprep.subr.bf16.mxu0 %v658
    %864 = vmatpush1.bf16.msra.mxu0 %v657
    %865 = vmatprep.subr.bf16.mxu0 %v703
    %866 = vmatpush2.bf16.msra.mxu0 %v702
    %867 = vmatprep.subr.bf16.mxu0 %v700
    %868 = vmatpush2.bf16.msra.mxu0 %v699
    %869 = vmatprep.subr.bf16.mxu0 %v697
    %870 = vmatpush2.bf16.msra.mxu0 %v696
    %871 = vmatprep.subr.bf16.mxu0 %v694
    %872 = vmatpush2.bf16.msra.mxu0 %v693
    %873 = vmatprep.subr.bf16.mxu0 %v691
    %874 = vmatpush2.bf16.msra.mxu0 %v690
    %875 = vmatprep.subr.bf16.mxu0 %v688
    %876 = vmatpush2.bf16.msra.mxu0 %v687
    %877 = vmatprep.subr.bf16.mxu0 %v685
    %878 = vmatpush2.bf16.msra.mxu0 %v684
    %879 = vmatprep.subr.bf16.mxu0 %v682
    %880 = vmatpush2.bf16.msra.mxu0 %v681
    %881 = vmatprep.mubr.bf16.mxu0 %v206
    %882 = vmatmul.mubr.bf16.gmra.mxu0 %v205
    %v883 = vpop.f32.mrf.mxu0
    %v884 = vadd.f32 0.0, %v883
    %v885 = vpop.f32.mrf.mxu0
    %v886 = vadd.f32 0.0, %v885
    %v887 = vpop.f32.mrf.mxu0
    %v888 = vadd.f32 0.0, %v887
    %v889 = vpop.f32.mrf.mxu0
    %v890 = vadd.f32 0.0, %v889
    %891 = vdwg.mxu0
    %892 = vmatprep.subr.bf16.mxu0 %v727
    %893 = vmatpush1.bf16.msra.mxu0 %v726
    %894 = vmatprep.subr.bf16.mxu0 %v724
    %895 = vmatpush1.bf16.msra.mxu0 %v723
    %896 = vmatprep.subr.bf16.mxu0 %v721
    %897 = vmatpush1.bf16.msra.mxu0 %v720
    %898 = vmatprep.subr.bf16.mxu0 %v718
    %899 = vmatpush1.bf16.msra.mxu0 %v717
    %900 = vmatprep.subr.bf16.mxu0 %v715
    %901 = vmatpush1.bf16.msra.mxu0 %v714
    %902 = vmatprep.subr.bf16.mxu0 %v712
    %903 = vmatpush1.bf16.msra.mxu0 %v711
    %904 = vmatprep.subr.bf16.mxu0 %v709
    %905 = vmatpush1.bf16.msra.mxu0 %v708
    %906 = vmatprep.subr.bf16.mxu0 %v706
    %907 = vmatpush1.bf16.msra.mxu0 %v705
    %908 = vmatprep.subr.bf16.mxu0 %v751
    %909 = vmatpush2.bf16.msra.mxu0 %v750
    %910 = vmatprep.subr.bf16.mxu0 %v748
    %911 = vmatpush2.bf16.msra.mxu0 %v747
    %912 = vmatprep.subr.bf16.mxu0 %v745
    %913 = vmatpush2.bf16.msra.mxu0 %v744
    %914 = vmatprep.subr.bf16.mxu0 %v742
    %915 = vmatpush2.bf16.msra.mxu0 %v741
    %916 = vmatprep.subr.bf16.mxu0 %v739
    %917 = vmatpush2.bf16.msra.mxu0 %v738
    %918 = vmatprep.subr.bf16.mxu0 %v736
    %919 = vmatpush2.bf16.msra.mxu0 %v735
    %920 = vmatprep.subr.bf16.mxu0 %v733
    %921 = vmatpush2.bf16.msra.mxu0 %v732
    %922 = vmatprep.subr.bf16.mxu0 %v730
    %923 = vmatpush2.bf16.msra.mxu0 %v729
    %924 = vmatprep.mubr.bf16.mxu0 %v208
    %925 = vmatmul.mubr.bf16.gmra.mxu0 %v207
    %v926 = vpop.f32.mrf.mxu0
    %v927 = vadd.f32 %v884, %v926
    %v928 = vpop.f32.mrf.mxu0
    %v929 = vadd.f32 %v886, %v928
    %v930 = vpop.f32.mrf.mxu0
    %v931 = vadd.f32 %v888, %v930
    %v932 = vpop.f32.mrf.mxu0
    %v933 = vadd.f32 %v890, %v932
    %934 = vdwg.mxu0
    %935 = vmatprep.subr.bf16.mxu0 0
    %936 = vmatpush1.bf16.msra.mxu0 %v680
    %937 = vmatprep.subr.bf16.mxu0 0
    %938 = vmatpush1.bf16.msra.mxu0 %v677
    %939 = vmatprep.subr.bf16.mxu0 0
    %940 = vmatpush1.bf16.msra.mxu0 %v674
    %941 = vmatprep.subr.bf16.mxu0 0
    %942 = vmatpush1.bf16.msra.mxu0 %v671
    %943 = vmatprep.subr.bf16.mxu0 0
    %944 = vmatpush1.bf16.msra.mxu0 %v668
    %945 = vmatprep.subr.bf16.mxu0 0
    %946 = vmatpush1.bf16.msra.mxu0 %v665
    %947 = vmatprep.subr.bf16.mxu0 0
    %948 = vmatpush1.bf16.msra.mxu0 %v662
    %949 = vmatprep.subr.bf16.mxu0 0
    %950 = vmatpush1.bf16.msra.mxu0 %v659
    %951 = vmatprep.subr.bf16.mxu0 0
    %952 = vmatpush2.bf16.msra.mxu0 %v704
    %953 = vmatprep.subr.bf16.mxu0 0
    %954 = vmatpush2.bf16.msra.mxu0 %v701
    %955 = vmatprep.subr.bf16.mxu0 0
    %956 = vmatpush2.bf16.msra.mxu0 %v698
    %957 = vmatprep.subr.bf16.mxu0 0
    %958 = vmatpush2.bf16.msra.mxu0 %v695
    %959 = vmatprep.subr.bf16.mxu0 0
    %960 = vmatpush2.bf16.msra.mxu0 %v692
    %961 = vmatprep.subr.bf16.mxu0 0
    %962 = vmatpush2.bf16.msra.mxu0 %v689
    %963 = vmatprep.subr.bf16.mxu0 0
    %964 = vmatpush2.bf16.msra.mxu0 %v686
    %965 = vmatprep.subr.bf16.mxu0 0
    %966 = vmatpush2.bf16.msra.mxu0 %v683
    %967 = vmatprep.mubr.bf16.mxu0 %v206
    %968 = vmatmul.mubr.bf16.gmra.mxu0 %v205
    %v969 = vpop.f32.mrf.mxu0
    %v970 = vadd.f32 0.0, %v969
    %v971 = vpop.f32.mrf.mxu0
    %v972 = vpop.f32.mrf.mxu0
    %v973 = vadd.f32 0.0, %v972
    %v974 = vpop.f32.mrf.mxu0
    %975 = vdwg.mxu0
    %976 = vmatprep.subr.bf16.mxu0 0
    %977 = vmatpush1.bf16.msra.mxu0 %v728
    %978 = vmatprep.subr.bf16.mxu0 0
    %979 = vmatpush1.bf16.msra.mxu0 %v725
    %980 = vmatprep.subr.bf16.mxu0 0
    %981 = vmatpush1.bf16.msra.mxu0 %v722
    %982 = vmatprep.subr.bf16.mxu0 0
    %983 = vmatpush1.bf16.msra.mxu0 %v719
    %984 = vmatprep.subr.bf16.mxu0 0
    %985 = vmatpush1.bf16.msra.mxu0 %v716
    %986 = vmatprep.subr.bf16.mxu0 0
    %987 = vmatpush1.bf16.msra.mxu0 %v713
    %988 = vmatprep.subr.bf16.mxu0 0
    %989 = vmatpush1.bf16.msra.mxu0 %v710
    %990 = vmatprep.subr.bf16.mxu0 0
    %991 = vmatpush1.bf16.msra.mxu0 %v707
    %992 = vmatprep.subr.bf16.mxu0 0
    %993 = vmatpush2.bf16.msra.mxu0 %v752
    %994 = vmatprep.subr.bf16.mxu0 0
    %995 = vmatpush2.bf16.msra.mxu0 %v749
    %996 = vmatprep.subr.bf16.mxu0 0
    %997 = vmatpush2.bf16.msra.mxu0 %v746
    %998 = vmatprep.subr.bf16.mxu0 0
    %999 = vmatpush2.bf16.msra.mxu0 %v743
    %1000 = vmatprep.subr.bf16.mxu0 0
    %1001 = vmatpush2.bf16.msra.mxu0 %v740
    %1002 = vmatprep.subr.bf16.mxu0 0
    %1003 = vmatpush2.bf16.msra.mxu0 %v737
    %1004 = vmatprep.subr.bf16.mxu0 0
    %1005 = vmatpush2.bf16.msra.mxu0 %v734
    %1006 = vmatprep.subr.bf16.mxu0 0
    %1007 = vmatpush2.bf16.msra.mxu0 %v731
    %1008 = vmatprep.mubr.bf16.mxu0 %v208
    %1009 = vmatmul.mubr.bf16.gmra.mxu0 %v207
    %v1010 = vpop.f32.mrf.mxu0
    %v1011 = vadd.f32 %v970, %v1010
    %v1012 = vpop.f32.mrf.mxu0
    %v1013 = vpop.f32.mrf.mxu0
    %v1014 = vadd.f32 %v973, %v1013
    %v1015 = vpop.f32.mrf.mxu0
    %1016 = vdwg.mxu0
    %v1017 = vmax.f32 %v927, 0.0
    %v1018 = vmax.f32 %v929, 0.0
    %v1019 = vmax.f32 %v1011, 0.0
    %v1020 = vmax.f32 %v931, 0.0
    %v1021 = vmax.f32 %v933, 0.0
    %v1022 = vmax.f32 %v1014, 0.0
    %v1023 = vpack.c.bf16 %v1020, %v1017
    %v1024 = vpack.c.bf16 %v1021, %v1018
    %v1025 = vpack.c.bf16 %v1022, %v1019
    %v1026 = vld [vmem:[#allocation4] sm:$0xff]
    %v1027 = vld [vmem:[#allocation4 + $0x8] sm:$0xf]
    %v1028 = vld [vmem:[#allocation4 + $0xc] sm:$0xff]
    %v1029 = vld [vmem:[#allocation4 + $0x14] sm:$0xf]
    %v1030 = vld [vmem:[#allocation4 + $0x18] sm:$0xff]
    %v1031 = vld [vmem:[#allocation4 + $0x20] sm:$0xf]
    %v1032 = vld [vmem:[#allocation4 + $0x24] sm:$0xff]
    %v1033 = vld [vmem:[#allocation4 + $0x2c] sm:$0xf]
    %v1034 = vld [vmem:[#allocation4 + $0x30] sm:$0xff]
    %v1035 = vld [vmem:[#allocation4 + $0x38] sm:$0xf]
    %v1036 = vld [vmem:[#allocation4 + $0x3c] sm:$0xff]
    %v1037 = vld [vmem:[#allocation4 + $0x44] sm:$0xf]
    %v1038 = vld [vmem:[#allocation4 + $0x48] sm:$0xff]
    %v1039 = vld [vmem:[#allocation4 + $0x50] sm:$0xf]
    %v1040 = vld [vmem:[#allocation4 + $0x54] sm:$0xff]
    %v1041 = vld [vmem:[#allocation4 + $0x5c] sm:$0xf]
    %v1042 = vld [vmem:[#allocation4 + $0x60] sm:$0xff]
    %v1043 = vld [vmem:[#allocation4 + $0x68] sm:$0xf]
    %v1044 = vld [vmem:[#allocation4 + $0x6c] sm:$0xff]
    %v1045 = vld [vmem:[#allocation4 + $0x74] sm:$0xf]
    %v1046 = vld [vmem:[#allocation4 + $0x78] sm:$0xff]
    %v1047 = vld [vmem:[#allocation4 + $0x80] sm:$0xf]
    %v1048 = vld [vmem:[#allocation4 + $0x84] sm:$0xff]
    %v1049 = vld [vmem:[#allocation4 + $0x8c] sm:$0xf]
    %v1050 = vld [vmem:[#allocation4 + $0x90] sm:$0xff]
    %v1051 = vld [vmem:[#allocation4 + $0x98] sm:$0xf]
    %v1052 = vld [vmem:[#allocation4 + $0x9c] sm:$0xff]
    %v1053 = vld [vmem:[#allocation4 + $0xa4] sm:$0xf]
    %v1054 = vld [vmem:[#allocation4 + $0xa8] sm:$0xff]
    %v1055 = vld [vmem:[#allocation4 + $0xb0] sm:$0xf]
    %v1056 = vld [vmem:[#allocation4 + $0xb4] sm:$0xff]
    %v1057 = vld [vmem:[#allocation4 + $0xbc] sm:$0xf]
    %v1058 = vld [vmem:[#allocation4 + $0xc0] sm:$0xff]
    %v1059 = vld [vmem:[#allocation4 + $0xc8] sm:$0xf]
    %v1060 = vld [vmem:[#allocation4 + $0xcc] sm:$0xff]
    %v1061 = vld [vmem:[#allocation4 + $0xd4] sm:$0xf]
    %v1062 = vld [vmem:[#allocation4 + $0xd8] sm:$0xff]
    %v1063 = vld [vmem:[#allocation4 + $0xe0] sm:$0xf]
    %v1064 = vld [vmem:[#allocation4 + $0xe4] sm:$0xff]
    %v1065 = vld [vmem:[#allocation4 + $0xec] sm:$0xf]
    %v1066 = vld [vmem:[#allocation4 + $0xf0] sm:$0xff]
    %v1067 = vld [vmem:[#allocation4 + $0xf8] sm:$0xf]
    %v1068 = vld [vmem:[#allocation4 + $0xfc] sm:$0xff]
    %v1069 = vld [vmem:[#allocation4 + $0x104] sm:$0xf]
    %v1070 = vld [vmem:[#allocation4 + $0x108] sm:$0xff]
    %v1071 = vld [vmem:[#allocation4 + $0x110] sm:$0xf]
    %v1072 = vld [vmem:[#allocation4 + $0x114] sm:$0xff]
    %v1073 = vld [vmem:[#allocation4 + $0x11c] sm:$0xf]
    %v1074 = vld [vmem:[#allocation4 + $0x120] sm:$0xff]
    %v1075 = vld [vmem:[#allocation4 + $0x128] sm:$0xf]
    %v1076 = vld [vmem:[#allocation4 + $0x12c] sm:$0xff]
    %v1077 = vld [vmem:[#allocation4 + $0x134] sm:$0xf]
    %v1078 = vld [vmem:[#allocation4 + $0x138] sm:$0xff]
    %v1079 = vld [vmem:[#allocation4 + $0x140] sm:$0xf]
    %v1080 = vld [vmem:[#allocation4 + $0x144] sm:$0xff]
    %v1081 = vld [vmem:[#allocation4 + $0x14c] sm:$0xf]
    %v1082 = vld [vmem:[#allocation4 + $0x150] sm:$0xff]
    %v1083 = vld [vmem:[#allocation4 + $0x158] sm:$0xf]
    %v1084 = vld [vmem:[#allocation4 + $0x15c] sm:$0xff]
    %v1085 = vld [vmem:[#allocation4 + $0x164] sm:$0xf]
    %v1086 = vld [vmem:[#allocation4 + $0x168] sm:$0xff]
    %v1087 = vld [vmem:[#allocation4 + $0x170] sm:$0xf]
    %v1088 = vld [vmem:[#allocation4 + $0x174] sm:$0xff]
    %v1089 = vld [vmem:[#allocation4 + $0x17c] sm:$0xf]
    %v1090 = vld [vmem:[#allocation4 + $0x180] sm:$0xff]
    %v1091 = vld [vmem:[#allocation4 + $0x188] sm:$0xf]
    %v1092 = vld [vmem:[#allocation4 + $0x18c] sm:$0xff]
    %v1093 = vld [vmem:[#allocation4 + $0x194] sm:$0xf]
    %v1094 = vld [vmem:[#allocation4 + $0x198] sm:$0xff]
    %v1095 = vld [vmem:[#allocation4 + $0x1a0] sm:$0xf]
    %v1096 = vld [vmem:[#allocation4 + $0x1a4] sm:$0xff]
    %v1097 = vld [vmem:[#allocation4 + $0x1ac] sm:$0xf]
    %v1098 = vld [vmem:[#allocation4 + $0x1b0] sm:$0xff]
    %v1099 = vld [vmem:[#allocation4 + $0x1b8] sm:$0xf]
    %v1100 = vld [vmem:[#allocation4 + $0x1bc] sm:$0xff]
    %v1101 = vld [vmem:[#allocation4 + $0x1c4] sm:$0xf]
    %v1102 = vld [vmem:[#allocation4 + $0x1c8] sm:$0xff]
    %v1103 = vld [vmem:[#allocation4 + $0x1d0] sm:$0xf]
    %v1104 = vld [vmem:[#allocation4 + $0x1d4] sm:$0xff]
    %v1105 = vld [vmem:[#allocation4 + $0x1dc] sm:$0xf]
    %v1106 = vld [vmem:[#allocation4 + $0x1e0] sm:$0xff]
    %v1107 = vld [vmem:[#allocation4 + $0x1e8] sm:$0xf]
    %v1108 = vld [vmem:[#allocation4 + $0x1ec] sm:$0xff]
    %v1109 = vld [vmem:[#allocation4 + $0x1f4] sm:$0xf]
    %v1110 = vld [vmem:[#allocation4 + $0x1f8] sm:$0xff]
    %v1111 = vld [vmem:[#allocation4 + $0x200] sm:$0xf]
    %v1112 = vld [vmem:[#allocation4 + $0x204] sm:$0xff]
    %v1113 = vld [vmem:[#allocation4 + $0x20c] sm:$0xf]
    %v1114 = vld [vmem:[#allocation4 + $0x210] sm:$0xff]
    %v1115 = vld [vmem:[#allocation4 + $0x218] sm:$0xf]
    %v1116 = vld [vmem:[#allocation4 + $0x21c] sm:$0xff]
    %v1117 = vld [vmem:[#allocation4 + $0x224] sm:$0xf]
    %v1118 = vld [vmem:[#allocation4 + $0x228] sm:$0xff]
    %v1119 = vld [vmem:[#allocation4 + $0x230] sm:$0xf]
    %v1120 = vld [vmem:[#allocation4 + $0x234] sm:$0xff]
    %v1121 = vld [vmem:[#allocation4 + $0x23c] sm:$0xf]
    %v1218 = vunpack.c.l.b16 %v1026
    %v1219 = vunpack.c.h.b16 %v1026
    %v1220 = vunpack.c.l.b16 %v1027
    %v1221 = vunpack.c.l.b16 %v1028
    %v1222 = vunpack.c.h.b16 %v1028
    %v1223 = vunpack.c.l.b16 %v1029
    %v1224 = vunpack.c.l.b16 %v1030
    %v1225 = vunpack.c.h.b16 %v1030
    %v1226 = vunpack.c.l.b16 %v1031
    %v1227 = vunpack.c.l.b16 %v1032
    %v1228 = vunpack.c.h.b16 %v1032
    %v1229 = vunpack.c.l.b16 %v1033
    %v1230 = vunpack.c.l.b16 %v1034
    %v1231 = vunpack.c.h.b16 %v1034
    %v1232 = vunpack.c.l.b16 %v1035
    %v1233 = vunpack.c.l.b16 %v1036
    %v1234 = vunpack.c.h.b16 %v1036
    %v1235 = vunpack.c.l.b16 %v1037
    %v1236 = vunpack.c.l.b16 %v1038
    %v1237 = vunpack.c.h.b16 %v1038
    %v1238 = vunpack.c.l.b16 %v1039
    %v1239 = vunpack.c.l.b16 %v1040
    %v1240 = vunpack.c.h.b16 %v1040
    %v1241 = vunpack.c.l.b16 %v1041
    %v1242 = vunpack.c.l.b16 %v1042
    %v1243 = vunpack.c.h.b16 %v1042
    %v1244 = vunpack.c.l.b16 %v1043
    %v1245 = vunpack.c.l.b16 %v1044
    %v1246 = vunpack.c.h.b16 %v1044
    %v1247 = vunpack.c.l.b16 %v1045
    %v1248 = vunpack.c.l.b16 %v1046
    %v1249 = vunpack.c.h.b16 %v1046
    %v1250 = vunpack.c.l.b16 %v1047
    %v1251 = vunpack.c.l.b16 %v1048
    %v1252 = vunpack.c.h.b16 %v1048
    %v1253 = vunpack.c.l.b16 %v1049
    %v1254 = vunpack.c.l.b16 %v1050
    %v1255 = vunpack.c.h.b16 %v1050
    %v1256 = vunpack.c.l.b16 %v1051
    %v1257 = vunpack.c.l.b16 %v1052
    %v1258 = vunpack.c.h.b16 %v1052
    %v1259 = vunpack.c.l.b16 %v1053
    %v1260 = vunpack.c.l.b16 %v1054
    %v1261 = vunpack.c.h.b16 %v1054
    %v1262 = vunpack.c.l.b16 %v1055
    %v1263 = vunpack.c.l.b16 %v1056
    %v1264 = vunpack.c.h.b16 %v1056
    %v1265 = vunpack.c.l.b16 %v1057
    %v1266 = vunpack.c.l.b16 %v1058
    %v1267 = vunpack.c.h.b16 %v1058
    %v1268 = vunpack.c.l.b16 %v1059
    %v1269 = vunpack.c.l.b16 %v1060
    %v1270 = vunpack.c.h.b16 %v1060
    %v1271 = vunpack.c.l.b16 %v1061
    %v1272 = vunpack.c.l.b16 %v1062
    %v1273 = vunpack.c.h.b16 %v1062
    %v1274 = vunpack.c.l.b16 %v1063
    %v1275 = vunpack.c.l.b16 %v1064
    %v1276 = vunpack.c.h.b16 %v1064
    %v1277 = vunpack.c.l.b16 %v1065
    %v1278 = vunpack.c.l.b16 %v1066
    %v1279 = vunpack.c.h.b16 %v1066
    %v1280 = vunpack.c.l.b16 %v1067
    %v1281 = vunpack.c.l.b16 %v1068
    %v1282 = vunpack.c.h.b16 %v1068
    %v1283 = vunpack.c.l.b16 %v1069
    %v1284 = vunpack.c.l.b16 %v1070
    %v1285 = vunpack.c.h.b16 %v1070
    %v1286 = vunpack.c.l.b16 %v1071
    %v1287 = vunpack.c.l.b16 %v1072
    %v1288 = vunpack.c.h.b16 %v1072
    %v1289 = vunpack.c.l.b16 %v1073
    %v1290 = vunpack.c.l.b16 %v1074
    %v1291 = vunpack.c.h.b16 %v1074
    %v1292 = vunpack.c.l.b16 %v1075
    %v1293 = vunpack.c.l.b16 %v1076
    %v1294 = vunpack.c.h.b16 %v1076
    %v1295 = vunpack.c.l.b16 %v1077
    %v1296 = vunpack.c.l.b16 %v1078
    %v1297 = vunpack.c.h.b16 %v1078
    %v1298 = vunpack.c.l.b16 %v1079
    %v1299 = vunpack.c.l.b16 %v1080
    %v1300 = vunpack.c.h.b16 %v1080
    %v1301 = vunpack.c.l.b16 %v1081
    %v1302 = vunpack.c.l.b16 %v1082
    %v1303 = vunpack.c.h.b16 %v1082
    %v1304 = vunpack.c.l.b16 %v1083
    %v1305 = vunpack.c.l.b16 %v1084
    %v1306 = vunpack.c.h.b16 %v1084
    %v1307 = vunpack.c.l.b16 %v1085
    %v1308 = vunpack.c.l.b16 %v1086
    %v1309 = vunpack.c.h.b16 %v1086
    %v1310 = vunpack.c.l.b16 %v1087
    %v1311 = vunpack.c.l.b16 %v1088
    %v1312 = vunpack.c.h.b16 %v1088
    %v1313 = vunpack.c.l.b16 %v1089
    %v1314 = vunpack.c.l.b16 %v1090
    %v1315 = vunpack.c.h.b16 %v1090
    %v1316 = vunpack.c.l.b16 %v1091
    %v1317 = vunpack.c.l.b16 %v1092
    %v1318 = vunpack.c.h.b16 %v1092
    %v1319 = vunpack.c.l.b16 %v1093
    %v1320 = vunpack.c.l.b16 %v1094
    %v1321 = vunpack.c.h.b16 %v1094
    %v1322 = vunpack.c.l.b16 %v1095
    %v1323 = vunpack.c.l.b16 %v1096
    %v1324 = vunpack.c.h.b16 %v1096
    %v1325 = vunpack.c.l.b16 %v1097
    %v1326 = vunpack.c.l.b16 %v1098
    %v1327 = vunpack.c.h.b16 %v1098
    %v1328 = vunpack.c.l.b16 %v1099
    %v1329 = vunpack.c.l.b16 %v1100
    %v1330 = vunpack.c.h.b16 %v1100
    %v1331 = vunpack.c.l.b16 %v1101
    %v1332 = vunpack.c.l.b16 %v1102
    %v1333 = vunpack.c.h.b16 %v1102
    %v1334 = vunpack.c.l.b16 %v1103
    %v1335 = vunpack.c.l.b16 %v1104
    %v1336 = vunpack.c.h.b16 %v1104
    %v1337 = vunpack.c.l.b16 %v1105
    %v1338 = vunpack.c.l.b16 %v1106
    %v1339 = vunpack.c.h.b16 %v1106
    %v1340 = vunpack.c.l.b16 %v1107
    %v1341 = vunpack.c.l.b16 %v1108
    %v1342 = vunpack.c.h.b16 %v1108
    %v1343 = vunpack.c.l.b16 %v1109
    %v1344 = vunpack.c.l.b16 %v1110
    %v1345 = vunpack.c.h.b16 %v1110
    %v1346 = vunpack.c.l.b16 %v1111
    %v1347 = vunpack.c.l.b16 %v1112
    %v1348 = vunpack.c.h.b16 %v1112
    %v1349 = vunpack.c.l.b16 %v1113
    %v1350 = vunpack.c.l.b16 %v1114
    %v1351 = vunpack.c.h.b16 %v1114
    %v1352 = vunpack.c.l.b16 %v1115
    %v1353 = vunpack.c.l.b16 %v1116
    %v1354 = vunpack.c.h.b16 %v1116
    %v1355 = vunpack.c.l.b16 %v1117
    %v1356 = vunpack.c.l.b16 %v1118
    %v1357 = vunpack.c.h.b16 %v1118
    %v1358 = vunpack.c.l.b16 %v1119
    %v1359 = vunpack.c.l.b16 %v1120
    %v1360 = vunpack.c.h.b16 %v1120
    %v1361 = vunpack.c.l.b16 %v1121
    %v1362 = vpack.c.b16 %v1221, %v1218
    %v1363 = vpack.c.b16 %v1222, %v1219
    %v1364 = vpack.c.b16 %v1223, %v1220
    %v1365 = vpack.c.b16 %v1227, %v1224
    %v1366 = vpack.c.b16 %v1228, %v1225
    %v1367 = vpack.c.b16 %v1229, %v1226
    %v1368 = vpack.c.b16 %v1233, %v1230
    %v1369 = vpack.c.b16 %v1234, %v1231
    %v1370 = vpack.c.b16 %v1235, %v1232
    %v1371 = vpack.c.b16 %v1239, %v1236
    %v1372 = vpack.c.b16 %v1240, %v1237
    %v1373 = vpack.c.b16 %v1241, %v1238
    %v1374 = vpack.c.b16 %v1245, %v1242
    %v1375 = vpack.c.b16 %v1246, %v1243
    %v1376 = vpack.c.b16 %v1247, %v1244
    %v1377 = vpack.c.b16 %v1251, %v1248
    %v1378 = vpack.c.b16 %v1252, %v1249
    %v1379 = vpack.c.b16 %v1253, %v1250
    %v1380 = vpack.c.b16 %v1257, %v1254
    %v1381 = vpack.c.b16 %v1258, %v1255
    %v1382 = vpack.c.b16 %v1259, %v1256
    %v1383 = vpack.c.b16 %v1263, %v1260
    %v1384 = vpack.c.b16 %v1264, %v1261
    %v1385 = vpack.c.b16 %v1265, %v1262
    %v1386 = vpack.c.b16 %v1269, %v1266
    %v1387 = vpack.c.b16 %v1270, %v1267
    %v1388 = vpack.c.b16 %v1271, %v1268
    %v1389 = vpack.c.b16 %v1275, %v1272
    %v1390 = vpack.c.b16 %v1276, %v1273
    %v1391 = vpack.c.b16 %v1277, %v1274
    %v1392 = vpack.c.b16 %v1281, %v1278
    %v1393 = vpack.c.b16 %v1282, %v1279
    %v1394 = vpack.c.b16 %v1283, %v1280
    %v1395 = vpack.c.b16 %v1287, %v1284
    %v1396 = vpack.c.b16 %v1288, %v1285
    %v1397 = vpack.c.b16 %v1289, %v1286
    %v1398 = vpack.c.b16 %v1293, %v1290
    %v1399 = vpack.c.b16 %v1294, %v1291
    %v1400 = vpack.c.b16 %v1295, %v1292
    %v1401 = vpack.c.b16 %v1299, %v1296
    %v1402 = vpack.c.b16 %v1300, %v1297
    %v1403 = vpack.c.b16 %v1301, %v1298
    %v1404 = vpack.c.b16 %v1305, %v1302
    %v1405 = vpack.c.b16 %v1306, %v1303
    %v1406 = vpack.c.b16 %v1307, %v1304
    %v1407 = vpack.c.b16 %v1311, %v1308
    %v1408 = vpack.c.b16 %v1312, %v1309
    %v1409 = vpack.c.b16 %v1313, %v1310
    %v1410 = vpack.c.b16 %v1317, %v1314
    %v1411 = vpack.c.b16 %v1318, %v1315
    %v1412 = vpack.c.b16 %v1319, %v1316
    %v1413 = vpack.c.b16 %v1323, %v1320
    %v1414 = vpack.c.b16 %v1324, %v1321
    %v1415 = vpack.c.b16 %v1325, %v1322
    %v1416 = vpack.c.b16 %v1329, %v1326
    %v1417 = vpack.c.b16 %v1330, %v1327
    %v1418 = vpack.c.b16 %v1331, %v1328
    %v1419 = vpack.c.b16 %v1335, %v1332
    %v1420 = vpack.c.b16 %v1336, %v1333
    %v1421 = vpack.c.b16 %v1337, %v1334
    %v1422 = vpack.c.b16 %v1341, %v1338
    %v1423 = vpack.c.b16 %v1342, %v1339
    %v1424 = vpack.c.b16 %v1343, %v1340
    %v1425 = vpack.c.b16 %v1347, %v1344
    %v1426 = vpack.c.b16 %v1348, %v1345
    %v1427 = vpack.c.b16 %v1349, %v1346
    %v1428 = vpack.c.b16 %v1353, %v1350
    %v1429 = vpack.c.b16 %v1354, %v1351
    %v1430 = vpack.c.b16 %v1355, %v1352
    %v1431 = vpack.c.b16 %v1359, %v1356
    %v1432 = vpack.c.b16 %v1360, %v1357
    %v1433 = vpack.c.b16 %v1361, %v1358
    %1506 = vmatprep.subr.bf16.mxu0 %v1384
    %1507 = vmatpush1.bf16.msra.mxu0 %v1383
    %1508 = vmatprep.subr.bf16.mxu0 %v1381
    %1509 = vmatpush1.bf16.msra.mxu0 %v1380
    %1510 = vmatprep.subr.bf16.mxu0 %v1378
    %1511 = vmatpush1.bf16.msra.mxu0 %v1377
    %1512 = vmatprep.subr.bf16.mxu0 %v1375
    %1513 = vmatpush1.bf16.msra.mxu0 %v1374
    %1514 = vmatprep.subr.bf16.mxu0 %v1372
    %1515 = vmatpush1.bf16.msra.mxu0 %v1371
    %1516 = vmatprep.subr.bf16.mxu0 %v1369
    %1517 = vmatpush1.bf16.msra.mxu0 %v1368
    %1518 = vmatprep.subr.bf16.mxu0 %v1366
    %1519 = vmatpush1.bf16.msra.mxu0 %v1365
    %1520 = vmatprep.subr.bf16.mxu0 %v1363
    %1521 = vmatpush1.bf16.msra.mxu0 %v1362
    %1522 = vmatprep.subr.bf16.mxu0 %v1408
    %1523 = vmatpush2.bf16.msra.mxu0 %v1407
    %1524 = vmatprep.subr.bf16.mxu0 %v1405
    %1525 = vmatpush2.bf16.msra.mxu0 %v1404
    %1526 = vmatprep.subr.bf16.mxu0 %v1402
    %1527 = vmatpush2.bf16.msra.mxu0 %v1401
    %1528 = vmatprep.subr.bf16.mxu0 %v1399
    %1529 = vmatpush2.bf16.msra.mxu0 %v1398
    %1530 = vmatprep.subr.bf16.mxu0 %v1396
    %1531 = vmatpush2.bf16.msra.mxu0 %v1395
    %1532 = vmatprep.subr.bf16.mxu0 %v1393
    %1533 = vmatpush2.bf16.msra.mxu0 %v1392
    %1534 = vmatprep.subr.bf16.mxu0 %v1390
    %1535 = vmatpush2.bf16.msra.mxu0 %v1389
    %1536 = vmatprep.subr.bf16.mxu0 %v1387
    %1537 = vmatpush2.bf16.msra.mxu0 %v1386
    %1538 = vmatprep.mubr.bf16.mxu0 %v1024
    %1539 = vmatmul.mubr.bf16.gmra.mxu0 %v1023
    %v1540 = vpop.f32.mrf.mxu0
    %v1541 = vadd.f32 0.0, %v1540
    %v1542 = vpop.f32.mrf.mxu0
    %v1543 = vadd.f32 0.0, %v1542
    %v1544 = vpop.f32.mrf.mxu0
    %v1545 = vadd.f32 0.0, %v1544
    %v1546 = vpop.f32.mrf.mxu0
    %v1547 = vadd.f32 0.0, %v1546
    %1548 = vdwg.mxu0
    %1549 = vmatprep.subr.bf16.mxu0 %v1432
    %1550 = vmatpush1.bf16.msra.mxu0 %v1431
    %1551 = vmatprep.subr.bf16.mxu0 %v1429
    %1552 = vmatpush1.bf16.msra.mxu0 %v1428
    %1553 = vmatprep.subr.bf16.mxu0 %v1426
    %1554 = vmatpush1.bf16.msra.mxu0 %v1425
    %1555 = vmatprep.subr.bf16.mxu0 %v1423
    %1556 = vmatpush1.bf16.msra.mxu0 %v1422
    %1557 = vmatprep.subr.bf16.mxu0 %v1420
    %1558 = vmatpush1.bf16.msra.mxu0 %v1419
    %1559 = vmatprep.subr.bf16.mxu0 %v1417
    %1560 = vmatpush1.bf16.msra.mxu0 %v1416
    %1561 = vmatprep.subr.bf16.mxu0 %v1414
    %1562 = vmatpush1.bf16.msra.mxu0 %v1413
    %1563 = vmatprep.subr.bf16.mxu0 %v1411
    %1564 = vmatpush1.bf16.msra.mxu0 %v1410
    %1565 = vmatprep.subr.bf16.mxu0 0
    %1566 = vmatpush2.bf16.msra.mxu0 0
    %1567 = vmatprep.subr.bf16.mxu0 0
    %1568 = vmatpush2.bf16.msra.mxu0 0
    %1569 = vmatprep.subr.bf16.mxu0 0
    %1570 = vmatpush2.bf16.msra.mxu0 0
    %1571 = vmatprep.subr.bf16.mxu0 0
    %1572 = vmatpush2.bf16.msra.mxu0 0
    %1573 = vmatprep.subr.bf16.mxu0 0
    %1574 = vmatpush2.bf16.msra.mxu0 0
    %1575 = vmatprep.subr.bf16.mxu0 0
    %1576 = vmatpush2.bf16.msra.mxu0 0
    %1577 = vmatprep.subr.bf16.mxu0 0
    %1578 = vmatpush2.bf16.msra.mxu0 0
    %1579 = vmatprep.subr.bf16.mxu0 0
    %1580 = vmatpush2.bf16.msra.mxu0 0
    %1581 = vmatprep.mubr.bf16.mxu0 0
    %1582 = vmatmul.mubr.bf16.gmra.mxu0 %v1025
    %v1583 = vpop.f32.mrf.mxu0
    %v1584 = vadd.f32 %v1541, %v1583
    %v1585 = vpop.f32.mrf.mxu0
    %v1586 = vadd.f32 %v1543, %v1585
    %v1587 = vpop.f32.mrf.mxu0
    %v1588 = vadd.f32 %v1545, %v1587
    %v1589 = vpop.f32.mrf.mxu0
    %v1590 = vadd.f32 %v1547, %v1589
    %1591 = vdwg.mxu0
    %1592 = vmatprep.subr.bf16.mxu0 0
    %1593 = vmatpush1.bf16.msra.mxu0 %v1385
    %1594 = vmatprep.subr.bf16.mxu0 0
    %1595 = vmatpush1.bf16.msra.mxu0 %v1382
    %1596 = vmatprep.subr.bf16.mxu0 0
    %1597 = vmatpush1.bf16.msra.mxu0 %v1379
    %1598 = vmatprep.subr.bf16.mxu0 0
    %1599 = vmatpush1.bf16.msra.mxu0 %v1376
    %1600 = vmatprep.subr.bf16.mxu0 0
    %1601 = vmatpush1.bf16.msra.mxu0 %v1373
    %1602 = vmatprep.subr.bf16.mxu0 0
    %1603 = vmatpush1.bf16.msra.mxu0 %v1370
    %1604 = vmatprep.subr.bf16.mxu0 0
    %1605 = vmatpush1.bf16.msra.mxu0 %v1367
    %1606 = vmatprep.subr.bf16.mxu0 0
    %1607 = vmatpush1.bf16.msra.mxu0 %v1364
    %1608 = vmatprep.subr.bf16.mxu0 0
    %1609 = vmatpush2.bf16.msra.mxu0 %v1409
    %1610 = vmatprep.subr.bf16.mxu0 0
    %1611 = vmatpush2.bf16.msra.mxu0 %v1406
    %1612 = vmatprep.subr.bf16.mxu0 0
    %1613 = vmatpush2.bf16.msra.mxu0 %v1403
    %1614 = vmatprep.subr.bf16.mxu0 0
    %1615 = vmatpush2.bf16.msra.mxu0 %v1400
    %1616 = vmatprep.subr.bf16.mxu0 0
    %1617 = vmatpush2.bf16.msra.mxu0 %v1397
    %1618 = vmatprep.subr.bf16.mxu0 0
    %1619 = vmatpush2.bf16.msra.mxu0 %v1394
    %1620 = vmatprep.subr.bf16.mxu0 0
    %1621 = vmatpush2.bf16.msra.mxu0 %v1391
    %1622 = vmatprep.subr.bf16.mxu0 0
    %1623 = vmatpush2.bf16.msra.mxu0 %v1388
    %1624 = vmatprep.mubr.bf16.mxu0 %v1024
    %1625 = vmatmul.mubr.bf16.gmra.mxu0 %v1023
    %v1626 = vpop.f32.mrf.mxu0
    %v1627 = vadd.f32 0.0, %v1626
    %v1628 = vpop.f32.mrf.mxu0
    %v1629 = vpop.f32.mrf.mxu0
    %v1630 = vadd.f32 0.0, %v1629
    %v1631 = vpop.f32.mrf.mxu0
    %1632 = vdwg.mxu0
    %1633 = vmatprep.subr.bf16.mxu0 0
    %1634 = vmatpush1.bf16.msra.mxu0 %v1433
    %1635 = vmatprep.subr.bf16.mxu0 0
    %1636 = vmatpush1.bf16.msra.mxu0 %v1430
    %1637 = vmatprep.subr.bf16.mxu0 0
    %1638 = vmatpush1.bf16.msra.mxu0 %v1427
    %1639 = vmatprep.subr.bf16.mxu0 0
    %1640 = vmatpush1.bf16.msra.mxu0 %v1424
    %1641 = vmatprep.subr.bf16.mxu0 0
    %1642 = vmatpush1.bf16.msra.mxu0 %v1421
    %1643 = vmatprep.subr.bf16.mxu0 0
    %1644 = vmatpush1.bf16.msra.mxu0 %v1418
    %1645 = vmatprep.subr.bf16.mxu0 0
    %1646 = vmatpush1.bf16.msra.mxu0 %v1415
    %1647 = vmatprep.subr.bf16.mxu0 0
    %1648 = vmatpush1.bf16.msra.mxu0 %v1412
    %1649 = vmatprep.subr.bf16.mxu0 0
    %1650 = vmatpush2.bf16.msra.mxu0 0
    %1651 = vmatprep.subr.bf16.mxu0 0
    %1652 = vmatpush2.bf16.msra.mxu0 0
    %1653 = vmatprep.subr.bf16.mxu0 0
    %1654 = vmatpush2.bf16.msra.mxu0 0
    %1655 = vmatprep.subr.bf16.mxu0 0
    %1656 = vmatpush2.bf16.msra.mxu0 0
    %1657 = vmatprep.subr.bf16.mxu0 0
    %1658 = vmatpush2.bf16.msra.mxu0 0
    %1659 = vmatprep.subr.bf16.mxu0 0
    %1660 = vmatpush2.bf16.msra.mxu0 0
    %1661 = vmatprep.subr.bf16.mxu0 0
    %1662 = vmatpush2.bf16.msra.mxu0 0
    %1663 = vmatprep.subr.bf16.mxu0 0
    %1664 = vmatpush2.bf16.msra.mxu0 0
    %1665 = vmatprep.mubr.bf16.mxu0 0
    %1666 = vmatmul.mubr.bf16.gmra.mxu0 %v1025
    %v1667 = vpop.f32.mrf.mxu0
    %v1668 = vadd.f32 %v1627, %v1667
    %v1669 = vpop.f32.mrf.mxu0
    %v1670 = vpop.f32.mrf.mxu0
    %v1671 = vadd.f32 %v1630, %v1670
    %v1672 = vpop.f32.mrf.mxu0
    %1673 = vdwg.mxu0
    %v1674 = vmax.f32 %v1584, 0.0
    %v1675 = vmax.f32 %v1586, 0.0
    %v1676 = vmax.f32 %v1668, 0.0
    %v1677 = vmax.f32 %v1588, 0.0
    %v1678 = vmax.f32 %v1590, 0.0
    %v1679 = vmax.f32 %v1671, 0.0
    %v1680 = vpack.c.bf16 %v1677, %v1674
    %v1681 = vpack.c.bf16 %v1678, %v1675
    %v1682 = vpack.c.bf16 %v1679, %v1676
    %v1683 = vld [vmem:[%s4] sm:$0xf]
    %v1684 = vld [vmem:[%s4 + $0x4] sm:$0xf]
    %v1685 = vld [vmem:[%s4 + $0x8] sm:$0xf]
    %v1686 = vld [vmem:[%s4 + $0xc] sm:$0xf]
    %v1687 = vld [vmem:[%s4 + $0x10] sm:$0xf]
    %v1688 = vld [vmem:[%s4 + $0x14] sm:$0xf]
    %v1689 = vld [vmem:[%s4 + $0x18] sm:$0xf]
    %v1690 = vld [vmem:[%s4 + $0x1c] sm:$0xf]
    %v1691 = vld [vmem:[%s4 + $0x20] sm:$0xf]
    %v1692 = vld [vmem:[%s4 + $0x24] sm:$0xf]
    %v1693 = vld [vmem:[%s4 + $0x28] sm:$0xf]
    %v1694 = vld [vmem:[%s4 + $0x2c] sm:$0xf]
    %v1695 = vld [vmem:[%s4 + $0x30] sm:$0xf]
    %v1696 = vld [vmem:[%s4 + $0x34] sm:$0xf]
    %v1697 = vld [vmem:[%s4 + $0x38] sm:$0xf]
    %v1698 = vld [vmem:[%s4 + $0x3c] sm:$0xf]
    %v1699 = vld [vmem:[%s4 + $0x40] sm:$0xf]
    %v1700 = vld [vmem:[%s4 + $0x44] sm:$0xf]
    %v1701 = vld [vmem:[%s4 + $0x48] sm:$0xf]
    %v1702 = vld [vmem:[%s4 + $0x4c] sm:$0xf]
    %v1703 = vld [vmem:[%s4 + $0x50] sm:$0xf]
    %v1704 = vld [vmem:[%s4 + $0x54] sm:$0xf]
    %v1705 = vld [vmem:[%s4 + $0x58] sm:$0xf]
    %v1706 = vld [vmem:[%s4 + $0x5c] sm:$0xf]
    %v1707 = vld [vmem:[%s4 + $0x60] sm:$0xf]
    %v1708 = vld [vmem:[%s4 + $0x64] sm:$0xf]
    %v1709 = vld [vmem:[%s4 + $0x68] sm:$0xf]
    %v1710 = vld [vmem:[%s4 + $0x6c] sm:$0xf]
    %v1711 = vld [vmem:[%s4 + $0x70] sm:$0xf]
    %v1712 = vld [vmem:[%s4 + $0x74] sm:$0xf]
    %v1713 = vld [vmem:[%s4 + $0x78] sm:$0xf]
    %v1714 = vld [vmem:[%s4 + $0x7c] sm:$0xf]
    %v1715 = vld [vmem:[%s4 + $0x80] sm:$0xf]
    %v1716 = vld [vmem:[%s4 + $0x84] sm:$0xf]
    %v1717 = vld [vmem:[%s4 + $0x88] sm:$0xf]
    %v1718 = vld [vmem:[%s4 + $0x8c] sm:$0xf]
    %v1719 = vld [vmem:[%s4 + $0x90] sm:$0xf]
    %v1720 = vld [vmem:[%s4 + $0x94] sm:$0xf]
    %v1721 = vld [vmem:[%s4 + $0x98] sm:$0xf]
    %v1722 = vld [vmem:[%s4 + $0x9c] sm:$0xf]
    %v1723 = vld [vmem:[%s4 + $0xa0] sm:$0xf]
    %v1724 = vld [vmem:[%s4 + $0xa4] sm:$0xf]
    %v1725 = vld [vmem:[%s4 + $0xa8] sm:$0xf]
    %v1726 = vld [vmem:[%s4 + $0xac] sm:$0xf]
    %v1727 = vld [vmem:[%s4 + $0xb0] sm:$0xf]
    %v1728 = vld [vmem:[%s4 + $0xb4] sm:$0xf]
    %v1729 = vld [vmem:[%s4 + $0xb8] sm:$0xf]
    %v1730 = vld [vmem:[%s4 + $0xbc] sm:$0xf]
    %v1779 = vunpack.c.l.b16 %v1683
    %v1780 = vunpack.c.l.b16 %v1684
    %v1781 = vunpack.c.l.b16 %v1685
    %v1782 = vunpack.c.l.b16 %v1686
    %v1783 = vunpack.c.l.b16 %v1687
    %v1784 = vunpack.c.l.b16 %v1688
    %v1785 = vunpack.c.l.b16 %v1689
    %v1786 = vunpack.c.l.b16 %v1690
    %v1787 = vunpack.c.l.b16 %v1691
    %v1788 = vunpack.c.l.b16 %v1692
    %v1789 = vunpack.c.l.b16 %v1693
    %v1790 = vunpack.c.l.b16 %v1694
    %v1791 = vunpack.c.l.b16 %v1695
    %v1792 = vunpack.c.l.b16 %v1696
    %v1793 = vunpack.c.l.b16 %v1697
    %v1794 = vunpack.c.l.b16 %v1698
    %v1795 = vunpack.c.l.b16 %v1699
    %v1796 = vunpack.c.l.b16 %v1700
    %v1797 = vunpack.c.l.b16 %v1701
    %v1798 = vunpack.c.l.b16 %v1702
    %v1799 = vunpack.c.l.b16 %v1703
    %v1800 = vunpack.c.l.b16 %v1704
    %v1801 = vunpack.c.l.b16 %v1705
    %v1802 = vunpack.c.l.b16 %v1706
    %v1803 = vunpack.c.l.b16 %v1707
    %v1804 = vunpack.c.l.b16 %v1708
    %v1805 = vunpack.c.l.b16 %v1709
    %v1806 = vunpack.c.l.b16 %v1710
    %v1807 = vunpack.c.l.b16 %v1711
    %v1808 = vunpack.c.l.b16 %v1712
    %v1809 = vunpack.c.l.b16 %v1713
    %v1810 = vunpack.c.l.b16 %v1714
    %v1811 = vunpack.c.l.b16 %v1715
    %v1812 = vunpack.c.l.b16 %v1716
    %v1813 = vunpack.c.l.b16 %v1717
    %v1814 = vunpack.c.l.b16 %v1718
    %v1815 = vunpack.c.l.b16 %v1719
    %v1816 = vunpack.c.l.b16 %v1720
    %v1817 = vunpack.c.l.b16 %v1721
    %v1818 = vunpack.c.l.b16 %v1722
    %v1819 = vunpack.c.l.b16 %v1723
    %v1820 = vunpack.c.l.b16 %v1724
    %v1821 = vunpack.c.l.b16 %v1725
    %v1822 = vunpack.c.l.b16 %v1726
    %v1823 = vunpack.c.l.b16 %v1727
    %v1824 = vunpack.c.l.b16 %v1728
    %v1825 = vunpack.c.l.b16 %v1729
    %v1826 = vunpack.c.l.b16 %v1730
    %v1827 = vpack.c.b16 %v1780, %v1779
    %v1828 = vpack.c.b16 %v1782, %v1781
    %v1829 = vpack.c.b16 %v1784, %v1783
    %v1830 = vpack.c.b16 %v1786, %v1785
    %v1831 = vpack.c.b16 %v1788, %v1787
    %v1832 = vpack.c.b16 %v1790, %v1789
    %v1833 = vpack.c.b16 %v1792, %v1791
    %v1834 = vpack.c.b16 %v1794, %v1793
    %v1835 = vpack.c.b16 %v1796, %v1795
    %v1836 = vpack.c.b16 %v1798, %v1797
    %v1837 = vpack.c.b16 %v1800, %v1799
    %v1838 = vpack.c.b16 %v1802, %v1801
    %v1839 = vpack.c.b16 %v1804, %v1803
    %v1840 = vpack.c.b16 %v1806, %v1805
    %v1841 = vpack.c.b16 %v1808, %v1807
    %v1842 = vpack.c.b16 %v1810, %v1809
    %v1843 = vpack.c.b16 %v1812, %v1811
    %v1844 = vpack.c.b16 %v1814, %v1813
    %v1845 = vpack.c.b16 %v1816, %v1815
    %v1846 = vpack.c.b16 %v1818, %v1817
    %v1847 = vpack.c.b16 %v1820, %v1819
    %v1848 = vpack.c.b16 %v1822, %v1821
    %v1849 = vpack.c.b16 %v1824, %v1823
    %v1850 = vpack.c.b16 %v1826, %v1825
    %1875 = vmatprep.subr.bf16.mxu0 0
    %1876 = vmatpush1.bf16.msra.mxu0 %v1834
    %1877 = vmatprep.subr.bf16.mxu0 0
    %1878 = vmatpush1.bf16.msra.mxu0 %v1833
    %1879 = vmatprep.subr.bf16.mxu0 0
    %1880 = vmatpush1.bf16.msra.mxu0 %v1832
    %1881 = vmatprep.subr.bf16.mxu0 0
    %1882 = vmatpush1.bf16.msra.mxu0 %v1831
    %1883 = vmatprep.subr.bf16.mxu0 0
    %1884 = vmatpush1.bf16.msra.mxu0 %v1830
    %1885 = vmatprep.subr.bf16.mxu0 0
    %1886 = vmatpush1.bf16.msra.mxu0 %v1829
    %1887 = vmatprep.subr.bf16.mxu0 0
    %1888 = vmatpush1.bf16.msra.mxu0 %v1828
    %1889 = vmatprep.subr.bf16.mxu0 0
    %1890 = vmatpush1.bf16.msra.mxu0 %v1827
    %1891 = vmatprep.subr.bf16.mxu0 0
    %1892 = vmatpush2.bf16.msra.mxu0 %v1842
    %1893 = vmatprep.subr.bf16.mxu0 0
    %1894 = vmatpush2.bf16.msra.mxu0 %v1841
    %1895 = vmatprep.subr.bf16.mxu0 0
    %1896 = vmatpush2.bf16.msra.mxu0 %v1840
    %1897 = vmatprep.subr.bf16.mxu0 0
    %1898 = vmatpush2.bf16.msra.mxu0 %v1839
    %1899 = vmatprep.subr.bf16.mxu0 0
    %1900 = vmatpush2.bf16.msra.mxu0 %v1838
    %1901 = vmatprep.subr.bf16.mxu0 0
    %1902 = vmatpush2.bf16.msra.mxu0 %v1837
    %1903 = vmatprep.subr.bf16.mxu0 0
    %1904 = vmatpush2.bf16.msra.mxu0 %v1836
    %1905 = vmatprep.subr.bf16.mxu0 0
    %1906 = vmatpush2.bf16.msra.mxu0 %v1835
    %1907 = vmatprep.mubr.bf16.mxu0 %v1681
    %1908 = vmatmul.mubr.bf16.gmra.mxu0 %v1680
    %v1909 = vpop.f32.mrf.mxu0
    %v1910 = vadd.f32 0.0, %v1909
    %v1911 = vpop.f32.mrf.mxu0
    %v1912 = vpop.f32.mrf.mxu0
    %v1913 = vadd.f32 0.0, %v1912
    %v1914 = vpop.f32.mrf.mxu0
    %1915 = vdwg.mxu0
    %1916 = vmatprep.subr.bf16.mxu0 0
    %1917 = vmatpush1.bf16.msra.mxu0 %v1850
    %1918 = vmatprep.subr.bf16.mxu0 0
    %1919 = vmatpush1.bf16.msra.mxu0 %v1849
    %1920 = vmatprep.subr.bf16.mxu0 0
    %1921 = vmatpush1.bf16.msra.mxu0 %v1848
    %1922 = vmatprep.subr.bf16.mxu0 0
    %1923 = vmatpush1.bf16.msra.mxu0 %v1847
    %1924 = vmatprep.subr.bf16.mxu0 0
    %1925 = vmatpush1.bf16.msra.mxu0 %v1846
    %1926 = vmatprep.subr.bf16.mxu0 0
    %1927 = vmatpush1.bf16.msra.mxu0 %v1845
    %1928 = vmatprep.subr.bf16.mxu0 0
    %1929 = vmatpush1.bf16.msra.mxu0 %v1844
    %1930 = vmatprep.subr.bf16.mxu0 0
    %1931 = vmatpush1.bf16.msra.mxu0 %v1843
    %1932 = vmatprep.subr.bf16.mxu0 0
    %1933 = vmatpush2.bf16.msra.mxu0 0
    %1934 = vmatprep.subr.bf16.mxu0 0
    %1935 = vmatpush2.bf16.msra.mxu0 0
    %1936 = vmatprep.subr.bf16.mxu0 0
    %1937 = vmatpush2.bf16.msra.mxu0 0
    %1938 = vmatprep.subr.bf16.mxu0 0
    %1939 = vmatpush2.bf16.msra.mxu0 0
    %1940 = vmatprep.subr.bf16.mxu0 0
    %1941 = vmatpush2.bf16.msra.mxu0 0
    %1942 = vmatprep.subr.bf16.mxu0 0
    %1943 = vmatpush2.bf16.msra.mxu0 0
    %1944 = vmatprep.subr.bf16.mxu0 0
    %1945 = vmatpush2.bf16.msra.mxu0 0
    %1946 = vmatprep.subr.bf16.mxu0 0
    %1947 = vmatpush2.bf16.msra.mxu0 0
    %1948 = vmatprep.mubr.bf16.mxu0 0
    %1949 = vmatmul.mubr.bf16.gmra.mxu0 %v1682
    %v1950 = vpop.f32.mrf.mxu0
    %v1951 = vadd.f32 %v1910, %v1950
    %v1952 = vpop.f32.mrf.mxu0
    %v1953 = vpop.f32.mrf.mxu0
    %v1954 = vadd.f32 %v1913, %v1953
    %v1955 = vpop.f32.mrf.mxu0
    %1956 = vdwg.mxu0
    %v1957 = vld [vmem:[%s5] sm:$0x1]
    %v1958 = vld [vmem:[%s5 + $0x1] sm:$0x1]
    %vm1959 = vcmp.gt.f32.partialorder %v1958, 0.5
    %v1960 = vtanh.pop %v1951
    %v1961 = vtanh.pop %v1954
    %v1962 = vxor.u32 %v1951, 2147483648
    %v1963 = vxor.u32 %v1954, 2147483648
    %v1964 = vmul.f32 %v1962, 1.442695
    %v1965 = vpow.pop %v1964
    %v1966 = vmul.f32 %v1963, 1.442695
    %v1967 = vpow.pop %v1966
    %v1968 = vadd.f32 %v1965, 1.0
    %v1969 = vadd.f32 %v1967, 1.0
    %v1970 = vrcp.pop %v1968
    %v1971 = vmul.f32 1.0, %v1970
    %v1972 = vrcp.pop %v1969
    %v1973 = vmul.f32 1.0, %v1972
    %v1974 = vsel %vm1959, 1, 0
    %v1975 = vlaneseq
    %v1976 = vshrl.u32 %v1975, 7
    %v1977 = vsub.s32 0, %v1976
    %v1978 = vrot.slane %v1974, %v1977
    %vm1979 = vcmp.eq.s32.totalorder %v1978, 1
    %v1980 = vsel %vm1979, %v1960, %v1971
    %v1981 = vsel %vm1979, %v1961, %v1973
    %v1982 = vlaneseq
    %v1983 = vshrl.u32 %v1982, 7
    %v1984 = vsub.s32 0, %v1983
    %v1985 = vrot.slane %v1957, %v1984
    %v1986 = vmul.f32 %v1980, %v1985
    %v1987 = vmul.f32 %v1981, %v1985
    %vm1988 = vcmask 64512
    %1989 = vst.msk [vmem:[%s6] sm:$0xff] %vm1988, %v1986
    %1990 = vst.msk [vmem:[%s6 + $0x8] sm:$0xff] %vm1988, %v1987
    // Predicated region
    $region34: #{tpu_custom_call.1} parent=1 // pred_check
      _
    $region35: #{tpu_custom_call.1} parent=1 // pred_check_branch
      %1992 = sbr.rel (0) target = $region37
    $region36: #{tpu_custom_call.1} parent=1 // pred_region
      _
    $region37: #{tpu_custom_call.1} parent=1 // pred_fallthru
      _
    // Predicated region
    $region38: #{tpu_custom_call.1} parent=1 // pred_check
      _
    $region39: #{tpu_custom_call.1} parent=1 // pred_check_branch
      %1994 = sbr.rel (0) target = $region41
    $region40: #{tpu_custom_call.1} parent=1 // pred_region
      _
    $region41: #{tpu_custom_call.1} parent=1 // pred_fallthru
      _
    %1995 = vsyncpa [#allocation3], 1
    %1996 = vsyncpa [#allocation5], 1

</llo_original>
